<compile_context>
chip_gen: v7x
topology: tpu7x:2x2x1
jax: 0.10.0
libtpu: 0.0.40
codegen_flags: <defaults>
</compile_context>

<pallas_src>
import functools

import jax
import jax.numpy as jnp
import numpy as np
from jax import lax
from jax.experimental import pallas as pl
from jax.experimental.pallas import tpu as pltpu


# ----------------------------------------------------------------------------
# Kernel 1: LSTM recurrence with pre-computed input gates.
#   gx (L, B, 4H) already holds x @ W_ih + b_ih + b_hh; the kernel only does
#   the sequential (B,H) @ (H,4H) recurrence, T_UNROLL steps per grid step.
#   PyTorch gate order (i, f, g, o) is preserved in the packed 4H layout.
# ----------------------------------------------------------------------------
def _lstm_recurrence_kernel(gx_ref, whh_ref, y_ref, h_sc, c_sc, *, t_unroll):
    @pl.when(pl.program_id(0) == 0)
    def _():
        h_sc[...] = jnp.zeros_like(h_sc)
        c_sc[...] = jnp.zeros_like(c_sc)

    H = h_sc.shape[-1]
    whh = whh_ref[...]                          # loaded once per grid step

    def step(u, carry):
        gates = gx_ref[u].astype(jnp.float32) + jnp.dot(
            h_sc[...], whh, preferred_element_type=jnp.float32)       # (B, 4H)
        # NOTE: at real scale H is a multiple of 128, so these slices are
        # lane-aligned (toy H=32 is functionally fine, just masked vreg ops).
        i = jax.nn.sigmoid(gates[:, 0 * H:1 * H])
        f = jax.nn.sigmoid(gates[:, 1 * H:2 * H])
        g = jnp.tanh(gates[:, 2 * H:3 * H])
        o = jax.nn.sigmoid(gates[:, 3 * H:4 * H])
        c = f * c_sc[...] + i * g
        h = o * jnp.tanh(c)
        c_sc[...] = c
        h_sc[...] = h
        y_ref[u] = h.astype(y_ref.dtype)
        return carry

    lax.fori_loop(0, t_unroll, step, None, unroll=True)


def lstm_recurrence(gates_x_tm, w_hh_t, *, t_unroll=None):
    """gates_x_tm: (L, B, 4H) time-major (input proj + biases already applied).
    Returns hidden states (L, B, H)."""
    L, B, G = gates_x_tm.shape
    H = w_hh_t.shape[0]
    assert G == 4 * H
    if t_unroll is None:
        t_unroll = next(t for t in (8, 4, 2, 1) if L % t == 0)
    assert L % t_unroll == 0
    return pl.pallas_call(
        functools.partial(_lstm_recurrence_kernel, t_unroll=t_unroll),
        out_shape=jax.ShapeDtypeStruct((L, B, H), jnp.float32),
        grid_spec=pltpu.PrefetchScalarGridSpec(
            num_scalar_prefetch=0,
            grid=(L // t_unroll,),
            in_specs=[
                pl.BlockSpec((t_unroll, B, 4 * H), lambda t: (t, 0, 0)),
                pl.BlockSpec((H, 4 * H), lambda t: (0, 0)),
            ],
            out_specs=pl.BlockSpec((t_unroll, B, H), lambda t: (t, 0, 0)),
            scratch_shapes=[pltpu.VMEM((B, H), jnp.float32),
                            pltpu.VMEM((B, H), jnp.float32)],
        ),
        compiler_params=pltpu.CompilerParams(
            dimension_semantics=("arbitrary",)),
    )(gates_x_tm, w_hh_t)


# ----------------------------------------------------------------------------
# Kernel 2: SoftDotAttention (output_tilde=True path), tiled over N = B*L:
#   target = h @ W_in ; logits = <ctx, target> ; softmax ; weighted sum ;
#   h_tilde = tanh([weighted, h] @ W_out)  (concat folded into two matmuls).
# ----------------------------------------------------------------------------
def _softdot_kernel(h_ref, ctx_ref, win_ref, woutc_ref, wouth_ref, o_ref):
    h = h_ref[...].astype(jnp.float32)                                   # (TN, H)
    ctx = ctx_ref[...].astype(jnp.float32)                               # (TN, V, F)
    target = jnp.dot(h, win_ref[...], preferred_element_type=jnp.float32)
    logits = jnp.sum(ctx * target[:, None, :], axis=-1)                  # (TN, V)
    m = jnp.max(logits, axis=-1, keepdims=True)
    e = jnp.exp(logits - m)
    attn = e * pl.reciprocal(jnp.sum(e, axis=-1, keepdims=True), approx=True)
    weighted = jnp.sum(attn[:, :, None] * ctx, axis=1)                   # (TN, F)
    h_tilde = jnp.tanh(
        jnp.dot(weighted, woutc_ref[...], preferred_element_type=jnp.float32)
        + jnp.dot(h, wouth_ref[...], preferred_element_type=jnp.float32))
    o_ref[...] = h_tilde.astype(o_ref.dtype)


def softdot_attention(h, ctx, w_in_t, w_out_ctx_t, w_out_h_t, *, tile_n=None):
    """h: (N, H), ctx: (N, V, F). Returns h_tilde: (N, H)."""
    N, H = h.shape
    _, V, F = ctx.shape
    if tile_n is None:
        tile_n = next((t for t in (32, 16, 8) if N % t == 0), N)
    assert N % tile_n == 0
    cost = pl.CostEstimate(
        flops=int(2 * N * (H * F + 2 * V * F + F * H + H * H)),
        transcendentals=int(N * (V + H)),
        bytes_accessed=int(4 * (2 * N * H + N * V * F + H * F + F * H + H * H)))
    return pl.pallas_call(
        _softdot_kernel,
        out_shape=jax.ShapeDtypeStruct((N, H), jnp.float32),
        grid_spec=pltpu.PrefetchScalarGridSpec(
            num_scalar_prefetch=0,
            grid=(N // tile_n,),
            in_specs=[
                pl.BlockSpec((tile_n, H), lambda n: (n, 0)),
                pl.BlockSpec((tile_n, V, F), lambda n: (n, 0, 0)),
                pl.BlockSpec((H, F), lambda n: (0, 0)),
                pl.BlockSpec((F, H), lambda n: (0, 0)),
                pl.BlockSpec((H, H), lambda n: (0, 0)),
            ],
            out_specs=pl.BlockSpec((tile_n, H), lambda n: (n, 0)),
        ),
        compiler_params=pltpu.CompilerParams(
            dimension_semantics=("parallel",)),
        cost_estimate=cost,
    )(h, ctx, w_in_t, w_out_ctx_t, w_out_h_t)


# ----------------------------------------------------------------------------
# Kernel 3: MyNewAttention_vectorized (eval mode), tiled over N = B*L:
#   q_proj = relu(q @ Wq + bq) ; v_proj = relu(v @ Wv + bv)
#   logits = (v_proj * q_proj) @ wl + bl ; attn = softmax_k ; out = attn @ v
# ----------------------------------------------------------------------------
def _detect_attn_kernel(q_ref, v_ref, wq_ref, bq_ref, wv_ref, bv_ref,
                        wl_ref, bl_ref, o_ref):
    TN, Nd, D = v_ref.shape
    K = wq_ref.shape[-1]
    q = q_ref[...].astype(jnp.float32)                                    # (TN, H)
    v = v_ref[...].astype(jnp.float32)                                    # (TN, Nd, D)
    q_proj = jax.nn.relu(
        jnp.dot(q, wq_ref[...], preferred_element_type=jnp.float32)
        + bq_ref[...])                                                    # (TN, K)
    v_proj = jax.nn.relu(
        jnp.dot(v.reshape(TN * Nd, D), wv_ref[...],
                preferred_element_type=jnp.float32)
        + bv_ref[...]).reshape(TN, Nd, K)                                 # (TN, Nd, K)
    joint = v_proj * q_proj[:, None, :]
    logits = jnp.sum(joint * wl_ref[...], axis=-1) + bl_ref[...]          # (TN, Nd)
    m = jnp.max(logits, axis=-1, keepdims=True)
    e = jnp.exp(logits - m)
    attn = e * pl.reciprocal(jnp.sum(e, axis=-1, keepdims=True), approx=True)
    o_ref[...] = jnp.sum(attn[:, :, None] * v, axis=1).astype(o_ref.dtype)


def detect_attention(q, v, wq_t, bq, wv_t, bv, wl, bl, *, tile_n=None):
    """q: (N, H) ctx rows; v: (N, Nd, D) per-row detect feats. Returns (N, D)."""
    N, H = q.shape
    _, Nd, D = v.shape
    K = wq_t.shape[-1]
    if tile_n is None:
        tile_n = next((t for t in (32, 16, 8) if N % t == 0), N)
    assert N % tile_n == 0
    cost = pl.CostEstimate(
        flops=int(2 * N * (H * K + Nd * D * K + Nd * K + Nd * D)),
        transcendentals=int(N * Nd),
        bytes_accessed=int(4 * (N * H + N * Nd * D + H * K + D * K
                                + 3 * K + 1 + N * D)))
    return pl.pallas_call(
        _detect_attn_kernel,
        out_shape=jax.ShapeDtypeStruct((N, D), jnp.float32),
        grid_spec=pltpu.PrefetchScalarGridSpec(
            num_scalar_prefetch=0,
            grid=(N // tile_n,),
            in_specs=[
                pl.BlockSpec((tile_n, H), lambda n: (n, 0)),
                pl.BlockSpec((tile_n, Nd, D), lambda n: (n, 0, 0)),
                pl.BlockSpec((H, K), lambda n: (0, 0)),
                pl.BlockSpec((1, K), lambda n: (0, 0)),
                pl.BlockSpec((D, K), lambda n: (0, 0)),
                pl.BlockSpec((1, K), lambda n: (0, 0)),
                pl.BlockSpec((1, K), lambda n: (0, 0)),
                pl.BlockSpec((1, 1), lambda n: (0, 0)),
            ],
            out_specs=pl.BlockSpec((tile_n, D), lambda n: (n, 0)),
        ),
        compiler_params=pltpu.CompilerParams(
            dimension_semantics=("parallel",)),
        cost_estimate=cost,
    )(q, v, wq_t, bq, wv_t, bv, wl, bl)


# ----------------------------------------------------------------------------
# Full forward pass.
# ----------------------------------------------------------------------------
def speaker_encoder_forward(params, action_embeds, feature, detect_feats,
                            *, t_unroll=None, attn_tile=None):
    B, L, Fs = action_embeds.shape
    _, _, V, _ = feature.shape
    _, _, Nd, D = detect_feats.shape
    H = params['hidden_size']
    HI = lax.Precision.HIGHEST

    # --- LSTM 1: hoisted input projection (dense MXU matmul, time-major output
    # so no big-tensor transpose), then Pallas recurrence kernel. ---
    gx1 = jnp.einsum('blf,fg->lbg', action_embeds, params['lstm1_wih'],
                     precision=HI) + params['lstm1_b']                    # (L, B, 4H)
    ctx_tm = lstm_recurrence(gx1, params['lstm1_whh'], t_unroll=t_unroll)
    ctx = jnp.transpose(ctx_tm, (1, 0, 2))                                # (B, L, H) - small
    ctx_flat = ctx.reshape(B * L, H)

    # --- detect attention (MyNewAttention_vectorized) ---
    x_det = detect_attention(
        ctx_flat, detect_feats.reshape(B * L, Nd, D),
        params['det_wq'], params['det_bq'], params['det_wv'], params['det_bv'],
        params['det_wl'], params['det_bl'], tile_n=attn_tile)             # (B*L, D)

    # --- soft-dot attention over the 36 views ---
    x_att = softdot_attention(
        ctx_flat, feature.reshape(B * L, V, Fs),
        params['att_win'], params['att_wout_ctx'], params['att_wout_h'],
        tile_n=attn_tile)                                                 # (B*L, H)

    # --- LSTM 2: concat folded into two projections (no (B,L,H+256) concat) ---
    gx2 = (jnp.einsum('blh,hg->lbg', x_att.reshape(B, L, H),
                      params['lstm2_wih_att'], precision=HI)
           + jnp.einsum('bld,dg->lbg', x_det.reshape(B, L, D),
                        params['lstm2_wih_det'], precision=HI)
           + params['lstm2_b'])                                           # (L, B, 4H)
    out_tm = lstm_recurrence(gx2, params['lstm2_whh'], t_unroll=t_unroll)
    return jnp.transpose(out_tm, (1, 0, 2))                               # (B, L, H)


# ----------------------------------------------------------------------------
# Deterministic parameter initialization (shapes follow the module __init__).
# Weights are stored pre-transposed (in_dim, out_dim); weight_norm folded.
# ----------------------------------------------------------------------------
def init_params(key, feature_size, hidden_size, detect_dim=256, att_hid_dim=256):
    ks = jax.random.split(key, 16)

    def lin(k, shape, scale):
        return jax.random.normal(k, shape, jnp.float32) * scale

    H, F, D, K = hidden_size, feature_size, detect_dim, att_hid_dim
    p = {'hidden_size': H}
    p['lstm1_wih'] = lin(ks[0], (F, 4 * H), 1.0 / np.sqrt(F))
    p['lstm1_whh'] = lin(ks[1], (H, 4 * H), 1.0 / np.sqrt(H))
    p['lstm1_b'] = lin(ks[2], (1, 4 * H), 1.0 / np.sqrt(H))       # b_ih + b_hh folded
    p['att_win'] = lin(ks[3], (H, F), 1.0 / np.sqrt(H))           # linear_in (no bias)
    p['att_wout_ctx'] = lin(ks[4], (F, H), 1.0 / np.sqrt(F + H))  # linear_out split
    p['att_wout_h'] = lin(ks[5], (H, H), 1.0 / np.sqrt(F + H))
    p['det_wv'] = lin(ks[6], (D, K), 1.0 / np.sqrt(D))            # v_proj (FCNet)
    p['det_bv'] = lin(ks[7], (1, K), 1.0 / np.sqrt(D))
    p['det_wq'] = lin(ks[8], (H, K), 1.0 / np.sqrt(H))            # q_proj (FCNet)
    p['det_bq'] = lin(ks[9], (1, K), 1.0 / np.sqrt(H))
    p['det_wl'] = lin(ks[10], (1, K), 1.0 / np.sqrt(K))           # glimpse linear
    p['det_bl'] = lin(ks[11], (1, 1), 1.0 / np.sqrt(K))
    in2 = H + D
    p['lstm2_wih_att'] = lin(ks[12], (H, 4 * H), 1.0 / np.sqrt(in2))  # W_ih2[:, :H]
    p['lstm2_wih_det'] = lin(ks[13], (D, 4 * H), 1.0 / np.sqrt(in2))  # W_ih2[:, H:]
    p['lstm2_whh'] = lin(ks[14], (H, 4 * H), 1.0 / np.sqrt(H))
    p['lstm2_b'] = lin(ks[15], (1, 4 * H), 1.0 / np.sqrt(H))
    return p


# ----------------------------------------------------------------------------
# Pure-JAX reference (same math) for a correctness check.
# ----------------------------------------------------------------------------
def reference_forward(params, action_embeds, feature, detect_feats):
    with jax.default_matmul_precision('float32'):
        B, L, Fs = action_embeds.shape
        _, _, V, _ = feature.shape
        _, _, Nd, D = detect_feats.shape
        H = params['hidden_size']

        def lstm_ref(gx_bf, whh):          # gx_bf: (B, L, 4H) includes biases
            Ht = whh.shape[0]

            def step(carry, gx_t):
                h, c = carry
                gates = gx_t + h @ whh
                i = jax.nn.sigmoid(gates[:, :Ht])
                f = jax.nn.sigmoid(gates[:, Ht:2 * Ht])
                g = jnp.tanh(gates[:, 2 * Ht:3 * Ht])
                o = jax.nn.sigmoid(gates[:, 3 * Ht:])
                c = f * c + i * g
                h = o * jnp.tanh(c)
                return (h, c), h

            init = (jnp.zeros((B, Ht)), jnp.zeros((B, Ht)))
            _, ys = lax.scan(step, init, jnp.transpose(gx_bf, (1, 0, 2)))
            return jnp.transpose(ys, (1, 0, 2))

        gx1 = (jnp.einsum('blf,fg->blg', action_embeds, params['lstm1_wih'])
               + params['lstm1_b'])
        ctx = lstm_ref(gx1, params['lstm1_whh'])                          # (B, L, H)

        # MyNewAttention_vectorized
        q_proj = jax.nn.relu(jnp.einsum('blh,hk->blk', ctx, params['det_wq'])
                             + params['det_bq'])
        v_proj = jax.nn.relu(jnp.einsum('blnd,dk->blnk', detect_feats,
                                        params['det_wv']) + params['det_bv'])
        logits = jnp.sum(v_proj * q_proj[:, :, None, :] * params['det_wl'],
                         axis=-1) + params['det_bl'][0, 0]
        attn = jax.nn.softmax(logits, axis=-1)
        x_det = jnp.sum(attn[..., None] * detect_feats, axis=2)           # (B, L, D)

        # SoftDotAttention
        h = ctx.reshape(B * L, H)
        ctxf = feature.reshape(B * L, V, Fs)
        target = h @ params['att_win']
        lg = jnp.einsum('nvf,nf->nv', ctxf, target)
        a = jax.nn.softmax(lg, axis=-1)
        w = jnp.einsum('nv,nvf->nf', a, ctxf)
        x_att = jnp.tanh(w @ params['att_wout_ctx'] + h @ params['att_wout_h'])
        x_att = x_att.reshape(B, L, H)

        gx2 = (jnp.einsum('blh,hg->blg', x_att, params['lstm2_wih_att'])
               + jnp.einsum('bld,dg->blg', x_det, params['lstm2_wih_det'])
               + params['lstm2_b'])
        return lstm_ref(gx2, params['lstm2_whh'])


if __name__ == "__main__":
    B, L = 2, 8
    FEATURE_SIZE = 64      # stands in for 2052 at small scale
    HIDDEN = 32            # stands in for 512
    NUM_VIEWS = 36
    NUM_DETECT = 16        # uniform per-timestep detection count
    DETECT_DIM = 256       # detect_feature_size (hardcoded in the module)
    ATT_HID = 256          # att_hid_dim

    key = jax.random.PRNGKey(0)
    k1, k2, k3, kp = jax.random.split(key, 4)
    action_embeds = jax.random.normal(k1, (B, L, FEATURE_SIZE), jnp.float32)
    feature = jax.random.normal(k2, (B, L, NUM_VIEWS, FEATURE_SIZE), jnp.float32)
    detect_feats = jax.random.normal(
        k3, (B, L, NUM_DETECT, DETECT_DIM), jnp.float32)
    params = init_params(kp, FEATURE_SIZE, HIDDEN, DETECT_DIM, ATT_HID)

    fwd = jax.jit(functools.partial(speaker_encoder_forward, params,
                                    t_unroll=4, attn_tile=8))
    out = jax.block_until_ready(fwd(action_embeds, feature, detect_feats))

    assert out.shape == (B, L, HIDDEN), out.shape
    assert bool(jnp.all(jnp.isfinite(out)))

    ref = np.asarray(reference_forward(params, action_embeds, feature,
                                       detect_feats))
    err = float(np.max(np.abs(np.asarray(out) - ref)))
    assert np.allclose(np.asarray(out), ref, atol=2e-2, rtol=2e-2), err

    print("KERNEL_OK")
</pallas_src>

<mosaic_0001>
module attributes {stable_mosaic.version = 11 : i64} {
  func.func @_lstm_recurrence_kernel(%arg0: i32, %arg1: memref<4x2x128xf32, #tpu.memory_space<vmem>>, %arg2: memref<32x128xf32, #tpu.memory_space<vmem>>, %arg3: memref<4x2x32xf32, #tpu.memory_space<vmem>>, %arg4: memref<2x32xf32, #tpu.memory_space<vmem>>, %arg5: memref<2x32xf32, #tpu.memory_space<vmem>>) attributes {dimension_semantics = [#tpu.dimension_semantics<arbitrary>], iteration_bounds = array<i64: 2>, scalar_prefetch = 0 : i64, scratch_operands = 2 : i64, tpu.core_type = #tpu.core_type<tc>, window_params = [{transform_indices = @transform_0, window_bounds = array<i64: 4, 2, 128>}, {pipeline_mode = #tpu.pipeline_mode<synchronous>, transform_indices = @transform_1, window_bounds = array<i64: 32, 128>}, {transform_indices = @transform_2, window_bounds = array<i64: 4, 2, 32>}]} {
    %c0_i32 = arith.constant 0 : i32
    %0 = arith.cmpi eq, %arg0, %c0_i32 : i32
    %1 = arith.extui %0 : i1 to i32
    %c0_i32_0 = arith.constant 0 : i32
    %2 = arith.cmpi ne, %1, %c0_i32_0 : i32
    scf.if %2 {
      %cst_66 = arith.constant 0.000000e+00 : f32
      %156 = vector.broadcast %cst_66 : f32 to vector<2x32xf32>
      %c0_67 = arith.constant 0 : index
      %c0_68 = arith.constant 0 : index
      %157 = vector.load %arg4[%c0_67, %c0_68] : memref<2x32xf32, #tpu.memory_space<vmem>>, vector<2x32xf32>
      tpu.vector_store %arg4[%c0_67, %c0_68], %156 {strides = array<i32>} : memref<2x32xf32, #tpu.memory_space<vmem>>, vector<2x32xf32>,
      %cst_69 = arith.constant 0.000000e+00 : f32
      %158 = vector.broadcast %cst_69 : f32 to vector<2x32xf32>
      %c0_70 = arith.constant 0 : index
      %c0_71 = arith.constant 0 : index
      %159 = vector.load %arg5[%c0_70, %c0_71] : memref<2x32xf32, #tpu.memory_space<vmem>>, vector<2x32xf32>
      tpu.vector_store %arg5[%c0_70, %c0_71], %158 {strides = array<i32>} : memref<2x32xf32, #tpu.memory_space<vmem>>, vector<2x32xf32>,
    } else {
    }
    %c0 = arith.constant 0 : index
    %c0_1 = arith.constant 0 : index
    %3 = vector.load %arg2[%c0, %c0_1] : memref<32x128xf32, #tpu.memory_space<vmem>>, vector<32x128xf32>
    %c0_i32_2 = arith.constant 0 : i32
    %4 = arith.index_cast %c0_i32_2 : i32 to index
    %c0_3 = arith.constant 0 : index
    %c0_4 = arith.constant 0 : index
    %5 = vector.load %arg1[%4, %c0_3, %c0_4] : memref<4x2x128xf32, #tpu.memory_space<vmem>>, vector<1x2x128xf32>
    %6 = vector.shape_cast %5 : vector<1x2x128xf32> to vector<2x128xf32>
    %c0_5 = arith.constant 0 : index
    %c0_6 = arith.constant 0 : index
    %7 = vector.load %arg4[%c0_5, %c0_6] : memref<2x32xf32, #tpu.memory_space<vmem>>, vector<2x32xf32>
    %cst = arith.constant dense<0.000000e+00> : vector<2x128xf32>
    %8 = tpu.matmul %7, %3, %cst {dimension_numbers = #tpu.dot_dimension_numbers<[1], [0], [0], [1], [0, 0, 1, 1], [], []>} : vector<2x32xf32>, vector<32x128xf32>, vector<2x128xf32> -> vector<2x128xf32>
    %9 = arith.addf %6, %8 : vector<2x128xf32>
    %10 = vector.extract_strided_slice %9 {offsets = [0, 0], sizes = [2, 32], strides = [1, 1]} : vector<2x128xf32> to vector<2x32xf32>
    %11 = arith.negf %10 : vector<2x32xf32>
    %12 = math.exp %11 : vector<2x32xf32>
    %cst_7 = arith.constant 1.000000e+00 : f32
    %13 = vector.broadcast %cst_7 : f32 to vector<2x32xf32>
    %14 = arith.addf %13, %12 : vector<2x32xf32>
    %15 = arith.divf %13, %14 : vector<2x32xf32>
    %16 = vector.extract_strided_slice %9 {offsets = [0, 32], sizes = [2, 32], strides = [1, 1]} : vector<2x128xf32> to vector<2x32xf32>
    %17 = arith.negf %16 : vector<2x32xf32>
    %18 = math.exp %17 : vector<2x32xf32>
    %cst_8 = arith.constant 1.000000e+00 : f32
    %19 = vector.broadcast %cst_8 : f32 to vector<2x32xf32>
    %20 = arith.addf %19, %18 : vector<2x32xf32>
    %21 = arith.divf %19, %20 : vector<2x32xf32>
    %22 = vector.extract_strided_slice %9 {offsets = [0, 64], sizes = [2, 32], strides = [1, 1]} : vector<2x128xf32> to vector<2x32xf32>
    %23 = math.tanh %22 : vector<2x32xf32>
    %24 = vector.extract_strided_slice %9 {offsets = [0, 96], sizes = [2, 32], strides = [1, 1]} : vector<2x128xf32> to vector<2x32xf32>
    %25 = arith.negf %24 : vector<2x32xf32>
    %26 = math.exp %25 : vector<2x32xf32>
    %cst_9 = arith.constant 1.000000e+00 : f32
    %27 = vector.broadcast %cst_9 : f32 to vector<2x32xf32>
    %28 = arith.addf %27, %26 : vector<2x32xf32>
    %29 = arith.divf %27, %28 : vector<2x32xf32>
    %c0_10 = arith.constant 0 : index
    %c0_11 = arith.constant 0 : index
    %30 = vector.load %arg5[%c0_10, %c0_11] : memref<2x32xf32, #tpu.memory_space<vmem>>, vector<2x32xf32>
    %31 = arith.mulf %21, %30 : vector<2x32xf32>
    %32 = arith.mulf %15, %23 : vector<2x32xf32>
    %33 = arith.addf %31, %32 : vector<2x32xf32>
    %34 = math.tanh %33 : vector<2x32xf32>
    %35 = arith.mulf %29, %34 : vector<2x32xf32>
    %c0_12 = arith.constant 0 : index
    %c0_13 = arith.constant 0 : index
    %36 = vector.load %arg5[%c0_12, %c0_13] : memref<2x32xf32, #tpu.memory_space<vmem>>, vector<2x32xf32>
    tpu.vector_store %arg5[%c0_12, %c0_13], %33 {strides = array<i32>} : memref<2x32xf32, #tpu.memory_space<vmem>>, vector<2x32xf32>,
    %c0_14 = arith.constant 0 : index
    %c0_15 = arith.constant 0 : index
    %37 = vector.load %arg4[%c0_14, %c0_15] : memref<2x32xf32, #tpu.memory_space<vmem>>, vector<2x32xf32>
    tpu.vector_store %arg4[%c0_14, %c0_15], %35 {strides = array<i32>} : memref<2x32xf32, #tpu.memory_space<vmem>>, vector<2x32xf32>,
    %38 = arith.index_cast %c0_i32_2 : i32 to index
    %c0_16 = arith.constant 0 : index
    %c0_17 = arith.constant 0 : index
    %39 = vector.load %arg3[%38, %c0_16, %c0_17] : memref<4x2x32xf32, #tpu.memory_space<vmem>>, vector<1x2x32xf32>
    %40 = vector.shape_cast %39 : vector<1x2x32xf32> to vector<2x32xf32>
    %41 = vector.shape_cast %35 : vector<2x32xf32> to vector<1x2x32xf32>
    tpu.vector_store %arg3[%38, %c0_16, %c0_17], %41 {strides = array<i32>} : memref<4x2x32xf32, #tpu.memory_space<vmem>>, vector<1x2x32xf32>,
    %c1_i32 = arith.constant 1 : i32
    %42 = arith.index_cast %c1_i32 : i32 to index
    %c0_18 = arith.constant 0 : index
    %c0_19 = arith.constant 0 : index
    %43 = vector.load %arg1[%42, %c0_18, %c0_19] : memref<4x2x128xf32, #tpu.memory_space<vmem>>, vector<1x2x128xf32>
    %44 = vector.shape_cast %43 : vector<1x2x128xf32> to vector<2x128xf32>
    %c0_20 = arith.constant 0 : index
    %c0_21 = arith.constant 0 : index
    %45 = vector.load %arg4[%c0_20, %c0_21] : memref<2x32xf32, #tpu.memory_space<vmem>>, vector<2x32xf32>
    %cst_22 = arith.constant dense<0.000000e+00> : vector<2x128xf32>
    %46 = tpu.matmul %45, %3, %cst_22 {dimension_numbers = #tpu.dot_dimension_numbers<[1], [0], [0], [1], [0, 0, 1, 1], [], []>} : vector<2x32xf32>, vector<32x128xf32>, vector<2x128xf32> -> vector<2x128xf32>
    %47 = arith.addf %44, %46 : vector<2x128xf32>
    %48 = vector.extract_strided_slice %47 {offsets = [0, 0], sizes = [2, 32], strides = [1, 1]} : vector<2x128xf32> to vector<2x32xf32>
    %49 = arith.negf %48 : vector<2x32xf32>
    %50 = math.exp %49 : vector<2x32xf32>
    %cst_23 = arith.constant 1.000000e+00 : f32
    %51 = vector.broadcast %cst_23 : f32 to vector<2x32xf32>
    %52 = arith.addf %51, %50 : vector<2x32xf32>
    %53 = arith.divf %51, %52 : vector<2x32xf32>
    %54 = vector.extract_strided_slice %47 {offsets = [0, 32], sizes = [2, 32], strides = [1, 1]} : vector<2x128xf32> to vector<2x32xf32>
    %55 = arith.negf %54 : vector<2x32xf32>
    %56 = math.exp %55 : vector<2x32xf32>
    %cst_24 = arith.constant 1.000000e+00 : f32
    %57 = vector.broadcast %cst_24 : f32 to vector<2x32xf32>
    %58 = arith.addf %57, %56 : vector<2x32xf32>
    %59 = arith.divf %57, %58 : vector<2x32xf32>
    %60 = vector.extract_strided_slice %47 {offsets = [0, 64], sizes = [2, 32], strides = [1, 1]} : vector<2x128xf32> to vector<2x32xf32>
    %61 = math.tanh %60 : vector<2x32xf32>
    %62 = vector.extract_strided_slice %47 {offsets = [0, 96], sizes = [2, 32], strides = [1, 1]} : vector<2x128xf32> to vector<2x32xf32>
    %63 = arith.negf %62 : vector<2x32xf32>
    %64 = math.exp %63 : vector<2x32xf32>
    %cst_25 = arith.constant 1.000000e+00 : f32
    %65 = vector.broadcast %cst_25 : f32 to vector<2x32xf32>
    %66 = arith.addf %65, %64 : vector<2x32xf32>
    %67 = arith.divf %65, %66 : vector<2x32xf32>
    %c0_26 = arith.constant 0 : index
    %c0_27 = arith.constant 0 : index
    %68 = vector.load %arg5[%c0_26, %c0_27] : memref<2x32xf32, #tpu.memory_space<vmem>>, vector<2x32xf32>
    %69 = arith.mulf %59, %68 : vector<2x32xf32>
    %70 = arith.mulf %53, %61 : vector<2x32xf32>
    %71 = arith.addf %69, %70 : vector<2x32xf32>
    %72 = math.tanh %71 : vector<2x32xf32>
    %73 = arith.mulf %67, %72 : vector<2x32xf32>
    %c0_28 = arith.constant 0 : index
    %c0_29 = arith.constant 0 : index
    %74 = vector.load %arg5[%c0_28, %c0_29] : memref<2x32xf32, #tpu.memory_space<vmem>>, vector<2x32xf32>
    tpu.vector_store %arg5[%c0_28, %c0_29], %71 {strides = array<i32>} : memref<2x32xf32, #tpu.memory_space<vmem>>, vector<2x32xf32>,
    %c0_30 = arith.constant 0 : index
    %c0_31 = arith.constant 0 : index
    %75 = vector.load %arg4[%c0_30, %c0_31] : memref<2x32xf32, #tpu.memory_space<vmem>>, vector<2x32xf32>
    tpu.vector_store %arg4[%c0_30, %c0_31], %73 {strides = array<i32>} : memref<2x32xf32, #tpu.memory_space<vmem>>, vector<2x32xf32>,
    %76 = arith.index_cast %c1_i32 : i32 to index
    %c0_32 = arith.constant 0 : index
    %c0_33 = arith.constant 0 : index
    %77 = vector.load %arg3[%76, %c0_32, %c0_33] : memref<4x2x32xf32, #tpu.memory_space<vmem>>, vector<1x2x32xf32>
    %78 = vector.shape_cast %77 : vector<1x2x32xf32> to vector<2x32xf32>
    %79 = vector.shape_cast %73 : vector<2x32xf32> to vector<1x2x32xf32>
    tpu.vector_store %arg3[%76, %c0_32, %c0_33], %79 {strides = array<i32>} : memref<4x2x32xf32, #tpu.memory_space<vmem>>, vector<1x2x32xf32>,
    %c2_i32 = arith.constant 2 : i32
    %80 = arith.index_cast %c2_i32 : i32 to index
    %c0_34 = arith.constant 0 : index
    %c0_35 = arith.constant 0 : index
    %81 = vector.load %arg1[%80, %c0_34, %c0_35] : memref<4x2x128xf32, #tpu.memory_space<vmem>>, vector<1x2x128xf32>
    %82 = vector.shape_cast %81 : vector<1x2x128xf32> to vector<2x128xf32>
    %c0_36 = arith.constant 0 : index
    %c0_37 = arith.constant 0 : index
    %83 = vector.load %arg4[%c0_36, %c0_37] : memref<2x32xf32, #tpu.memory_space<vmem>>, vector<2x32xf32>
    %cst_38 = arith.constant dense<0.000000e+00> : vector<2x128xf32>
    %84 = tpu.matmul %83, %3, %cst_38 {dimension_numbers = #tpu.dot_dimension_numbers<[1], [0], [0], [1], [0, 0, 1, 1], [], []>} : vector<2x32xf32>, vector<32x128xf32>, vector<2x128xf32> -> vector<2x128xf32>
    %85 = arith.addf %82, %84 : vector<2x128xf32>
    %86 = vector.extract_strided_slice %85 {offsets = [0, 0], sizes = [2, 32], strides = [1, 1]} : vector<2x128xf32> to vector<2x32xf32>
    %87 = arith.negf %86 : vector<2x32xf32>
    %88 = math.exp %87 : vector<2x32xf32>
    %cst_39 = arith.constant 1.000000e+00 : f32
    %89 = vector.broadcast %cst_39 : f32 to vector<2x32xf32>
    %90 = arith.addf %89, %88 : vector<2x32xf32>
    %91 = arith.divf %89, %90 : vector<2x32xf32>
    %92 = vector.extract_strided_slice %85 {offsets = [0, 32], sizes = [2, 32], strides = [1, 1]} : vector<2x128xf32> to vector<2x32xf32>
    %93 = arith.negf %92 : vector<2x32xf32>
    %94 = math.exp %93 : vector<2x32xf32>
    %cst_40 = arith.constant 1.000000e+00 : f32
    %95 = vector.broadcast %cst_40 : f32 to vector<2x32xf32>
    %96 = arith.addf %95, %94 : vector<2x32xf32>
    %97 = arith.divf %95, %96 : vector<2x32xf32>
    %98 = vector.extract_strided_slice %85 {offsets = [0, 64], sizes = [2, 32], strides = [1, 1]} : vector<2x128xf32> to vector<2x32xf32>
    %99 = math.tanh %98 : vector<2x32xf32>
    %100 = vector.extract_strided_slice %85 {offsets = [0, 96], sizes = [2, 32], strides = [1, 1]} : vector<2x128xf32> to vector<2x32xf32>
    %101 = arith.negf %100 : vector<2x32xf32>
    %102 = math.exp %101 : vector<2x32xf32>
    %cst_41 = arith.constant 1.000000e+00 : f32
    %103 = vector.broadcast %cst_41 : f32 to vector<2x32xf32>
    %104 = arith.addf %103, %102 : vector<2x32xf32>
    %105 = arith.divf %103, %104 : vector<2x32xf32>
    %c0_42 = arith.constant 0 : index
    %c0_43 = arith.constant 0 : index
    %106 = vector.load %arg5[%c0_42, %c0_43] : memref<2x32xf32, #tpu.memory_space<vmem>>, vector<2x32xf32>
    %107 = arith.mulf %97, %106 : vector<2x32xf32>
    %108 = arith.mulf %91, %99 : vector<2x32xf32>
    %109 = arith.addf %107, %108 : vector<2x32xf32>
    %110 = math.tanh %109 : vector<2x32xf32>
    %111 = arith.mulf %105, %110 : vector<2x32xf32>
    %c0_44 = arith.constant 0 : index
    %c0_45 = arith.constant 0 : index
    %112 = vector.load %arg5[%c0_44, %c0_45] : memref<2x32xf32, #tpu.memory_space<vmem>>, vector<2x32xf32>
    tpu.vector_store %arg5[%c0_44, %c0_45], %109 {strides = array<i32>} : memref<2x32xf32, #tpu.memory_space<vmem>>, vector<2x32xf32>,
    %c0_46 = arith.constant 0 : index
    %c0_47 = arith.constant 0 : index
    %113 = vector.load %arg4[%c0_46, %c0_47] : memref<2x32xf32, #tpu.memory_space<vmem>>, vector<2x32xf32>
    tpu.vector_store %arg4[%c0_46, %c0_47], %111 {strides = array<i32>} : memref<2x32xf32, #tpu.memory_space<vmem>>, vector<2x32xf32>,
    %114 = arith.index_cast %c2_i32 : i32 to index
    %c0_48 = arith.constant 0 : index
    %c0_49 = arith.constant 0 : index
    %115 = vector.load %arg3[%114, %c0_48, %c0_49] : memref<4x2x32xf32, #tpu.memory_space<vmem>>, vector<1x2x32xf32>
    %116 = vector.shape_cast %115 : vector<1x2x32xf32> to vector<2x32xf32>
    %117 = vector.shape_cast %111 : vector<2x32xf32> to vector<1x2x32xf32>
    tpu.vector_store %arg3[%114, %c0_48, %c0_49], %117 {strides = array<i32>} : memref<4x2x32xf32, #tpu.memory_space<vmem>>, vector<1x2x32xf32>,
    %c3_i32 = arith.constant 3 : i32
    %118 = arith.index_cast %c3_i32 : i32 to index
    %c0_50 = arith.constant 0 : index
    %c0_51 = arith.constant 0 : index
    %119 = vector.load %arg1[%118, %c0_50, %c0_51] : memref<4x2x128xf32, #tpu.memory_space<vmem>>, vector<1x2x128xf32>
    %120 = vector.shape_cast %119 : vector<1x2x128xf32> to vector<2x128xf32>
    %c0_52 = arith.constant 0 : index
    %c0_53 = arith.constant 0 : index
    %121 = vector.load %arg4[%c0_52, %c0_53] : memref<2x32xf32, #tpu.memory_space<vmem>>, vector<2x32xf32>
    %cst_54 = arith.constant dense<0.000000e+00> : vector<2x128xf32>
    %122 = tpu.matmul %121, %3, %cst_54 {dimension_numbers = #tpu.dot_dimension_numbers<[1], [0], [0], [1], [0, 0, 1, 1], [], []>} : vector<2x32xf32>, vector<32x128xf32>, vector<2x128xf32> -> vector<2x128xf32>
    %123 = arith.addf %120, %122 : vector<2x128xf32>
    %124 = vector.extract_strided_slice %123 {offsets = [0, 0], sizes = [2, 32], strides = [1, 1]} : vector<2x128xf32> to vector<2x32xf32>
    %125 = arith.negf %124 : vector<2x32xf32>
    %126 = math.exp %125 : vector<2x32xf32>
    %cst_55 = arith.constant 1.000000e+00 : f32
    %127 = vector.broadcast %cst_55 : f32 to vector<2x32xf32>
    %128 = arith.addf %127, %126 : vector<2x32xf32>
    %129 = arith.divf %127, %128 : vector<2x32xf32>
    %130 = vector.extract_strided_slice %123 {offsets = [0, 32], sizes = [2, 32], strides = [1, 1]} : vector<2x128xf32> to vector<2x32xf32>
    %131 = arith.negf %130 : vector<2x32xf32>
    %132 = math.exp %131 : vector<2x32xf32>
    %cst_56 = arith.constant 1.000000e+00 : f32
    %133 = vector.broadcast %cst_56 : f32 to vector<2x32xf32>
    %134 = arith.addf %133, %132 : vector<2x32xf32>
    %135 = arith.divf %133, %134 : vector<2x32xf32>
    %136 = vector.extract_strided_slice %123 {offsets = [0, 64], sizes = [2, 32], strides = [1, 1]} : vector<2x128xf32> to vector<2x32xf32>
    %137 = math.tanh %136 : vector<2x32xf32>
    %138 = vector.extract_strided_slice %123 {offsets = [0, 96], sizes = [2, 32], strides = [1, 1]} : vector<2x128xf32> to vector<2x32xf32>
    %139 = arith.negf %138 : vector<2x32xf32>
    %140 = math.exp %139 : vector<2x32xf32>
    %cst_57 = arith.constant 1.000000e+00 : f32
    %141 = vector.broadcast %cst_57 : f32 to vector<2x32xf32>
    %142 = arith.addf %141, %140 : vector<2x32xf32>
    %143 = arith.divf %141, %142 : vector<2x32xf32>
    %c0_58 = arith.constant 0 : index
    %c0_59 = arith.constant 0 : index
    %144 = vector.load %arg5[%c0_58, %c0_59] : memref<2x32xf32, #tpu.memory_space<vmem>>, vector<2x32xf32>
    %145 = arith.mulf %135, %144 : vector<2x32xf32>
    %146 = arith.mulf %129, %137 : vector<2x32xf32>
    %147 = arith.addf %145, %146 : vector<2x32xf32>
    %148 = math.tanh %147 : vector<2x32xf32>
    %149 = arith.mulf %143, %148 : vector<2x32xf32>
    %c0_60 = arith.constant 0 : index
    %c0_61 = arith.constant 0 : index
    %150 = vector.load %arg5[%c0_60, %c0_61] : memref<2x32xf32, #tpu.memory_space<vmem>>, vector<2x32xf32>
    tpu.vector_store %arg5[%c0_60, %c0_61], %147 {strides = array<i32>} : memref<2x32xf32, #tpu.memory_space<vmem>>, vector<2x32xf32>,
    %c0_62 = arith.constant 0 : index
    %c0_63 = arith.constant 0 : index
    %151 = vector.load %arg4[%c0_62, %c0_63] : memref<2x32xf32, #tpu.memory_space<vmem>>, vector<2x32xf32>
    tpu.vector_store %arg4[%c0_62, %c0_63], %149 {strides = array<i32>} : memref<2x32xf32, #tpu.memory_space<vmem>>, vector<2x32xf32>,
    %152 = arith.index_cast %c3_i32 : i32 to index
    %c0_64 = arith.constant 0 : index
    %c0_65 = arith.constant 0 : index
    %153 = vector.load %arg3[%152, %c0_64, %c0_65] : memref<4x2x32xf32, #tpu.memory_space<vmem>>, vector<1x2x32xf32>
    %154 = vector.shape_cast %153 : vector<1x2x32xf32> to vector<2x32xf32>
    %155 = vector.shape_cast %149 : vector<2x32xf32> to vector<1x2x32xf32>
    tpu.vector_store %arg3[%152, %c0_64, %c0_65], %155 {strides = array<i32>} : memref<4x2x32xf32, #tpu.memory_space<vmem>>, vector<1x2x32xf32>,
    %c4_i32 = arith.constant 4 : i32
    return
  }
  func.func @transform_0(%arg0: i32) -> (i32, i32, i32) {
    %c0_i32 = arith.constant 0 : i32
    %c0_i32_0 = arith.constant 0 : i32
    %c0_i32_1 = arith.constant 0 : i32
    return %arg0, %c0_i32, %c0_i32_0 : i32, i32, i32
  }
  func.func @transform_1(%arg0: i32) -> (i32, i32) {
    %c0_i32 = arith.constant 0 : i32
    %c0_i32_0 = arith.constant 0 : i32
    %c0_i32_1 = arith.constant 0 : i32
    return %c0_i32, %c0_i32_0 : i32, i32
  }
  func.func @transform_2(%arg0: i32) -> (i32, i32, i32) {
    %c0_i32 = arith.constant 0 : i32
    %c0_i32_0 = arith.constant 0 : i32
    %c0_i32_1 = arith.constant 0 : i32
    return %arg0, %c0_i32, %c0_i32_0 : i32, i32, i32
  }
}

module attributes {stable_mosaic.version = 11 : i64} {
  func.func @_softdot_kernel(%arg0: i32, %arg1: memref<8x32xf32, #tpu.memory_space<vmem>>, %arg2: memref<8x36x64xf32, #tpu.memory_space<vmem>>, %arg3: memref<32x64xf32, #tpu.memory_space<vmem>>, %arg4: memref<64x32xf32, #tpu.memory_space<vmem>>, %arg5: memref<32x32xf32, #tpu.memory_space<vmem>>, %arg6: memref<8x32xf32, #tpu.memory_space<vmem>>) attributes {dimension_semantics = [#tpu.dimension_semantics<parallel>], iteration_bounds = array<i64: 2>, scalar_prefetch = 0 : i64, scratch_operands = 0 : i64, tpu.core_type = #tpu.core_type<tc>, window_params = [{transform_indices = @transform_0, window_bounds = array<i64: 8, 32>}, {transform_indices = @transform_1, window_bounds = array<i64: 8, 36, 64>}, {pipeline_mode = #tpu.pipeline_mode<synchronous>, transform_indices = @transform_2, window_bounds = array<i64: 32, 64>}, {pipeline_mode = #tpu.pipeline_mode<synchronous>, transform_indices = @transform_3, window_bounds = array<i64: 64, 32>}, {pipeline_mode = #tpu.pipeline_mode<synchronous>, transform_indices = @transform_4, window_bounds = array<i64: 32, 32>}, {transform_indices = @transform_5, window_bounds = array<i64: 8, 32>}]} {
    %c0 = arith.constant 0 : index
    %c0_0 = arith.constant 0 : index
    %0 = vector.load %arg1[%c0, %c0_0] : memref<8x32xf32, #tpu.memory_space<vmem>>, vector<8x32xf32>
    %c0_1 = arith.constant 0 : index
    %c0_2 = arith.constant 0 : index
    %c0_3 = arith.constant 0 : index
    %1 = vector.load %arg2[%c0_1, %c0_2, %c0_3] : memref<8x36x64xf32, #tpu.memory_space<vmem>>, vector<8x36x64xf32>
    %c0_4 = arith.constant 0 : index
    %c0_5 = arith.constant 0 : index
    %2 = vector.load %arg3[%c0_4, %c0_5] : memref<32x64xf32, #tpu.memory_space<vmem>>, vector<32x64xf32>
    %cst = arith.constant dense<0.000000e+00> : vector<8x64xf32>
    %3 = tpu.matmul %0, %2, %cst {dimension_numbers = #tpu.dot_dimension_numbers<[1], [0], [0], [1], [0, 0, 1, 1], [], []>} : vector<8x32xf32>, vector<32x64xf32>, vector<8x64xf32> -> vector<8x64xf32>
    %4 = vector.shape_cast %3 : vector<8x64xf32> to vector<8x1x64xf32>
    %5 = vector.broadcast %4 : vector<8x1x64xf32> to vector<8x36x64xf32>
    %6 = arith.mulf %1, %5 : vector<8x36x64xf32>
    %cst_6 = arith.constant dense<0.000000e+00> : vector<8x36xf32>
    %7 = vector.multi_reduction <add>, %6, %cst_6 [2] : vector<8x36x64xf32> to vector<8x36xf32>
    %cst_7 = arith.constant dense<0xFF800000> : vector<8xf32>
    %8 = vector.multi_reduction <maximumf>, %7, %cst_7 [1] : vector<8x36xf32> to vector<8xf32>
    %9 = vector.shape_cast %8 : vector<8xf32> to vector<8x1xf32>
    %10 = vector.broadcast %9 : vector<8x1xf32> to vector<8x36xf32>
    %11 = arith.subf %7, %10 : vector<8x36xf32>
    %12 = math.exp %11 : vector<8x36xf32>
    %cst_8 = arith.constant dense<0.000000e+00> : vector<8xf32>
    %13 = vector.multi_reduction <add>, %12, %cst_8 [1] : vector<8x36xf32> to vector<8xf32>
    %14 = vector.shape_cast %13 : vector<8xf32> to vector<8x1xf32>
    %15 = tpu.reciprocal %14 {approx = true} : vector<8x1xf32> -> vector<8x1xf32>
    %16 = vector.broadcast %15 : vector<8x1xf32> to vector<8x36xf32>
    %17 = arith.mulf %12, %16 : vector<8x36xf32>
    %18 = vector.shape_cast %17 : vector<8x36xf32> to vector<8x36x1xf32>
    %19 = vector.broadcast %18 : vector<8x36x1xf32> to vector<8x36x64xf32>
    %20 = arith.mulf %19, %1 : vector<8x36x64xf32>
    %cst_9 = arith.constant dense<0.000000e+00> : vector<8x64xf32>
    %21 = vector.multi_reduction <add>, %20, %cst_9 [1] : vector<8x36x64xf32> to vector<8x64xf32>
    %c0_10 = arith.constant 0 : index
    %c0_11 = arith.constant 0 : index
    %22 = vector.load %arg4[%c0_10, %c0_11] : memref<64x32xf32, #tpu.memory_space<vmem>>, vector<64x32xf32>
    %cst_12 = arith.constant dense<0.000000e+00> : vector<8x32xf32>
    %23 = tpu.matmul %21, %22, %cst_12 {dimension_numbers = #tpu.dot_dimension_numbers<[1], [0], [0], [1], [0, 0, 1, 1], [], []>} : vector<8x64xf32>, vector<64x32xf32>, vector<8x32xf32> -> vector<8x32xf32>
    %c0_13 = arith.constant 0 : index
    %c0_14 = arith.constant 0 : index
    %24 = vector.load %arg5[%c0_13, %c0_14] : memref<32x32xf32, #tpu.memory_space<vmem>>, vector<32x32xf32>
    %cst_15 = arith.constant dense<0.000000e+00> : vector<8x32xf32>
    %25 = tpu.matmul %0, %24, %cst_15 {dimension_numbers = #tpu.dot_dimension_numbers<[1], [0], [0], [1], [0, 0, 1, 1], [], []>} : vector<8x32xf32>, vector<32x32xf32>, vector<8x32xf32> -> vector<8x32xf32>
    %26 = arith.addf %23, %25 : vector<8x32xf32>
    %27 = math.tanh %26 : vector<8x32xf32>
    %c0_16 = arith.constant 0 : index
    %c0_17 = arith.constant 0 : index
    %28 = vector.load %arg6[%c0_16, %c0_17] : memref<8x32xf32, #tpu.memory_space<vmem>>, vector<8x32xf32>
    tpu.vector_store %arg6[%c0_16, %c0_17], %27 {strides = array<i32>} : memref<8x32xf32, #tpu.memory_space<vmem>>, vector<8x32xf32>,
    return
  }
  func.func @transform_0(%arg0: i32) -> (i32, i32) {
    %c0_i32 = arith.constant 0 : i32
    %c0_i32_0 = arith.constant 0 : i32
    return %arg0, %c0_i32 : i32, i32
  }
  func.func @transform_1(%arg0: i32) -> (i32, i32, i32) {
    %c0_i32 = arith.constant 0 : i32
    %c0_i32_0 = arith.constant 0 : i32
    %c0_i32_1 = arith.constant 0 : i32
    return %arg0, %c0_i32, %c0_i32_0 : i32, i32, i32
  }
  func.func @transform_2(%arg0: i32) -> (i32, i32) {
    %c0_i32 = arith.constant 0 : i32
    %c0_i32_0 = arith.constant 0 : i32
    %c0_i32_1 = arith.constant 0 : i32
    return %c0_i32, %c0_i32_0 : i32, i32
  }
  func.func @transform_3(%arg0: i32) -> (i32, i32) {
    %c0_i32 = arith.constant 0 : i32
    %c0_i32_0 = arith.constant 0 : i32
    %c0_i32_1 = arith.constant 0 : i32
    return %c0_i32, %c0_i32_0 : i32, i32
  }
  func.func @transform_4(%arg0: i32) -> (i32, i32) {
    %c0_i32 = arith.constant 0 : i32
    %c0_i32_0 = arith.constant 0 : i32
    %c0_i32_1 = arith.constant 0 : i32
    return %c0_i32, %c0_i32_0 : i32, i32
  }
  func.func @transform_5(%arg0: i32) -> (i32, i32) {
    %c0_i32 = arith.constant 0 : i32
    %c0_i32_0 = arith.constant 0 : i32
    return %arg0, %c0_i32 : i32, i32
  }
}

module attributes {stable_mosaic.version = 11 : i64} {
  func.func @_detect_attn_kernel(%arg0: i32, %arg1: memref<8x32xf32, #tpu.memory_space<vmem>>, %arg2: memref<8x16x256xf32, #tpu.memory_space<vmem>>, %arg3: memref<32x256xf32, #tpu.memory_space<vmem>>, %arg4: memref<1x256xf32, #tpu.memory_space<vmem>>, %arg5: memref<256x256xf32, #tpu.memory_space<vmem>>, %arg6: memref<1x256xf32, #tpu.memory_space<vmem>>, %arg7: memref<1x256xf32, #tpu.memory_space<vmem>>, %arg8: memref<1x1xf32, #tpu.memory_space<vmem>>, %arg9: memref<8x256xf32, #tpu.memory_space<vmem>>) attributes {dimension_semantics = [#tpu.dimension_semantics<parallel>], iteration_bounds = array<i64: 2>, scalar_prefetch = 0 : i64, scratch_operands = 0 : i64, tpu.core_type = #tpu.core_type<tc>, window_params = [{transform_indices = @transform_0, window_bounds = array<i64: 8, 32>}, {transform_indices = @transform_1, window_bounds = array<i64: 8, 16, 256>}, {pipeline_mode = #tpu.pipeline_mode<synchronous>, transform_indices = @transform_2, window_bounds = array<i64: 32, 256>}, {pipeline_mode = #tpu.pipeline_mode<synchronous>, transform_indices = @transform_3, window_bounds = array<i64: 1, 256>}, {pipeline_mode = #tpu.pipeline_mode<synchronous>, transform_indices = @transform_4, window_bounds = array<i64: 256, 256>}, {pipeline_mode = #tpu.pipeline_mode<synchronous>, transform_indices = @transform_5, window_bounds = array<i64: 1, 256>}, {pipeline_mode = #tpu.pipeline_mode<synchronous>, transform_indices = @transform_6, window_bounds = array<i64: 1, 256>}, {pipeline_mode = #tpu.pipeline_mode<synchronous>, transform_indices = @transform_7, window_bounds = array<i64: 1, 1>}, {transform_indices = @transform_8, window_bounds = array<i64: 8, 256>}]} {
    %c0 = arith.constant 0 : index
    %c0_0 = arith.constant 0 : index
    %0 = vector.load %arg1[%c0, %c0_0] : memref<8x32xf32, #tpu.memory_space<vmem>>, vector<8x32xf32>
    %c0_1 = arith.constant 0 : index
    %c0_2 = arith.constant 0 : index
    %c0_3 = arith.constant 0 : index
    %1 = vector.load %arg2[%c0_1, %c0_2, %c0_3] : memref<8x16x256xf32, #tpu.memory_space<vmem>>, vector<8x16x256xf32>
    %c0_4 = arith.constant 0 : index
    %c0_5 = arith.constant 0 : index
    %2 = vector.load %arg3[%c0_4, %c0_5] : memref<32x256xf32, #tpu.memory_space<vmem>>, vector<32x256xf32>
    %cst = arith.constant dense<0.000000e+00> : vector<8x256xf32>
    %3 = tpu.matmul %0, %2, %cst {dimension_numbers = #tpu.dot_dimension_numbers<[1], [0], [0], [1], [0, 0, 1, 1], [], []>} : vector<8x32xf32>, vector<32x256xf32>, vector<8x256xf32> -> vector<8x256xf32>
    %c0_6 = arith.constant 0 : index
    %c0_7 = arith.constant 0 : index
    %4 = vector.load %arg4[%c0_6, %c0_7] : memref<1x256xf32, #tpu.memory_space<vmem>>, vector<1x256xf32>
    %5 = vector.broadcast %4 : vector<1x256xf32> to vector<8x256xf32>
    %6 = arith.addf %3, %5 : vector<8x256xf32>
    %cst_8 = arith.constant 0.000000e+00 : f32
    %7 = vector.broadcast %cst_8 : f32 to vector<8x256xf32>
    %8 = arith.maximumf %6, %7 : vector<8x256xf32>
    %9 = vector.shape_cast %1 : vector<8x16x256xf32> to vector<128x256xf32>
    %c0_9 = arith.constant 0 : index
    %c0_10 = arith.constant 0 : index
    %10 = vector.load %arg5[%c0_9, %c0_10] : memref<256x256xf32, #tpu.memory_space<vmem>>, vector<256x256xf32>
    %cst_11 = arith.constant dense<0.000000e+00> : vector<128x256xf32>
    %11 = tpu.matmul %9, %10, %cst_11 {dimension_numbers = #tpu.dot_dimension_numbers<[1], [0], [0], [1], [0, 0, 1, 1], [], []>} : vector<128x256xf32>, vector<256x256xf32>, vector<128x256xf32> -> vector<128x256xf32>
    %c0_12 = arith.constant 0 : index
    %c0_13 = arith.constant 0 : index
    %12 = vector.load %arg6[%c0_12, %c0_13] : memref<1x256xf32, #tpu.memory_space<vmem>>, vector<1x256xf32>
    %13 = vector.broadcast %12 : vector<1x256xf32> to vector<128x256xf32>
    %14 = arith.addf %11, %13 : vector<128x256xf32>
    %cst_14 = arith.constant 0.000000e+00 : f32
    %15 = vector.broadcast %cst_14 : f32 to vector<128x256xf32>
    %16 = arith.maximumf %14, %15 : vector<128x256xf32>
    %17 = vector.shape_cast %16 : vector<128x256xf32> to vector<8x16x256xf32>
    %18 = vector.shape_cast %8 : vector<8x256xf32> to vector<8x1x256xf32>
    %19 = vector.broadcast %18 : vector<8x1x256xf32> to vector<8x16x256xf32>
    %20 = arith.mulf %17, %19 : vector<8x16x256xf32>
    %c0_15 = arith.constant 0 : index
    %c0_16 = arith.constant 0 : index
    %21 = vector.load %arg7[%c0_15, %c0_16] : memref<1x256xf32, #tpu.memory_space<vmem>>, vector<1x256xf32>
    %22 = vector.shape_cast %21 : vector<1x256xf32> to vector<1x1x256xf32>
    %23 = vector.broadcast %22 : vector<1x1x256xf32> to vector<8x16x256xf32>
    %24 = arith.mulf %20, %23 : vector<8x16x256xf32>
    %cst_17 = arith.constant dense<0.000000e+00> : vector<8x16xf32>
    %25 = vector.multi_reduction <add>, %24, %cst_17 [2] : vector<8x16x256xf32> to vector<8x16xf32>
    %c0_18 = arith.constant 0 : index
    %c0_19 = arith.constant 0 : index
    %26 = vector.load %arg8[%c0_18, %c0_19] : memref<1x1xf32, #tpu.memory_space<vmem>>, vector<1x1xf32>
    %27 = vector.broadcast %26 : vector<1x1xf32> to vector<8x16xf32>
    %28 = arith.addf %25, %27 : vector<8x16xf32>
    %cst_20 = arith.constant dense<0xFF800000> : vector<8xf32>
    %29 = vector.multi_reduction <maximumf>, %28, %cst_20 [1] : vector<8x16xf32> to vector<8xf32>
    %30 = vector.shape_cast %29 : vector<8xf32> to vector<8x1xf32>
    %31 = vector.broadcast %30 : vector<8x1xf32> to vector<8x16xf32>
    %32 = arith.subf %28, %31 : vector<8x16xf32>
    %33 = math.exp %32 : vector<8x16xf32>
    %cst_21 = arith.constant dense<0.000000e+00> : vector<8xf32>
    %34 = vector.multi_reduction <add>, %33, %cst_21 [1] : vector<8x16xf32> to vector<8xf32>
    %35 = vector.shape_cast %34 : vector<8xf32> to vector<8x1xf32>
    %36 = tpu.reciprocal %35 {approx = true} : vector<8x1xf32> -> vector<8x1xf32>
    %37 = vector.broadcast %36 : vector<8x1xf32> to vector<8x16xf32>
    %38 = arith.mulf %33, %37 : vector<8x16xf32>
    %39 = vector.shape_cast %38 : vector<8x16xf32> to vector<8x16x1xf32>
    %40 = vector.broadcast %39 : vector<8x16x1xf32> to vector<8x16x256xf32>
    %41 = arith.mulf %40, %1 : vector<8x16x256xf32>
    %cst_22 = arith.constant dense<0.000000e+00> : vector<8x256xf32>
    %42 = vector.multi_reduction <add>, %41, %cst_22 [1] : vector<8x16x256xf32> to vector<8x256xf32>
    %c0_23 = arith.constant 0 : index
    %c0_24 = arith.constant 0 : index
    %43 = vector.load %arg9[%c0_23, %c0_24] : memref<8x256xf32, #tpu.memory_space<vmem>>, vector<8x256xf32>
    tpu.vector_store %arg9[%c0_23, %c0_24], %42 {strides = array<i32>} : memref<8x256xf32, #tpu.memory_space<vmem>>, vector<8x256xf32>,
    return
  }
  func.func @transform_0(%arg0: i32) -> (i32, i32) {
    %c0_i32 = arith.constant 0 : i32
    %c0_i32_0 = arith.constant 0 : i32
    return %arg0, %c0_i32 : i32, i32
  }
  func.func @transform_1(%arg0: i32) -> (i32, i32, i32) {
    %c0_i32 = arith.constant 0 : i32
    %c0_i32_0 = arith.constant 0 : i32
    %c0_i32_1 = arith.constant 0 : i32
    return %arg0, %c0_i32, %c0_i32_0 : i32, i32, i32
  }
  func.func @transform_2(%arg0: i32) -> (i32, i32) {
    %c0_i32 = arith.constant 0 : i32
    %c0_i32_0 = arith.constant 0 : i32
    %c0_i32_1 = arith.constant 0 : i32
    return %c0_i32, %c0_i32_0 : i32, i32
  }
  func.func @transform_3(%arg0: i32) -> (i32, i32) {
    %c0_i32 = arith.constant 0 : i32
    %c0_i32_0 = arith.constant 0 : i32
    %c0_i32_1 = arith.constant 0 : i32
    return %c0_i32, %c0_i32_0 : i32, i32
  }
  func.func @transform_4(%arg0: i32) -> (i32, i32) {
    %c0_i32 = arith.constant 0 : i32
    %c0_i32_0 = arith.constant 0 : i32
    %c0_i32_1 = arith.constant 0 : i32
    return %c0_i32, %c0_i32_0 : i32, i32
  }
  func.func @transform_5(%arg0: i32) -> (i32, i32) {
    %c0_i32 = arith.constant 0 : i32
    %c0_i32_0 = arith.constant 0 : i32
    %c0_i32_1 = arith.constant 0 : i32
    return %c0_i32, %c0_i32_0 : i32, i32
  }
  func.func @transform_6(%arg0: i32) -> (i32, i32) {
    %c0_i32 = arith.constant 0 : i32
    %c0_i32_0 = arith.constant 0 : i32
    %c0_i32_1 = arith.constant 0 : i32
    return %c0_i32, %c0_i32_0 : i32, i32
  }
  func.func @transform_7(%arg0: i32) -> (i32, i32) {
    %c0_i32 = arith.constant 0 : i32
    %c0_i32_0 = arith.constant 0 : i32
    %c0_i32_1 = arith.constant 0 : i32
    return %c0_i32, %c0_i32_0 : i32, i32
  }
  func.func @transform_8(%arg0: i32) -> (i32, i32) {
    %c0_i32 = arith.constant 0 : i32
    %c0_i32_0 = arith.constant 0 : i32
    return %arg0, %c0_i32 : i32, i32
  }
}

</mosaic_0001>

<llo_original>
// kernel: speaker_encoder_forward.4
$region0: #{speaker_encoder_forward.4}
  #allocation0 [shape = 'u32[]', space=smem, size = 0x4, offset = 0x4, fixed_abs, tag = 'smem constant byte address 0x4 - core index']
  #allocation1 [shape = 'u32[144,128]{1,0:T(1,128)}', space=vmem, size = 0x12000, scoped, tag = 'internal scratch']
  #allocation2 [shape = 'f32[2,32]{1,0:T(2,128)}', space=vmem, size = 0x400, scoped, tag = 'scratch operand']
  #allocation3 [shape = 'f32[2,32]{1,0:T(2,128)}', space=vmem, size = 0x400, scoped, tag = 'scratch operand']
  %s0 = inlined_call_operand.vmem [shape: f32[8,2,128], index: 0, kind: input, shape index: {}]
  %s1 = inlined_call_operand.vmem [shape: f32[32,128], index: 1, kind: input, shape index: {}]
  %s2 = inlined_call_operand.vmem [shape: f32[8,2,32], index: 2, kind: output, shape index: {}]
  %s3 = sld [smem:[#allocation0]]
  $region45: #{speaker_encoder_forward.4} parent=0
    _
  %s5 = ssub.s32 1, %s3
  %s6 = scalar_select 0, %s5, %s3
  loop: start=0, step=1, limit=4
  $region2: #{speaker_encoder_forward.4} parent=0 // loop_pre_header
    _
  $region3: #{speaker_encoder_forward.4} parent=0 // loop_header
    %s8 = sphi 0, %s12
    %p9 = scmp.ge.s32.totalorder %s8, 4
    %s18 = sphi 0, %s20
    %s21 = sphi 0, %s18
    %s22 = sphi 0, %s21
    %s38 = sphi 0, %s22
    %s42 = sphi 0, %s42
    %s44 = sphi 0, %s42
    %s45 = sphi 0, %s44
    %s59 = sphi 0, %s45
    %s65 = sphi 0, %s67
    %s68 = sphi 0, %s65
    %s69 = sphi 0, %s68
    %s85 = sphi 0, %s69
  $region4: #{speaker_encoder_forward.4} parent=0 // loop_header_branch
    %11 = sbr.rel (%p9) target = $region8
  $region5: #{speaker_encoder_forward.4} parent=0 // loop_body
    %s13 = ssub.s32 %s8, 1
    %s14 = ssub.s32 %s8, 2
    %s15 = sadd.s32 %s8, 1
    %s16 = ssub.s32 %s8, %s15
    %p17 = scmp.eq.s32.totalorder %s16, 0
    %s19 = sadd.s32 %s18, 1
    %s20 = scalar_select %p17, %s18, %s19
    %p23 = pneg %p17
    %p24 = scmp.eq.s32.totalorder %s8, 1
    %p25 = por %p23, %p24
    %p26 = scmp.ne.s32.totalorder %s18, %s21
    %p27 = scmp.eq.s32.totalorder %s8, 0
    %p28 = por %p26, %p27
    %p29 = scmp.ne.s32.totalorder %s18, %s21
    %p30 = scmp.eq.s32.totalorder %s13, 1
    %p31 = por %p29, %p30
    %p32 = scmp.ne.s32.totalorder %s21, %s22
    %p33 = scmp.eq.s32.totalorder %s13, 0
    %p34 = por %p32, %p33
    %p35 = scmp.ne.s32.totalorder %s21, %s22
    %p36 = scmp.eq.s32.totalorder %s14, 1
    %p37 = por %p35, %p36
    %p39 = scmp.ne.s32.totalorder %s22, %s38
    %p40 = scmp.eq.s32.totalorder %s14, 0
    %p41 = por %p39, %p40
    %s43 = sadd.s32 %s42, 1
    %p46 = scmp.eq.s32.totalorder %s8, 1
    %p47 = scmp.ne.s32.totalorder %s42, %s44
    %p48 = scmp.eq.s32.totalorder %s8, 0
    %p49 = por %p47, %p48
    %p50 = scmp.ne.s32.totalorder %s42, %s44
    %p51 = scmp.eq.s32.totalorder %s13, 1
    %p52 = por %p50, %p51
    %p53 = scmp.ne.s32.totalorder %s44, %s45
    %p54 = scmp.eq.s32.totalorder %s13, 0
    %p55 = por %p53, %p54
    %p56 = scmp.ne.s32.totalorder %s44, %s45
    %p57 = scmp.eq.s32.totalorder %s14, 1
    %p58 = por %p56, %p57
    %p60 = scmp.ne.s32.totalorder %s45, %s59
    %p61 = scmp.eq.s32.totalorder %s14, 0
    %p62 = por %p60, %p61
    %s63 = ssub.s32 %s8, %s15
    %p64 = scmp.eq.s32.totalorder %s63, 0
    %s66 = sadd.s32 %s65, 1
    %s67 = scalar_select %p64, %s65, %s66
    %p70 = pneg %p64
    %p71 = scmp.eq.s32.totalorder %s8, 1
    %p72 = por %p70, %p71
    %p73 = scmp.ne.s32.totalorder %s65, %s68
    %p74 = scmp.eq.s32.totalorder %s8, 0
    %p75 = por %p73, %p74
    %p76 = scmp.ne.s32.totalorder %s65, %s68
    %p77 = scmp.eq.s32.totalorder %s13, 1
    %p78 = por %p76, %p77
    %p79 = scmp.ne.s32.totalorder %s68, %s69
    %p80 = scmp.eq.s32.totalorder %s13, 0
    %p81 = por %p79, %p80
    %p82 = scmp.ne.s32.totalorder %s68, %s69
    %p83 = scmp.eq.s32.totalorder %s14, 1
    %p84 = por %p82, %p83
    %p86 = scmp.ne.s32.totalorder %s69, %s85
    %p87 = scmp.eq.s32.totalorder %s14, 0
    %p88 = por %p86, %p87
    %p89 = scmp.le.s32.totalorder 1, %s8
    %p90 = scmp.lt.s32.totalorder %s8, 3
    %p91 = pnand %p89, %p90
    %p92 = pneg %p91
    // Predicated region
    $region9: #{speaker_encoder_forward.4} parent=5 // pred_check
      _
    $region10: #{speaker_encoder_forward.4} parent=5 // pred_check_branch
      %94 = sbr.rel (%p91) target = $region12
    $region11: #{speaker_encoder_forward.4} parent=5 // pred_region
      %s95 = ssub.s32 %s8, 1
      // Predicated region
      $region13: #{speaker_encoder_forward.4} parent=11 // pred_check
        %p96 = pneg %p55
      $region14: #{speaker_encoder_forward.4} parent=11 // pred_check_branch
        %98 = sbr.rel (%p96) target = $region16
      $region15: #{speaker_encoder_forward.4} parent=11 // pred_region
        _
      $region16: #{speaker_encoder_forward.4} parent=11 // pred_fallthru
        _
    $region12: #{speaker_encoder_forward.4} parent=5 // pred_fallthru
      _
    %p99 = scmp.lt.s32.totalorder %s8, 2
    // Predicated region
    $region17: #{speaker_encoder_forward.4} parent=5 // pred_check
      %p100 = pneg %p99
    $region18: #{speaker_encoder_forward.4} parent=5 // pred_check_branch
      %102 = sbr.rel (%p100) target = $region20
    $region19: #{speaker_encoder_forward.4} parent=5 // pred_region
      // Predicated region
      $region21: #{speaker_encoder_forward.4} parent=19 // pred_check
        %p103 = pneg %p28
      $region22: #{speaker_encoder_forward.4} parent=19 // pred_check_branch
        %105 = sbr.rel (%p103) target = $region24
      $region23: #{speaker_encoder_forward.4} parent=19 // pred_region
        %s106 = smul.u32 4, %s8
        %p107 = scmp.lt.s32.totalorder %s106, 7
        %s108 = scalar_select %p107, %s106, 7
        %s109 = smul.addr %s108, 2
        %s110 = scalar_lea.vmem %s0, %s109
        %s111 = smul.u32 4, %s8
      $region24: #{speaker_encoder_forward.4} parent=19 // pred_fallthru
        _
    $region20: #{speaker_encoder_forward.4} parent=5 // pred_fallthru
      _
    %p112 = scmp.le.s32.totalorder 1, %s8
    %p113 = scmp.lt.s32.totalorder %s8, 3
    %p114 = pnand %p112, %p113
    %p115 = pneg %p114
    // Predicated region
    $region25: #{speaker_encoder_forward.4} parent=5 // pred_check
      _
    $region26: #{speaker_encoder_forward.4} parent=5 // pred_check_branch
      %117 = sbr.rel (%p114) target = $region28
    $region27: #{speaker_encoder_forward.4} parent=5 // pred_region
      %s118 = ssub.s32 %s8, 1
      %s119 = smul.u32 4, %s13
      %p120 = scmp.lt.s32.totalorder %s119, 7
      %s121 = scalar_select %p120, %s119, 7
      %s122 = smul.addr %s121, 2
      %s123 = scalar_lea.vmem %s0, %s122
      %p124 = pneg %p34
      %p125 = pneg %p31
      %p126 = pneg %p55
      %p127 = pneg %p52
      %p128 = pneg %p81
      %p129 = pneg %p78
      %s130 = smul.u32 4, %s13
      %p131 = scmp.lt.s32.totalorder %s130, 7
      %s132 = scalar_select %p131, %s130, 7
      %s133 = smul.addr %s132, 2
      %s134 = scalar_lea.vmem %s2, %s133
      %s135 = smul.u32 4, %s13
      %p136 = scmp.lt.s32.totalorder %s135, 7
      %s137 = scalar_select %p136, %s135, 7
      %s138 = smul.addr %s137, 2
      %s139 = scalar_lea.vmem %s0, %s138
      %s140 = smul.u32 4, %s13
      %s141 = smul.u32 4, %s13
      %p142 = scmp.lt.s32.totalorder %s141, 7
      %s143 = scalar_select %p142, %s141, 7
      %s144 = smul.addr %s143, 2
      %s145 = scalar_lea.vmem %s2, %s144
      %s146 = smul.u32 4, %s13
      %p147 = scmp.eq.s32.totalorder %s13, 0
      // Predicated region
      $region29: #{speaker_encoder_forward.4} parent=27 // pred_check
        %p148 = pneg %p147
      $region30: #{speaker_encoder_forward.4} parent=27 // pred_check_branch
        %150 = sbr.rel (%p148) target = $region32
      $region31: #{speaker_encoder_forward.4} parent=27 // pred_region
        %vm151 = vcmask 254976
        %152 = vst.msk [vmem:[#allocation2] sm:$0x3] %vm151, 0.0
        %153 = vst.msk [vmem:[#allocation3] sm:$0x3] %vm151, 0.0
      $region32: #{speaker_encoder_forward.4} parent=27 // pred_fallthru
        _
      %v154 = vld [vmem:[%s1] sm:$0xff]
      %v155 = vld [vmem:[%s1 + $0x8] sm:$0xff]
      %v156 = vld [vmem:[%s1 + $0x10] sm:$0xff]
      %v157 = vld [vmem:[%s1 + $0x18] sm:$0xff]
      %v158 = vld [vmem:[%s139] sm:$0x3]
      %v159 = vld [vmem:[#allocation2] sm:$0x3]
      %vm160 = vcmask 261120
      %v162 = vsel %vm160, %v159, 0
      %164 = vmatprep.subr.mxu0 0.0
      %165 = vmatpush1.msra.mxu0 %v154
      %166 = vmatprep.subr.mxu0 0.0
      %167 = vmatpush1.msra.mxu0 %v155
      %168 = vmatprep.subr.mxu0 0.0
      %169 = vmatpush1.msra.mxu0 %v156
      %170 = vmatprep.subr.mxu0 0.0
      %171 = vmatpush1.msra.mxu0 %v157
      %172 = vmatprep.subr.mxu0 0.0
      %173 = vmatpush1.msra.mxu0 0.0
      %174 = vmatprep.subr.mxu0 0.0
      %175 = vmatpush1.msra.mxu0 0.0
      %176 = vmatprep.subr.mxu0 0.0
      %177 = vmatpush1.msra.mxu0 0.0
      %178 = vmatprep.subr.mxu0 0.0
      %179 = vmatpush1.msra.mxu0 0.0
      %180 = vmatprep.subr.mxu0 0.0
      %181 = vmatpush1.msra.mxu0 0.0
      %182 = vmatprep.subr.mxu0 0.0
      %183 = vmatpush1.msra.mxu0 0.0
      %184 = vmatprep.subr.mxu0 0.0
      %185 = vmatpush1.msra.mxu0 0.0
      %186 = vmatprep.subr.mxu0 0.0
      %187 = vmatpush1.msra.mxu0 0.0
      %188 = vmatprep.subr.mxu0 0.0
      %189 = vmatpush1.msra.mxu0 0.0
      %190 = vmatprep.subr.mxu0 0.0
      %191 = vmatpush1.msra.mxu0 0.0
      %192 = vmatprep.subr.mxu0 0.0
      %193 = vmatpush1.msra.mxu0 0.0
      %194 = vmatprep.subr.mxu0 0.0
      %195 = vmatpush1.msra.mxu0 0.0
      %196 = vmatprep.subr.mxu0 0.0
      %197 = vmatpush1.msra.mxu0 0.0
      %198 = vmatprep.subr.mxu0 0.0
      %199 = vmatpush1.msra.mxu0 0.0
      %200 = vmatprep.subr.mxu0 0.0
      %201 = vmatpush1.msra.mxu0 0.0
      %202 = vmatprep.subr.mxu0 0.0
      %203 = vmatpush1.msra.mxu0 0.0
      %204 = vmatprep.subr.mxu0 0.0
      %205 = vmatpush1.msra.mxu0 0.0
      %206 = vmatprep.subr.mxu0 0.0
      %207 = vmatpush1.msra.mxu0 0.0
      %208 = vmatprep.subr.mxu0 0.0
      %209 = vmatpush1.msra.mxu0 0.0
      %210 = vmatprep.subr.mxu0 0.0
      %211 = vmatpush1.msra.mxu0 0.0
      %212 = vmatprep.subr.mxu0 0.0
      %213 = vmatpush1.msra.mxu0 0.0
      %214 = vmatprep.subr.mxu0 0.0
      %215 = vmatpush1.msra.mxu0 0.0
      %216 = vmatprep.subr.mxu0 0.0
      %217 = vmatpush1.msra.mxu0 0.0
      %218 = vmatprep.subr.mxu0 0.0
      %219 = vmatpush1.msra.mxu0 0.0
      %220 = vmatprep.subr.mxu0 0.0
      %221 = vmatpush1.msra.mxu0 0.0
      %222 = vmatprep.subr.mxu0 0.0
      %223 = vmatpush1.msra.mxu0 0.0
      %224 = vmatprep.subr.mxu0 0.0
      %225 = vmatpush1.msra.mxu0 0.0
      %226 = vmatprep.subr.mxu0 0.0
      %227 = vmatpush1.msra.mxu0 0.0
      %228 = vmatprep.mubr.f32.mxu0 0.0
      %229 = vmatmul.mubr.f32.gmra.mrb[0].mxu0 %v162
      %v230 = vpop.f32.mrb[0].mxu0
      %v231 = vadd.f32 0.0, %v230
      %v232 = vpop.f32.mrb[0].mxu0
      %233 = vdwg.mxu0
      %v234 = vadd.f32 %v158, %v231
      %v235 = vxor.u32 %v234, 2147483648
      %v236 = vmul.f32 %v235, 1.442695
      %v237 = vpow.pop %v236
      %v238 = vadd.f32 %v237, 1.0
      %v239 = vrcp.pop %v238
      %v240 = vmul.f32 1.0, %v239
      %v241 = vtanh.pop %v234
      %v242 = vld [vmem:[#allocation3] sm:$0x3]
      %244 = vrot.lane.b32.xlu0 %v242, 32
      %v245 = vpop.permute.xlu0 %244
      %v247 = vmul.f32 %v240, %v245
      %249 = vrot.lane.b32.xlu0 %v241, 64
      %v250 = vpop.permute.xlu0 %249
      %v252 = vmul.f32 %v240, %v250
      %254 = vrot.lane.b32.xlu0 %v252, 32
      %v255 = vpop.permute.xlu0 %254
      %v257 = vadd.f32 %v247, %v255
      %v258 = vtanh.pop %v257
      %260 = vrot.lane.b32.xlu0 %v258, 64
      %v261 = vpop.permute.xlu0 %260
      %v263 = vmul.f32 %v240, %v261
      %265 = vrot.lane.b32.xlu0 %v257, 96
      %v266 = vpop.permute.xlu0 %265
      %vm268 = vcmask 254976
      %269 = vst.msk [vmem:[#allocation3] sm:$0x3] %vm268, %v266
      %271 = vrot.lane.b32.xlu0 %v263, 32
      %v272 = vpop.permute.xlu0 %271
      %274 = vst.msk [vmem:[#allocation2] sm:$0x3] %vm268, %v272
      %275 = vst.msk [vmem:[%s145] sm:$0x3] %vm268, %v272
      %s276 = scalar_lea.vmem %s139, 2
      %v277 = vld [vmem:[%s276] sm:$0x3]
      %v278 = vld [vmem:[#allocation2] sm:$0x3]
      %v280 = vsel %vm160, %v278, 0
      %282 = vmatprep.subr.mxu0 0.0
      %283 = vmatpush1.msra.mxu0 %v154
      %284 = vmatprep.subr.mxu0 0.0
      %285 = vmatpush1.msra.mxu0 %v155
      %286 = vmatprep.subr.mxu0 0.0
      %287 = vmatpush1.msra.mxu0 %v156
      %288 = vmatprep.subr.mxu0 0.0
      %289 = vmatpush1.msra.mxu0 %v157
      %290 = vmatprep.subr.mxu0 0.0
      %291 = vmatpush1.msra.mxu0 0.0
      %292 = vmatprep.subr.mxu0 0.0
      %293 = vmatpush1.msra.mxu0 0.0
      %294 = vmatprep.subr.mxu0 0.0
      %295 = vmatpush1.msra.mxu0 0.0
      %296 = vmatprep.subr.mxu0 0.0
      %297 = vmatpush1.msra.mxu0 0.0
      %298 = vmatprep.subr.mxu0 0.0
      %299 = vmatpush1.msra.mxu0 0.0
      %300 = vmatprep.subr.mxu0 0.0
      %301 = vmatpush1.msra.mxu0 0.0
      %302 = vmatprep.subr.mxu0 0.0
      %303 = vmatpush1.msra.mxu0 0.0
      %304 = vmatprep.subr.mxu0 0.0
      %305 = vmatpush1.msra.mxu0 0.0
      %306 = vmatprep.subr.mxu0 0.0
      %307 = vmatpush1.msra.mxu0 0.0
      %308 = vmatprep.subr.mxu0 0.0
      %309 = vmatpush1.msra.mxu0 0.0
      %310 = vmatprep.subr.mxu0 0.0
      %311 = vmatpush1.msra.mxu0 0.0
      %312 = vmatprep.subr.mxu0 0.0
      %313 = vmatpush1.msra.mxu0 0.0
      %314 = vmatprep.subr.mxu0 0.0
      %315 = vmatpush1.msra.mxu0 0.0
      %316 = vmatprep.subr.mxu0 0.0
      %317 = vmatpush1.msra.mxu0 0.0
      %318 = vmatprep.subr.mxu0 0.0
      %319 = vmatpush1.msra.mxu0 0.0
      %320 = vmatprep.subr.mxu0 0.0
      %321 = vmatpush1.msra.mxu0 0.0
      %322 = vmatprep.subr.mxu0 0.0
      %323 = vmatpush1.msra.mxu0 0.0
      %324 = vmatprep.subr.mxu0 0.0
      %325 = vmatpush1.msra.mxu0 0.0
      %326 = vmatprep.subr.mxu0 0.0
      %327 = vmatpush1.msra.mxu0 0.0
      %328 = vmatprep.subr.mxu0 0.0
      %329 = vmatpush1.msra.mxu0 0.0
      %330 = vmatprep.subr.mxu0 0.0
      %331 = vmatpush1.msra.mxu0 0.0
      %332 = vmatprep.subr.mxu0 0.0
      %333 = vmatpush1.msra.mxu0 0.0
      %334 = vmatprep.subr.mxu0 0.0
      %335 = vmatpush1.msra.mxu0 0.0
      %336 = vmatprep.subr.mxu0 0.0
      %337 = vmatpush1.msra.mxu0 0.0
      %338 = vmatprep.subr.mxu0 0.0
      %339 = vmatpush1.msra.mxu0 0.0
      %340 = vmatprep.subr.mxu0 0.0
      %341 = vmatpush1.msra.mxu0 0.0
      %342 = vmatprep.subr.mxu0 0.0
      %343 = vmatpush1.msra.mxu0 0.0
      %344 = vmatprep.subr.mxu0 0.0
      %345 = vmatpush1.msra.mxu0 0.0
      %346 = vmatprep.mubr.f32.mxu0 0.0
      %347 = vmatmul.mubr.f32.gmra.mrb[0].mxu0 %v280
      %v348 = vpop.f32.mrb[0].mxu0
      %v349 = vadd.f32 0.0, %v348
      %v350 = vpop.f32.mrb[0].mxu0
      %351 = vdwg.mxu0
      %v352 = vadd.f32 %v277, %v349
      %v353 = vxor.u32 %v352, 2147483648
      %v354 = vmul.f32 %v353, 1.442695
      %v355 = vpow.pop %v354
      %v356 = vadd.f32 %v355, 1.0
      %v357 = vrcp.pop %v356
      %v358 = vmul.f32 1.0, %v357
      %v359 = vtanh.pop %v352
      %v360 = vld [vmem:[#allocation3] sm:$0x3]
      %362 = vrot.lane.b32.xlu0 %v360, 32
      %v363 = vpop.permute.xlu0 %362
      %v365 = vmul.f32 %v358, %v363
      %367 = vrot.lane.b32.xlu0 %v359, 64
      %v368 = vpop.permute.xlu0 %367
      %v370 = vmul.f32 %v358, %v368
      %372 = vrot.lane.b32.xlu0 %v370, 32
      %v373 = vpop.permute.xlu0 %372
      %v375 = vadd.f32 %v365, %v373
      %v376 = vtanh.pop %v375
      %378 = vrot.lane.b32.xlu0 %v376, 64
      %v379 = vpop.permute.xlu0 %378
      %v381 = vmul.f32 %v358, %v379
      %383 = vrot.lane.b32.xlu0 %v375, 96
      %v384 = vpop.permute.xlu0 %383
      %386 = vst.msk [vmem:[#allocation3] sm:$0x3] %vm268, %v384
      %388 = vrot.lane.b32.xlu0 %v381, 32
      %v389 = vpop.permute.xlu0 %388
      %391 = vst.msk [vmem:[#allocation2] sm:$0x3] %vm268, %v389
      %s392 = scalar_lea.vmem %s145, 2
      %393 = vst.msk [vmem:[%s392] sm:$0x3] %vm268, %v389
      %s394 = scalar_lea.vmem %s139, 4
      %v395 = vld [vmem:[%s394] sm:$0x3]
      %v396 = vld [vmem:[#allocation2] sm:$0x3]
      %v398 = vsel %vm160, %v396, 0
      %400 = vmatprep.subr.mxu0 0.0
      %401 = vmatpush1.msra.mxu0 %v154
      %402 = vmatprep.subr.mxu0 0.0
      %403 = vmatpush1.msra.mxu0 %v155
      %404 = vmatprep.subr.mxu0 0.0
      %405 = vmatpush1.msra.mxu0 %v156
      %406 = vmatprep.subr.mxu0 0.0
      %407 = vmatpush1.msra.mxu0 %v157
      %408 = vmatprep.subr.mxu0 0.0
      %409 = vmatpush1.msra.mxu0 0.0
      %410 = vmatprep.subr.mxu0 0.0
      %411 = vmatpush1.msra.mxu0 0.0
      %412 = vmatprep.subr.mxu0 0.0
      %413 = vmatpush1.msra.mxu0 0.0
      %414 = vmatprep.subr.mxu0 0.0
      %415 = vmatpush1.msra.mxu0 0.0
      %416 = vmatprep.subr.mxu0 0.0
      %417 = vmatpush1.msra.mxu0 0.0
      %418 = vmatprep.subr.mxu0 0.0
      %419 = vmatpush1.msra.mxu0 0.0
      %420 = vmatprep.subr.mxu0 0.0
      %421 = vmatpush1.msra.mxu0 0.0
      %422 = vmatprep.subr.mxu0 0.0
      %423 = vmatpush1.msra.mxu0 0.0
      %424 = vmatprep.subr.mxu0 0.0
      %425 = vmatpush1.msra.mxu0 0.0
      %426 = vmatprep.subr.mxu0 0.0
      %427 = vmatpush1.msra.mxu0 0.0
      %428 = vmatprep.subr.mxu0 0.0
      %429 = vmatpush1.msra.mxu0 0.0
      %430 = vmatprep.subr.mxu0 0.0
      %431 = vmatpush1.msra.mxu0 0.0
      %432 = vmatprep.subr.mxu0 0.0
      %433 = vmatpush1.msra.mxu0 0.0
      %434 = vmatprep.subr.mxu0 0.0
      %435 = vmatpush1.msra.mxu0 0.0
      %436 = vmatprep.subr.mxu0 0.0
      %437 = vmatpush1.msra.mxu0 0.0
      %438 = vmatprep.subr.mxu0 0.0
      %439 = vmatpush1.msra.mxu0 0.0
      %440 = vmatprep.subr.mxu0 0.0
      %441 = vmatpush1.msra.mxu0 0.0
      %442 = vmatprep.subr.mxu0 0.0
      %443 = vmatpush1.msra.mxu0 0.0
      %444 = vmatprep.subr.mxu0 0.0
      %445 = vmatpush1.msra.mxu0 0.0
      %446 = vmatprep.subr.mxu0 0.0
      %447 = vmatpush1.msra.mxu0 0.0
      %448 = vmatprep.subr.mxu0 0.0
      %449 = vmatpush1.msra.mxu0 0.0
      %450 = vmatprep.subr.mxu0 0.0
      %451 = vmatpush1.msra.mxu0 0.0
      %452 = vmatprep.subr.mxu0 0.0
      %453 = vmatpush1.msra.mxu0 0.0
      %454 = vmatprep.subr.mxu0 0.0
      %455 = vmatpush1.msra.mxu0 0.0
      %456 = vmatprep.subr.mxu0 0.0
      %457 = vmatpush1.msra.mxu0 0.0
      %458 = vmatprep.subr.mxu0 0.0
      %459 = vmatpush1.msra.mxu0 0.0
      %460 = vmatprep.subr.mxu0 0.0
      %461 = vmatpush1.msra.mxu0 0.0
      %462 = vmatprep.subr.mxu0 0.0
      %463 = vmatpush1.msra.mxu0 0.0
      %464 = vmatprep.mubr.f32.mxu0 0.0
      %465 = vmatmul.mubr.f32.gmra.mrb[0].mxu0 %v398
      %v466 = vpop.f32.mrb[0].mxu0
      %v467 = vadd.f32 0.0, %v466
      %v468 = vpop.f32.mrb[0].mxu0
      %469 = vdwg.mxu0
      %v470 = vadd.f32 %v395, %v467
      %v471 = vxor.u32 %v470, 2147483648
      %v472 = vmul.f32 %v471, 1.442695
      %v473 = vpow.pop %v472
      %v474 = vadd.f32 %v473, 1.0
      %v475 = vrcp.pop %v474
      %v476 = vmul.f32 1.0, %v475
      %v477 = vtanh.pop %v470
      %v478 = vld [vmem:[#allocation3] sm:$0x3]
      %480 = vrot.lane.b32.xlu0 %v478, 32
      %v481 = vpop.permute.xlu0 %480
      %v483 = vmul.f32 %v476, %v481
      %485 = vrot.lane.b32.xlu0 %v477, 64
      %v486 = vpop.permute.xlu0 %485
      %v488 = vmul.f32 %v476, %v486
      %490 = vrot.lane.b32.xlu0 %v488, 32
      %v491 = vpop.permute.xlu0 %490
      %v493 = vadd.f32 %v483, %v491
      %v494 = vtanh.pop %v493
      %496 = vrot.lane.b32.xlu0 %v494, 64
      %v497 = vpop.permute.xlu0 %496
      %v499 = vmul.f32 %v476, %v497
      %501 = vrot.lane.b32.xlu0 %v493, 96
      %v502 = vpop.permute.xlu0 %501
      %504 = vst.msk [vmem:[#allocation3] sm:$0x3] %vm268, %v502
      %506 = vrot.lane.b32.xlu0 %v499, 32
      %v507 = vpop.permute.xlu0 %506
      %509 = vst.msk [vmem:[#allocation2] sm:$0x3] %vm268, %v507
      %s510 = scalar_lea.vmem %s145, 4
      %511 = vst.msk [vmem:[%s510] sm:$0x3] %vm268, %v507
      %s512 = scalar_lea.vmem %s139, 6
      %v513 = vld [vmem:[%s512] sm:$0x3]
      %v514 = vld [vmem:[#allocation2] sm:$0x3]
      %v516 = vsel %vm160, %v514, 0
      %518 = vmatprep.subr.mxu0 0.0
      %519 = vmatpush1.msra.mxu0 %v154
      %520 = vmatprep.subr.mxu0 0.0
      %521 = vmatpush1.msra.mxu0 %v155
      %522 = vmatprep.subr.mxu0 0.0
      %523 = vmatpush1.msra.mxu0 %v156
      %524 = vmatprep.subr.mxu0 0.0
      %525 = vmatpush1.msra.mxu0 %v157
      %526 = vmatprep.subr.mxu0 0.0
      %527 = vmatpush1.msra.mxu0 0.0
      %528 = vmatprep.subr.mxu0 0.0
      %529 = vmatpush1.msra.mxu0 0.0
      %530 = vmatprep.subr.mxu0 0.0
      %531 = vmatpush1.msra.mxu0 0.0
      %532 = vmatprep.subr.mxu0 0.0
      %533 = vmatpush1.msra.mxu0 0.0
      %534 = vmatprep.subr.mxu0 0.0
      %535 = vmatpush1.msra.mxu0 0.0
      %536 = vmatprep.subr.mxu0 0.0
      %537 = vmatpush1.msra.mxu0 0.0
      %538 = vmatprep.subr.mxu0 0.0
      %539 = vmatpush1.msra.mxu0 0.0
      %540 = vmatprep.subr.mxu0 0.0
      %541 = vmatpush1.msra.mxu0 0.0
      %542 = vmatprep.subr.mxu0 0.0
      %543 = vmatpush1.msra.mxu0 0.0
      %544 = vmatprep.subr.mxu0 0.0
      %545 = vmatpush1.msra.mxu0 0.0
      %546 = vmatprep.subr.mxu0 0.0
      %547 = vmatpush1.msra.mxu0 0.0
      %548 = vmatprep.subr.mxu0 0.0
      %549 = vmatpush1.msra.mxu0 0.0
      %550 = vmatprep.subr.mxu0 0.0
      %551 = vmatpush1.msra.mxu0 0.0
      %552 = vmatprep.subr.mxu0 0.0
      %553 = vmatpush1.msra.mxu0 0.0
      %554 = vmatprep.subr.mxu0 0.0
      %555 = vmatpush1.msra.mxu0 0.0
      %556 = vmatprep.subr.mxu0 0.0
      %557 = vmatpush1.msra.mxu0 0.0
      %558 = vmatprep.subr.mxu0 0.0
      %559 = vmatpush1.msra.mxu0 0.0
      %560 = vmatprep.subr.mxu0 0.0
      %561 = vmatpush1.msra.mxu0 0.0
      %562 = vmatprep.subr.mxu0 0.0
      %563 = vmatpush1.msra.mxu0 0.0
      %564 = vmatprep.subr.mxu0 0.0
      %565 = vmatpush1.msra.mxu0 0.0
      %566 = vmatprep.subr.mxu0 0.0
      %567 = vmatpush1.msra.mxu0 0.0
      %568 = vmatprep.subr.mxu0 0.0
      %569 = vmatpush1.msra.mxu0 0.0
      %570 = vmatprep.subr.mxu0 0.0
      %571 = vmatpush1.msra.mxu0 0.0
      %572 = vmatprep.subr.mxu0 0.0
      %573 = vmatpush1.msra.mxu0 0.0
      %574 = vmatprep.subr.mxu0 0.0
      %575 = vmatpush1.msra.mxu0 0.0
      %576 = vmatprep.subr.mxu0 0.0
      %577 = vmatpush1.msra.mxu0 0.0
      %578 = vmatprep.subr.mxu0 0.0
      %579 = vmatpush1.msra.mxu0 0.0
      %580 = vmatprep.subr.mxu0 0.0
      %581 = vmatpush1.msra.mxu0 0.0
      %582 = vmatprep.mubr.f32.mxu0 0.0
      %583 = vmatmul.mubr.f32.gmra.mrb[0].mxu0 %v516
      %v584 = vpop.f32.mrb[0].mxu0
      %v585 = vadd.f32 0.0, %v584
      %v586 = vpop.f32.mrb[0].mxu0
      %587 = vdwg.mxu0
      %v588 = vadd.f32 %v513, %v585
      %v589 = vxor.u32 %v588, 2147483648
      %v590 = vmul.f32 %v589, 1.442695
      %v591 = vpow.pop %v590
      %v592 = vadd.f32 %v591, 1.0
      %v593 = vrcp.pop %v592
      %v594 = vmul.f32 1.0, %v593
      %v595 = vtanh.pop %v588
      %v596 = vld [vmem:[#allocation3] sm:$0x3]
      %598 = vrot.lane.b32.xlu0 %v596, 32
      %v599 = vpop.permute.xlu0 %598
      %v601 = vmul.f32 %v594, %v599
      %603 = vrot.lane.b32.xlu0 %v595, 64
      %v604 = vpop.permute.xlu0 %603
      %v606 = vmul.f32 %v594, %v604
      %608 = vrot.lane.b32.xlu0 %v606, 32
      %v609 = vpop.permute.xlu0 %608
      %v611 = vadd.f32 %v601, %v609
      %v612 = vtanh.pop %v611
      %614 = vrot.lane.b32.xlu0 %v612, 64
      %v615 = vpop.permute.xlu0 %614
      %v617 = vmul.f32 %v594, %v615
      %619 = vrot.lane.b32.xlu0 %v611, 96
      %v620 = vpop.permute.xlu0 %619
      %622 = vst.msk [vmem:[#allocation3] sm:$0x3] %vm268, %v620
      %624 = vrot.lane.b32.xlu0 %v617, 32
      %v625 = vpop.permute.xlu0 %624
      %627 = vst.msk [vmem:[#allocation2] sm:$0x3] %vm268, %v625
      %s628 = scalar_lea.vmem %s145, 6
      %629 = vst.msk [vmem:[%s628] sm:$0x3] %vm268, %v625
      %s630 = smul.u32 4, %s13
      %p631 = scmp.lt.s32.totalorder %s630, 7
      %s632 = scalar_select %p631, %s630, 7
      %s633 = smul.addr %s632, 2
      %s634 = scalar_lea.vmem %s2, %s633
      // Predicated region
      $region33: #{speaker_encoder_forward.4} parent=27 // pred_check
        %p635 = pneg %p78
      $region34: #{speaker_encoder_forward.4} parent=27 // pred_check_branch
        %637 = sbr.rel (%p635) target = $region36
      $region35: #{speaker_encoder_forward.4} parent=27 // pred_region
        %s638 = smul.u32 4, %s13
      $region36: #{speaker_encoder_forward.4} parent=27 // pred_fallthru
        _
    $region28: #{speaker_encoder_forward.4} parent=5 // pred_fallthru
      _
    %p639 = scmp.le.s32.totalorder 2, %s8
    // Predicated region
    $region37: #{speaker_encoder_forward.4} parent=5 // pred_check
      %p640 = pneg %p639
    $region38: #{speaker_encoder_forward.4} parent=5 // pred_check_branch
      %642 = sbr.rel (%p640) target = $region40
    $region39: #{speaker_encoder_forward.4} parent=5 // pred_region
      %s643 = ssub.s32 %s8, 2
      // Predicated region
      $region41: #{speaker_encoder_forward.4} parent=39 // pred_check
        %p644 = pneg %p84
      $region42: #{speaker_encoder_forward.4} parent=39 // pred_check_branch
        %646 = sbr.rel (%p644) target = $region44
      $region43: #{speaker_encoder_forward.4} parent=39 // pred_region
        %s647 = smul.u32 4, %s14
        %p648 = scmp.lt.s32.totalorder %s647, 7
        %s649 = scalar_select %p648, %s647, 7
        %s650 = smul.addr %s649, 2
        %s651 = scalar_lea.vmem %s2, %s650
      $region44: #{speaker_encoder_forward.4} parent=39 // pred_fallthru
        _
    $region40: #{speaker_encoder_forward.4} parent=5 // pred_fallthru
      _
  $region6: #{speaker_encoder_forward.4} parent=0 // loop_footer
    %s12 = sadd.s32 1, %s8
  $region7: #{speaker_encoder_forward.4} parent=0 // loop_footer_branch
    %7 = sbr.rel target = $region3
  $region8: #{speaker_encoder_forward.4} parent=0 // loop_exit
    _

// kernel: speaker_encoder_forward.6
$region0: #{speaker_encoder_forward.6}
  #allocation0 [shape = 'u32[]', space=smem, size = 0x4, offset = 0x4, fixed_abs, tag = 'smem constant byte address 0x4 - core index']
  #allocation1 [shape = 'u32[144,128]{1,0:T(1,128)}', space=vmem, size = 0x12000, scoped, tag = 'internal scratch']
  %s0 = inlined_call_operand.vmem [shape: f32[16,32], index: 0, kind: input, shape index: {}]
  %s1 = inlined_call_operand.vmem [shape: f32[16,36,64], index: 1, kind: input, shape index: {}]
  %s2 = inlined_call_operand.vmem [shape: f32[32,64], index: 2, kind: input, shape index: {}]
  %s3 = inlined_call_operand.vmem [shape: f32[64,32], index: 3, kind: input, shape index: {}]
  %s4 = inlined_call_operand.vmem [shape: f32[32,32], index: 4, kind: input, shape index: {}]
  %s5 = inlined_call_operand.vmem [shape: f32[16,32], index: 5, kind: output, shape index: {}]
  %s6 = sld [smem:[#allocation0]]
  $region53: #{speaker_encoder_forward.6} parent=0
    _
  %s8 = ssub.s32 1, %s6
  %s9 = scalar_select 0, %s8, %s6
  loop: start=0, step=1, limit=4
  $region2: #{speaker_encoder_forward.6} parent=0 // loop_pre_header
    _
  $region3: #{speaker_encoder_forward.6} parent=0 // loop_header
    %s11 = sphi 0, %s15
    %p12 = scmp.ge.s32.totalorder %s11, 4
    %s21 = sphi 0, %s23
    %s24 = sphi 0, %s21
    %s25 = sphi 0, %s24
    %s41 = sphi 0, %s25
    %s47 = sphi 0, %s49
    %s50 = sphi 0, %s47
    %s51 = sphi 0, %s50
    %s67 = sphi 0, %s51
    %s71 = sphi 0, %s71
    %s73 = sphi 0, %s71
    %s74 = sphi 0, %s73
    %s88 = sphi 0, %s74
    %s92 = sphi 0, %s92
    %s94 = sphi 0, %s92
    %s95 = sphi 0, %s94
    %s109 = sphi 0, %s95
    %s113 = sphi 0, %s113
    %s115 = sphi 0, %s113
    %s116 = sphi 0, %s115
    %s130 = sphi 0, %s116
    %s136 = sphi 0, %s138
    %s139 = sphi 0, %s136
    %s140 = sphi 0, %s139
    %s156 = sphi 0, %s140
  $region4: #{speaker_encoder_forward.6} parent=0 // loop_header_branch
    %14 = sbr.rel (%p12) target = $region8
  $region5: #{speaker_encoder_forward.6} parent=0 // loop_body
    %s16 = ssub.s32 %s11, 1
    %s17 = ssub.s32 %s11, 2
    %s18 = sadd.s32 %s11, 1
    %s19 = ssub.s32 %s11, %s18
    %p20 = scmp.eq.s32.totalorder %s19, 0
    %s22 = sadd.s32 %s21, 1
    %s23 = scalar_select %p20, %s21, %s22
    %p26 = pneg %p20
    %p27 = scmp.eq.s32.totalorder %s11, 1
    %p28 = por %p26, %p27
    %p29 = scmp.ne.s32.totalorder %s21, %s24
    %p30 = scmp.eq.s32.totalorder %s11, 0
    %p31 = por %p29, %p30
    %p32 = scmp.ne.s32.totalorder %s21, %s24
    %p33 = scmp.eq.s32.totalorder %s16, 1
    %p34 = por %p32, %p33
    %p35 = scmp.ne.s32.totalorder %s24, %s25
    %p36 = scmp.eq.s32.totalorder %s16, 0
    %p37 = por %p35, %p36
    %p38 = scmp.ne.s32.totalorder %s24, %s25
    %p39 = scmp.eq.s32.totalorder %s17, 1
    %p40 = por %p38, %p39
    %p42 = scmp.ne.s32.totalorder %s25, %s41
    %p43 = scmp.eq.s32.totalorder %s17, 0
    %p44 = por %p42, %p43
    %s45 = ssub.s32 %s11, %s18
    %p46 = scmp.eq.s32.totalorder %s45, 0
    %s48 = sadd.s32 %s47, 1
    %s49 = scalar_select %p46, %s47, %s48
    %p52 = pneg %p46
    %p53 = scmp.eq.s32.totalorder %s11, 1
    %p54 = por %p52, %p53
    %p55 = scmp.ne.s32.totalorder %s47, %s50
    %p56 = scmp.eq.s32.totalorder %s11, 0
    %p57 = por %p55, %p56
    %p58 = scmp.ne.s32.totalorder %s47, %s50
    %p59 = scmp.eq.s32.totalorder %s16, 1
    %p60 = por %p58, %p59
    %p61 = scmp.ne.s32.totalorder %s50, %s51
    %p62 = scmp.eq.s32.totalorder %s16, 0
    %p63 = por %p61, %p62
    %p64 = scmp.ne.s32.totalorder %s50, %s51
    %p65 = scmp.eq.s32.totalorder %s17, 1
    %p66 = por %p64, %p65
    %p68 = scmp.ne.s32.totalorder %s51, %s67
    %p69 = scmp.eq.s32.totalorder %s17, 0
    %p70 = por %p68, %p69
    %s72 = sadd.s32 %s71, 1
    %p75 = scmp.eq.s32.totalorder %s11, 1
    %p76 = scmp.ne.s32.totalorder %s71, %s73
    %p77 = scmp.eq.s32.totalorder %s11, 0
    %p78 = por %p76, %p77
    %p79 = scmp.ne.s32.totalorder %s71, %s73
    %p80 = scmp.eq.s32.totalorder %s16, 1
    %p81 = por %p79, %p80
    %p82 = scmp.ne.s32.totalorder %s73, %s74
    %p83 = scmp.eq.s32.totalorder %s16, 0
    %p84 = por %p82, %p83
    %p85 = scmp.ne.s32.totalorder %s73, %s74
    %p86 = scmp.eq.s32.totalorder %s17, 1
    %p87 = por %p85, %p86
    %p89 = scmp.ne.s32.totalorder %s74, %s88
    %p90 = scmp.eq.s32.totalorder %s17, 0
    %p91 = por %p89, %p90
    %s93 = sadd.s32 %s92, 1
    %p96 = scmp.eq.s32.totalorder %s11, 1
    %p97 = scmp.ne.s32.totalorder %s92, %s94
    %p98 = scmp.eq.s32.totalorder %s11, 0
    %p99 = por %p97, %p98
    %p100 = scmp.ne.s32.totalorder %s92, %s94
    %p101 = scmp.eq.s32.totalorder %s16, 1
    %p102 = por %p100, %p101
    %p103 = scmp.ne.s32.totalorder %s94, %s95
    %p104 = scmp.eq.s32.totalorder %s16, 0
    %p105 = por %p103, %p104
    %p106 = scmp.ne.s32.totalorder %s94, %s95
    %p107 = scmp.eq.s32.totalorder %s17, 1
    %p108 = por %p106, %p107
    %p110 = scmp.ne.s32.totalorder %s95, %s109
    %p111 = scmp.eq.s32.totalorder %s17, 0
    %p112 = por %p110, %p111
    %s114 = sadd.s32 %s113, 1
    %p117 = scmp.eq.s32.totalorder %s11, 1
    %p118 = scmp.ne.s32.totalorder %s113, %s115
    %p119 = scmp.eq.s32.totalorder %s11, 0
    %p120 = por %p118, %p119
    %p121 = scmp.ne.s32.totalorder %s113, %s115
    %p122 = scmp.eq.s32.totalorder %s16, 1
    %p123 = por %p121, %p122
    %p124 = scmp.ne.s32.totalorder %s115, %s116
    %p125 = scmp.eq.s32.totalorder %s16, 0
    %p126 = por %p124, %p125
    %p127 = scmp.ne.s32.totalorder %s115, %s116
    %p128 = scmp.eq.s32.totalorder %s17, 1
    %p129 = por %p127, %p128
    %p131 = scmp.ne.s32.totalorder %s116, %s130
    %p132 = scmp.eq.s32.totalorder %s17, 0
    %p133 = por %p131, %p132
    %s134 = ssub.s32 %s11, %s18
    %p135 = scmp.eq.s32.totalorder %s134, 0
    %s137 = sadd.s32 %s136, 1
    %s138 = scalar_select %p135, %s136, %s137
    %p141 = pneg %p135
    %p142 = scmp.eq.s32.totalorder %s11, 1
    %p143 = por %p141, %p142
    %p144 = scmp.ne.s32.totalorder %s136, %s139
    %p145 = scmp.eq.s32.totalorder %s11, 0
    %p146 = por %p144, %p145
    %p147 = scmp.ne.s32.totalorder %s136, %s139
    %p148 = scmp.eq.s32.totalorder %s16, 1
    %p149 = por %p147, %p148
    %p150 = scmp.ne.s32.totalorder %s139, %s140
    %p151 = scmp.eq.s32.totalorder %s16, 0
    %p152 = por %p150, %p151
    %p153 = scmp.ne.s32.totalorder %s139, %s140
    %p154 = scmp.eq.s32.totalorder %s17, 1
    %p155 = por %p153, %p154
    %p157 = scmp.ne.s32.totalorder %s140, %s156
    %p158 = scmp.eq.s32.totalorder %s17, 0
    %p159 = por %p157, %p158
    %p160 = scmp.le.s32.totalorder 1, %s11
    %p161 = scmp.lt.s32.totalorder %s11, 3
    %p162 = pnand %p160, %p161
    %p163 = pneg %p162
    // Predicated region
    $region9: #{speaker_encoder_forward.6} parent=5 // pred_check
      _
    $region10: #{speaker_encoder_forward.6} parent=5 // pred_check_branch
      %165 = sbr.rel (%p162) target = $region12
    $region11: #{speaker_encoder_forward.6} parent=5 // pred_region
      %s166 = ssub.s32 %s11, 1
      // Predicated region
      $region13: #{speaker_encoder_forward.6} parent=11 // pred_check
        %p167 = pneg %p84
      $region14: #{speaker_encoder_forward.6} parent=11 // pred_check_branch
        %169 = sbr.rel (%p167) target = $region16
      $region15: #{speaker_encoder_forward.6} parent=11 // pred_region
        _
      $region16: #{speaker_encoder_forward.6} parent=11 // pred_fallthru
        _
      // Predicated region
      $region17: #{speaker_encoder_forward.6} parent=11 // pred_check
        %p170 = pneg %p105
      $region18: #{speaker_encoder_forward.6} parent=11 // pred_check_branch
        %172 = sbr.rel (%p170) target = $region20
      $region19: #{speaker_encoder_forward.6} parent=11 // pred_region
        _
      $region20: #{speaker_encoder_forward.6} parent=11 // pred_fallthru
        _
      // Predicated region
      $region21: #{speaker_encoder_forward.6} parent=11 // pred_check
        %p173 = pneg %p126
      $region22: #{speaker_encoder_forward.6} parent=11 // pred_check_branch
        %175 = sbr.rel (%p173) target = $region24
      $region23: #{speaker_encoder_forward.6} parent=11 // pred_region
        _
      $region24: #{speaker_encoder_forward.6} parent=11 // pred_fallthru
        _
    $region12: #{speaker_encoder_forward.6} parent=5 // pred_fallthru
      _
    %p176 = scmp.lt.s32.totalorder %s11, 2
    // Predicated region
    $region25: #{speaker_encoder_forward.6} parent=5 // pred_check
      %p177 = pneg %p176
    $region26: #{speaker_encoder_forward.6} parent=5 // pred_check_branch
      %179 = sbr.rel (%p177) target = $region28
    $region27: #{speaker_encoder_forward.6} parent=5 // pred_region
      // Predicated region
      $region29: #{speaker_encoder_forward.6} parent=27 // pred_check
        %p180 = pneg %p31
      $region30: #{speaker_encoder_forward.6} parent=27 // pred_check_branch
        %182 = sbr.rel (%p180) target = $region32
      $region31: #{speaker_encoder_forward.6} parent=27 // pred_region
        %p183 = scmp.lt.s32.totalorder %s11, 1
        %s184 = scalar_select %p183, %s11, 1
        %s185 = smul.addr %s184, 8
        %s186 = scalar_lea.vmem %s0, %s185
      $region32: #{speaker_encoder_forward.6} parent=27 // pred_fallthru
        _
      // Predicated region
      $region33: #{speaker_encoder_forward.6} parent=27 // pred_check
        %p187 = pneg %p57
      $region34: #{speaker_encoder_forward.6} parent=27 // pred_check_branch
        %189 = sbr.rel (%p187) target = $region36
      $region35: #{speaker_encoder_forward.6} parent=27 // pred_region
        %s190 = smul.u32 8, %s11
        %p191 = scmp.lt.s32.totalorder %s190, 15
        %s192 = scalar_select %p191, %s190, 15
        %s193 = smul.addr %s192, 5
        %s194 = smul.addr %s193, 8
        %s195 = scalar_lea.vmem %s1, %s194
        %s196 = smul.u32 8, %s11
      $region36: #{speaker_encoder_forward.6} parent=27 // pred_fallthru
        _
    $region28: #{speaker_encoder_forward.6} parent=5 // pred_fallthru
      _
    %p197 = scmp.le.s32.totalorder 1, %s11
    %p198 = scmp.lt.s32.totalorder %s11, 3
    %p199 = pnand %p197, %p198
    %p200 = pneg %p199
    // Predicated region
    $region37: #{speaker_encoder_forward.6} parent=5 // pred_check
      _
    $region38: #{speaker_encoder_forward.6} parent=5 // pred_check_branch
      %202 = sbr.rel (%p199) target = $region40
    $region39: #{speaker_encoder_forward.6} parent=5 // pred_region
      %s203 = ssub.s32 %s11, 1
      %p204 = scmp.lt.s32.totalorder %s16, 1
      %s205 = scalar_select %p204, %s16, 1
      %s206 = smul.addr %s205, 8
      %s207 = scalar_lea.vmem %s0, %s206
      %p208 = pneg %p37
      %p209 = pneg %p34
      %s210 = smul.u32 8, %s16
      %p211 = scmp.lt.s32.totalorder %s210, 15
      %s212 = scalar_select %p211, %s210, 15
      %s213 = smul.addr %s212, 5
      %s214 = smul.addr %s213, 8
      %s215 = scalar_lea.vmem %s1, %s214
      %p216 = pneg %p63
      %p217 = pneg %p60
      %p218 = pneg %p84
      %p219 = pneg %p81
      %p220 = pneg %p105
      %p221 = pneg %p102
      %p222 = pneg %p126
      %p223 = pneg %p123
      %p224 = pneg %p152
      %p225 = pneg %p149
      %p226 = scmp.lt.s32.totalorder %s16, 1
      %s227 = scalar_select %p226, %s16, 1
      %s228 = smul.addr %s227, 8
      %s229 = scalar_lea.vmem %s5, %s228
      %p230 = scmp.lt.s32.totalorder %s16, 1
      %s231 = scalar_select %p230, %s16, 1
      %s232 = smul.addr %s231, 8
      %s233 = scalar_lea.vmem %s0, %s232
      %s234 = smul.u32 8, %s16
      %p235 = scmp.lt.s32.totalorder %s234, 15
      %s236 = scalar_select %p235, %s234, 15
      %s237 = smul.addr %s236, 5
      %s238 = smul.addr %s237, 8
      %s239 = scalar_lea.vmem %s1, %s238
      %s240 = smul.u32 8, %s16
      %p241 = scmp.lt.s32.totalorder %s16, 1
      %s242 = scalar_select %p241, %s16, 1
      %s243 = smul.addr %s242, 8
      %s244 = scalar_lea.vmem %s5, %s243
      %v245 = vld [vmem:[%s233] sm:$0xff]
      %v246 = vld [vmem:[%s239] sm:$0xff]
      %v247 = vld [vmem:[%s239 + $0x8] sm:$0xff]
      %v248 = vld [vmem:[%s239 + $0x10] sm:$0xff]
      %v249 = vld [vmem:[%s239 + $0x18] sm:$0xff]
      %v250 = vld [vmem:[%s239 + $0x20] sm:$0xf]
      %v251 = vld [vmem:[%s239 + $0x28] sm:$0xff]
      %v252 = vld [vmem:[%s239 + $0x30] sm:$0xff]
      %v253 = vld [vmem:[%s239 + $0x38] sm:$0xff]
      %v254 = vld [vmem:[%s239 + $0x40] sm:$0xff]
      %v255 = vld [vmem:[%s239 + $0x48] sm:$0xf]
      %v256 = vld [vmem:[%s239 + $0x50] sm:$0xff]
      %v257 = vld [vmem:[%s239 + $0x58] sm:$0xff]
      %v258 = vld [vmem:[%s239 + $0x60] sm:$0xff]
      %v259 = vld [vmem:[%s239 + $0x68] sm:$0xff]
      %v260 = vld [vmem:[%s239 + $0x70] sm:$0xf]
      %v261 = vld [vmem:[%s239 + $0x78] sm:$0xff]
      %v262 = vld [vmem:[%s239 + $0x80] sm:$0xff]
      %v263 = vld [vmem:[%s239 + $0x88] sm:$0xff]
      %v264 = vld [vmem:[%s239 + $0x90] sm:$0xff]
      %v265 = vld [vmem:[%s239 + $0x98] sm:$0xf]
      %v266 = vld [vmem:[%s239 + $0xa0] sm:$0xff]
      %v267 = vld [vmem:[%s239 + $0xa8] sm:$0xff]
      %v268 = vld [vmem:[%s239 + $0xb0] sm:$0xff]
      %v269 = vld [vmem:[%s239 + $0xb8] sm:$0xff]
      %v270 = vld [vmem:[%s239 + $0xc0] sm:$0xf]
      %v271 = vld [vmem:[%s239 + $0xc8] sm:$0xff]
      %v272 = vld [vmem:[%s239 + $0xd0] sm:$0xff]
      %v273 = vld [vmem:[%s239 + $0xd8] sm:$0xff]
      %v274 = vld [vmem:[%s239 + $0xe0] sm:$0xff]
      %v275 = vld [vmem:[%s239 + $0xe8] sm:$0xf]
      %v276 = vld [vmem:[%s239 + $0xf0] sm:$0xff]
      %v277 = vld [vmem:[%s239 + $0xf8] sm:$0xff]
      %v278 = vld [vmem:[%s239 + $0x100] sm:$0xff]
      %v279 = vld [vmem:[%s239 + $0x108] sm:$0xff]
      %v280 = vld [vmem:[%s239 + $0x110] sm:$0xf]
      %v281 = vld [vmem:[%s239 + $0x118] sm:$0xff]
      %v282 = vld [vmem:[%s239 + $0x120] sm:$0xff]
      %v283 = vld [vmem:[%s239 + $0x128] sm:$0xff]
      %v284 = vld [vmem:[%s239 + $0x130] sm:$0xff]
      %v285 = vld [vmem:[%s239 + $0x138] sm:$0xf]
      %v286 = vld [vmem:[%s2] sm:$0xff]
      %v287 = vld [vmem:[%s2 + $0x8] sm:$0xff]
      %v288 = vld [vmem:[%s2 + $0x10] sm:$0xff]
      %v289 = vld [vmem:[%s2 + $0x18] sm:$0xff]
      %vm290 = vcmask 261120
      %v292 = vsel %vm290, %v245, 0
      %294 = vmatprep.subr.mxu0 0.0
      %295 = vmatpush1.msra.mxu0 %v286
      %296 = vmatprep.subr.mxu0 0.0
      %297 = vmatpush1.msra.mxu0 %v287
      %298 = vmatprep.subr.mxu0 0.0
      %299 = vmatpush1.msra.mxu0 %v288
      %300 = vmatprep.subr.mxu0 0.0
      %301 = vmatpush1.msra.mxu0 %v289
      %302 = vmatprep.subr.mxu0 0.0
      %303 = vmatpush1.msra.mxu0 0.0
      %304 = vmatprep.subr.mxu0 0.0
      %305 = vmatpush1.msra.mxu0 0.0
      %306 = vmatprep.subr.mxu0 0.0
      %307 = vmatpush1.msra.mxu0 0.0
      %308 = vmatprep.subr.mxu0 0.0
      %309 = vmatpush1.msra.mxu0 0.0
      %310 = vmatprep.subr.mxu0 0.0
      %311 = vmatpush1.msra.mxu0 0.0
      %312 = vmatprep.subr.mxu0 0.0
      %313 = vmatpush1.msra.mxu0 0.0
      %314 = vmatprep.subr.mxu0 0.0
      %315 = vmatpush1.msra.mxu0 0.0
      %316 = vmatprep.subr.mxu0 0.0
      %317 = vmatpush1.msra.mxu0 0.0
      %318 = vmatprep.subr.mxu0 0.0
      %319 = vmatpush1.msra.mxu0 0.0
      %320 = vmatprep.subr.mxu0 0.0
      %321 = vmatpush1.msra.mxu0 0.0
      %322 = vmatprep.subr.mxu0 0.0
      %323 = vmatpush1.msra.mxu0 0.0
      %324 = vmatprep.subr.mxu0 0.0
      %325 = vmatpush1.msra.mxu0 0.0
      %326 = vmatprep.subr.mxu0 0.0
      %327 = vmatpush1.msra.mxu0 0.0
      %328 = vmatprep.subr.mxu0 0.0
      %329 = vmatpush1.msra.mxu0 0.0
      %330 = vmatprep.subr.mxu0 0.0
      %331 = vmatpush1.msra.mxu0 0.0
      %332 = vmatprep.subr.mxu0 0.0
      %333 = vmatpush1.msra.mxu0 0.0
      %334 = vmatprep.subr.mxu0 0.0
      %335 = vmatpush1.msra.mxu0 0.0
      %336 = vmatprep.subr.mxu0 0.0
      %337 = vmatpush1.msra.mxu0 0.0
      %338 = vmatprep.subr.mxu0 0.0
      %339 = vmatpush1.msra.mxu0 0.0
      %340 = vmatprep.subr.mxu0 0.0
      %341 = vmatpush1.msra.mxu0 0.0
      %342 = vmatprep.subr.mxu0 0.0
      %343 = vmatpush1.msra.mxu0 0.0
      %344 = vmatprep.subr.mxu0 0.0
      %345 = vmatpush1.msra.mxu0 0.0
      %346 = vmatprep.subr.mxu0 0.0
      %347 = vmatpush1.msra.mxu0 0.0
      %348 = vmatprep.subr.mxu0 0.0
      %349 = vmatpush1.msra.mxu0 0.0
      %350 = vmatprep.subr.mxu0 0.0
      %351 = vmatpush1.msra.mxu0 0.0
      %352 = vmatprep.subr.mxu0 0.0
      %353 = vmatpush1.msra.mxu0 0.0
      %354 = vmatprep.subr.mxu0 0.0
      %355 = vmatpush1.msra.mxu0 0.0
      %356 = vmatprep.subr.mxu0 0.0
      %357 = vmatpush1.msra.mxu0 0.0
      %358 = vmatprep.mubr.f32.mxu0 0.0
      %359 = vmatmul.mubr.f32.gmra.mrb[0].mxu0 %v292
      %v360 = vpop.f32.mrb[0].mxu0
      %v361 = vadd.f32 0.0, %v360
      %v362 = vpop.f32.mrb[0].mxu0
      %363 = vdwg.mxu0
      %v365 = vcombine.high %v361, %v361
      %v367 = vunpack.c.l.s4 1966171168
      %v368 = vunpack.c.0.s8 %v367
      %v369 = vlaneseq
      %v370 = vshrl.u32 %v369, 7
      %v371 = vsub.s32 %v368, %v370
      %v372 = vrot.slane %v361, %v371
      %v374 = vunpack.c.l.s4 1966171168
      %v375 = vunpack.c.0.s8 %v374
      %v376 = vlaneseq
      %v377 = vshrl.u32 %v376, 7
      %v378 = vsub.s32 %v375, %v377
      %v379 = vrot.slane %v365, %v378
      %v380 = vcombine.high %v372, %v372
      %v381 = vcombine.high %v379, %v379
      %v383 = vunpack.c.l.s4 1966171168
      %v384 = vunpack.c.0.s8 %v383
      %v385 = vlaneseq
      %v386 = vshrl.u32 %v385, 7
      %v387 = vsub.s32 %v384, %v386
      %v388 = vrot.slane %v372, %v387
      %v390 = vunpack.c.l.s4 1966171168
      %v391 = vunpack.c.0.s8 %v390
      %v392 = vlaneseq
      %v393 = vshrl.u32 %v392, 7
      %v394 = vsub.s32 %v391, %v393
      %v395 = vrot.slane %v379, %v394
      %v397 = vunpack.c.l.s4 1966171168
      %v398 = vunpack.c.0.s8 %v397
      %v399 = vlaneseq
      %v400 = vshrl.u32 %v399, 7
      %v401 = vsub.s32 %v398, %v400
      %v402 = vrot.slane %v380, %v401
      %v404 = vunpack.c.l.s4 1966171168
      %v405 = vunpack.c.0.s8 %v404
      %v406 = vlaneseq
      %v407 = vshrl.u32 %v406, 7
      %v408 = vsub.s32 %v405, %v407
      %v409 = vrot.slane %v381, %v408
      %v410 = vcombine.high %v388, %v388
      %v411 = vcombine.high %v395, %v395
      %v412 = vcombine.high %v402, %v402
      %v413 = vcombine.high %v409, %v409
      %v414 = vlaneseq
      %v415 = vshrl.u32 %v414, 7
      %v416 = vsub.s32 0, %v415
      %v417 = vrot.slane %v388, %v416
      %v418 = vlaneseq
      %v419 = vshrl.u32 %v418, 7
      %v420 = vsub.s32 0, %v419
      %v421 = vrot.slane %v402, %v420
      %v422 = vlaneseq
      %v423 = vshrl.u32 %v422, 7
      %v424 = vsub.s32 0, %v423
      %v425 = vrot.slane %v410, %v424
      %v426 = vlaneseq
      %v427 = vshrl.u32 %v426, 7
      %v428 = vsub.s32 0, %v427
      %v429 = vrot.slane %v412, %v428
      %v430 = vlaneseq
      %v431 = vshrl.u32 %v430, 7
      %v432 = vsub.s32 0, %v431
      %v433 = vrot.slane %v395, %v432
      %v434 = vlaneseq
      %v435 = vshrl.u32 %v434, 7
      %v436 = vsub.s32 0, %v435
      %v437 = vrot.slane %v409, %v436
      %v438 = vlaneseq
      %v439 = vshrl.u32 %v438, 7
      %v440 = vsub.s32 0, %v439
      %v441 = vrot.slane %v411, %v440
      %v442 = vlaneseq
      %v443 = vshrl.u32 %v442, 7
      %v444 = vsub.s32 0, %v443
      %v445 = vrot.slane %v413, %v444
      %v454 = vmul.f32 %v246, %v417
      %v455 = vmul.f32 %v247, %v417
      %v456 = vmul.f32 %v248, %v417
      %v457 = vmul.f32 %v249, %v417
      %v458 = vmul.f32 %v250, %v417
      %v459 = vmul.f32 %v251, %v421
      %v460 = vmul.f32 %v252, %v421
      %v461 = vmul.f32 %v253, %v421
      %v462 = vmul.f32 %v254, %v421
      %v463 = vmul.f32 %v255, %v421
      %v464 = vmul.f32 %v256, %v425
      %v465 = vmul.f32 %v257, %v425
      %v466 = vmul.f32 %v258, %v425
      %v467 = vmul.f32 %v259, %v425
      %v468 = vmul.f32 %v260, %v425
      %v469 = vmul.f32 %v261, %v429
      %v470 = vmul.f32 %v262, %v429
      %v471 = vmul.f32 %v263, %v429
      %v472 = vmul.f32 %v264, %v429
      %v473 = vmul.f32 %v265, %v429
      %v474 = vmul.f32 %v266, %v433
      %v475 = vmul.f32 %v267, %v433
      %v476 = vmul.f32 %v268, %v433
      %v477 = vmul.f32 %v269, %v433
      %v478 = vmul.f32 %v270, %v433
      %v479 = vmul.f32 %v271, %v437
      %v480 = vmul.f32 %v272, %v437
      %v481 = vmul.f32 %v273, %v437
      %v482 = vmul.f32 %v274, %v437
      %v483 = vmul.f32 %v275, %v437
      %v484 = vmul.f32 %v276, %v441
      %v485 = vmul.f32 %v277, %v441
      %v486 = vmul.f32 %v278, %v441
      %v487 = vmul.f32 %v279, %v441
      %v488 = vmul.f32 %v280, %v441
      %v489 = vmul.f32 %v281, %v445
      %v490 = vmul.f32 %v282, %v445
      %v491 = vmul.f32 %v283, %v445
      %v492 = vmul.f32 %v284, %v445
      %v493 = vmul.f32 %v285, %v445
      %vm494 = vcmask 523264
      %v495 = vsel %vm494, %v454, 0.0
      %496 = vadd.xlane.f32.xlu0 %v495
      %v497 = vpop.xlane.xlu0 %496
      %v498 = vsel %vm494, %v455, 0.0
      %499 = vadd.xlane.f32.xlu0 %v498
      %v500 = vpop.xlane.xlu0 %499
      %v501 = vsel %vm494, %v456, 0.0
      %502 = vadd.xlane.f32.xlu0 %v501
      %v503 = vpop.xlane.xlu0 %502
      %v504 = vsel %vm494, %v457, 0.0
      %505 = vadd.xlane.f32.xlu0 %v504
      %v506 = vpop.xlane.xlu0 %505
      %vm507 = vcmask 519168
      %v508 = vsel %vm507, %v458, 0.0
      %509 = vadd.xlane.f32.xlu0 %v508
      %v510 = vpop.xlane.xlu0 %509
      %v511 = vsel %vm494, %v459, 0.0
      %512 = vadd.xlane.f32.xlu0 %v511
      %v513 = vpop.xlane.xlu0 %512
      %v514 = vsel %vm494, %v460, 0.0
      %515 = vadd.xlane.f32.xlu0 %v514
      %v516 = vpop.xlane.xlu0 %515
      %v517 = vsel %vm494, %v461, 0.0
      %518 = vadd.xlane.f32.xlu0 %v517
      %v519 = vpop.xlane.xlu0 %518
      %v520 = vsel %vm494, %v462, 0.0
      %521 = vadd.xlane.f32.xlu0 %v520
      %v522 = vpop.xlane.xlu0 %521
      %v523 = vsel %vm507, %v463, 0.0
      %524 = vadd.xlane.f32.xlu0 %v523
      %v525 = vpop.xlane.xlu0 %524
      %v526 = vsel %vm494, %v464, 0.0
      %527 = vadd.xlane.f32.xlu0 %v526
      %v528 = vpop.xlane.xlu0 %527
      %v529 = vsel %vm494, %v465, 0.0
      %530 = vadd.xlane.f32.xlu0 %v529
      %v531 = vpop.xlane.xlu0 %530
      %v532 = vsel %vm494, %v466, 0.0
      %533 = vadd.xlane.f32.xlu0 %v532
      %v534 = vpop.xlane.xlu0 %533
      %v535 = vsel %vm494, %v467, 0.0
      %536 = vadd.xlane.f32.xlu0 %v535
      %v537 = vpop.xlane.xlu0 %536
      %v538 = vsel %vm507, %v468, 0.0
      %539 = vadd.xlane.f32.xlu0 %v538
      %v540 = vpop.xlane.xlu0 %539
      %v541 = vsel %vm494, %v469, 0.0
      %542 = vadd.xlane.f32.xlu0 %v541
      %v543 = vpop.xlane.xlu0 %542
      %v544 = vsel %vm494, %v470, 0.0
      %545 = vadd.xlane.f32.xlu0 %v544
      %v546 = vpop.xlane.xlu0 %545
      %v547 = vsel %vm494, %v471, 0.0
      %548 = vadd.xlane.f32.xlu0 %v547
      %v549 = vpop.xlane.xlu0 %548
      %v550 = vsel %vm494, %v472, 0.0
      %551 = vadd.xlane.f32.xlu0 %v550
      %v552 = vpop.xlane.xlu0 %551
      %v553 = vsel %vm507, %v473, 0.0
      %554 = vadd.xlane.f32.xlu0 %v553
      %v555 = vpop.xlane.xlu0 %554
      %v556 = vsel %vm494, %v474, 0.0
      %557 = vadd.xlane.f32.xlu0 %v556
      %v558 = vpop.xlane.xlu0 %557
      %v559 = vsel %vm494, %v475, 0.0
      %560 = vadd.xlane.f32.xlu0 %v559
      %v561 = vpop.xlane.xlu0 %560
      %v562 = vsel %vm494, %v476, 0.0
      %563 = vadd.xlane.f32.xlu0 %v562
      %v564 = vpop.xlane.xlu0 %563
      %v565 = vsel %vm494, %v477, 0.0
      %566 = vadd.xlane.f32.xlu0 %v565
      %v567 = vpop.xlane.xlu0 %566
      %v568 = vsel %vm507, %v478, 0.0
      %569 = vadd.xlane.f32.xlu0 %v568
      %v570 = vpop.xlane.xlu0 %569
      %v571 = vsel %vm494, %v479, 0.0
      %572 = vadd.xlane.f32.xlu0 %v571
      %v573 = vpop.xlane.xlu0 %572
      %v574 = vsel %vm494, %v480, 0.0
      %575 = vadd.xlane.f32.xlu0 %v574
      %v576 = vpop.xlane.xlu0 %575
      %v577 = vsel %vm494, %v481, 0.0
      %578 = vadd.xlane.f32.xlu0 %v577
      %v579 = vpop.xlane.xlu0 %578
      %v580 = vsel %vm494, %v482, 0.0
      %581 = vadd.xlane.f32.xlu0 %v580
      %v582 = vpop.xlane.xlu0 %581
      %v583 = vsel %vm507, %v483, 0.0
      %584 = vadd.xlane.f32.xlu0 %v583
      %v585 = vpop.xlane.xlu0 %584
      %v586 = vsel %vm494, %v484, 0.0
      %587 = vadd.xlane.f32.xlu0 %v586
      %v588 = vpop.xlane.xlu0 %587
      %v589 = vsel %vm494, %v485, 0.0
      %590 = vadd.xlane.f32.xlu0 %v589
      %v591 = vpop.xlane.xlu0 %590
      %v592 = vsel %vm494, %v486, 0.0
      %593 = vadd.xlane.f32.xlu0 %v592
      %v594 = vpop.xlane.xlu0 %593
      %v595 = vsel %vm494, %v487, 0.0
      %596 = vadd.xlane.f32.xlu0 %v595
      %v597 = vpop.xlane.xlu0 %596
      %v598 = vsel %vm507, %v488, 0.0
      %599 = vadd.xlane.f32.xlu0 %v598
      %v600 = vpop.xlane.xlu0 %599
      %v601 = vsel %vm494, %v489, 0.0
      %602 = vadd.xlane.f32.xlu0 %v601
      %v603 = vpop.xlane.xlu0 %602
      %v604 = vsel %vm494, %v490, 0.0
      %605 = vadd.xlane.f32.xlu0 %v604
      %v606 = vpop.xlane.xlu0 %605
      %v607 = vsel %vm494, %v491, 0.0
      %608 = vadd.xlane.f32.xlu0 %v607
      %v609 = vpop.xlane.xlu0 %608
      %v610 = vsel %vm494, %v492, 0.0
      %611 = vadd.xlane.f32.xlu0 %v610
      %v612 = vpop.xlane.xlu0 %611
      %v613 = vsel %vm507, %v493, 0.0
      %614 = vadd.xlane.f32.xlu0 %v613
      %v615 = vpop.xlane.xlu0 %614
      %v656 = vlaneseq
      %v657 = vand.u32 %v656, 127
      %v658 = vlaneseq
      %v659 = vshrl.u32 %v658, 7
      %v660 = vsub.s32 %v657, %v659
      %v661 = vrot.slane %v497, %v660
      %v662 = vadd.s32 %v657, 4294967288
      %v663 = vlaneseq
      %v664 = vshrl.u32 %v663, 7
      %v665 = vsub.s32 %v662, %v664
      %v666 = vrot.slane %v500, %v665
      %vm667 = vcmask 130112
      %v668 = vsel %vm667, %v666, %v661
      %v669 = vadd.s32 %v657, 4294967280
      %v670 = vlaneseq
      %v671 = vshrl.u32 %v670, 7
      %v672 = vsub.s32 %v669, %v671
      %v673 = vrot.slane %v503, %v672
      %vm674 = vcmask 195712
      %v675 = vsel %vm674, %v673, %v668
      %v676 = vadd.s32 %v657, 4294967272
      %v677 = vlaneseq
      %v678 = vshrl.u32 %v677, 7
      %v679 = vsub.s32 %v676, %v678
      %v680 = vrot.slane %v506, %v679
      %vm681 = vcmask 261312
      %v682 = vsel %vm681, %v680, %v675
      %v683 = vadd.s32 %v657, 4294967264
      %v684 = vlaneseq
      %v685 = vshrl.u32 %v684, 7
      %v686 = vsub.s32 %v683, %v685
      %v687 = vrot.slane %v510, %v686
      %vm688 = vcmask 326912
      %v689 = vsel %vm688, %v687, %v682
      %v690 = vlaneseq
      %v691 = vshrl.u32 %v690, 7
      %v692 = vsub.s32 %v657, %v691
      %v693 = vrot.slane %v513, %v692
      %v694 = vlaneseq
      %v695 = vshrl.u32 %v694, 7
      %v696 = vsub.s32 %v662, %v695
      %v697 = vrot.slane %v516, %v696
      %v698 = vsel %vm667, %v697, %v693
      %v699 = vlaneseq
      %v700 = vshrl.u32 %v699, 7
      %v701 = vsub.s32 %v669, %v700
      %v702 = vrot.slane %v519, %v701
      %v703 = vsel %vm674, %v702, %v698
      %v704 = vlaneseq
      %v705 = vshrl.u32 %v704, 7
      %v706 = vsub.s32 %v676, %v705
      %v707 = vrot.slane %v522, %v706
      %v708 = vsel %vm681, %v707, %v703
      %v709 = vlaneseq
      %v710 = vshrl.u32 %v709, 7
      %v711 = vsub.s32 %v683, %v710
      %v712 = vrot.slane %v525, %v711
      %v713 = vsel %vm688, %v712, %v708
      %v714 = vlaneseq
      %v715 = vshrl.u32 %v714, 7
      %v716 = vsub.s32 %v657, %v715
      %v717 = vrot.slane %v528, %v716
      %v718 = vlaneseq
      %v719 = vshrl.u32 %v718, 7
      %v720 = vsub.s32 %v662, %v719
      %v721 = vrot.slane %v531, %v720
      %v722 = vsel %vm667, %v721, %v717
      %v723 = vlaneseq
      %v724 = vshrl.u32 %v723, 7
      %v725 = vsub.s32 %v669, %v724
      %v726 = vrot.slane %v534, %v725
      %v727 = vsel %vm674, %v726, %v722
      %v728 = vlaneseq
      %v729 = vshrl.u32 %v728, 7
      %v730 = vsub.s32 %v676, %v729
      %v731 = vrot.slane %v537, %v730
      %v732 = vsel %vm681, %v731, %v727
      %v733 = vlaneseq
      %v734 = vshrl.u32 %v733, 7
      %v735 = vsub.s32 %v683, %v734
      %v736 = vrot.slane %v540, %v735
      %v737 = vsel %vm688, %v736, %v732
      %v738 = vlaneseq
      %v739 = vshrl.u32 %v738, 7
      %v740 = vsub.s32 %v657, %v739
      %v741 = vrot.slane %v543, %v740
      %v742 = vlaneseq
      %v743 = vshrl.u32 %v742, 7
      %v744 = vsub.s32 %v662, %v743
      %v745 = vrot.slane %v546, %v744
      %v746 = vsel %vm667, %v745, %v741
      %v747 = vlaneseq
      %v748 = vshrl.u32 %v747, 7
      %v749 = vsub.s32 %v669, %v748
      %v750 = vrot.slane %v549, %v749
      %v751 = vsel %vm674, %v750, %v746
      %v752 = vlaneseq
      %v753 = vshrl.u32 %v752, 7
      %v754 = vsub.s32 %v676, %v753
      %v755 = vrot.slane %v552, %v754
      %v756 = vsel %vm681, %v755, %v751
      %v757 = vlaneseq
      %v758 = vshrl.u32 %v757, 7
      %v759 = vsub.s32 %v683, %v758
      %v760 = vrot.slane %v555, %v759
      %v761 = vsel %vm688, %v760, %v756
      %v762 = vlaneseq
      %v763 = vshrl.u32 %v762, 7
      %v764 = vsub.s32 %v657, %v763
      %v765 = vrot.slane %v558, %v764
      %v766 = vlaneseq
      %v767 = vshrl.u32 %v766, 7
      %v768 = vsub.s32 %v662, %v767
      %v769 = vrot.slane %v561, %v768
      %v770 = vsel %vm667, %v769, %v765
      %v771 = vlaneseq
      %v772 = vshrl.u32 %v771, 7
      %v773 = vsub.s32 %v669, %v772
      %v774 = vrot.slane %v564, %v773
      %v775 = vsel %vm674, %v774, %v770
      %v776 = vlaneseq
      %v777 = vshrl.u32 %v776, 7
      %v778 = vsub.s32 %v676, %v777
      %v779 = vrot.slane %v567, %v778
      %v780 = vsel %vm681, %v779, %v775
      %v781 = vlaneseq
      %v782 = vshrl.u32 %v781, 7
      %v783 = vsub.s32 %v683, %v782
      %v784 = vrot.slane %v570, %v783
      %v785 = vsel %vm688, %v784, %v780
      %v786 = vlaneseq
      %v787 = vshrl.u32 %v786, 7
      %v788 = vsub.s32 %v657, %v787
      %v789 = vrot.slane %v573, %v788
      %v790 = vlaneseq
      %v791 = vshrl.u32 %v790, 7
      %v792 = vsub.s32 %v662, %v791
      %v793 = vrot.slane %v576, %v792
      %v794 = vsel %vm667, %v793, %v789
      %v795 = vlaneseq
      %v796 = vshrl.u32 %v795, 7
      %v797 = vsub.s32 %v669, %v796
      %v798 = vrot.slane %v579, %v797
      %v799 = vsel %vm674, %v798, %v794
      %v800 = vlaneseq
      %v801 = vshrl.u32 %v800, 7
      %v802 = vsub.s32 %v676, %v801
      %v803 = vrot.slane %v582, %v802
      %v804 = vsel %vm681, %v803, %v799
      %v805 = vlaneseq
      %v806 = vshrl.u32 %v805, 7
      %v807 = vsub.s32 %v683, %v806
      %v808 = vrot.slane %v585, %v807
      %v809 = vsel %vm688, %v808, %v804
      %v810 = vlaneseq
      %v811 = vshrl.u32 %v810, 7
      %v812 = vsub.s32 %v657, %v811
      %v813 = vrot.slane %v588, %v812
      %v814 = vlaneseq
      %v815 = vshrl.u32 %v814, 7
      %v816 = vsub.s32 %v662, %v815
      %v817 = vrot.slane %v591, %v816
      %v818 = vsel %vm667, %v817, %v813
      %v819 = vlaneseq
      %v820 = vshrl.u32 %v819, 7
      %v821 = vsub.s32 %v669, %v820
      %v822 = vrot.slane %v594, %v821
      %v823 = vsel %vm674, %v822, %v818
      %v824 = vlaneseq
      %v825 = vshrl.u32 %v824, 7
      %v826 = vsub.s32 %v676, %v825
      %v827 = vrot.slane %v597, %v826
      %v828 = vsel %vm681, %v827, %v823
      %v829 = vlaneseq
      %v830 = vshrl.u32 %v829, 7
      %v831 = vsub.s32 %v683, %v830
      %v832 = vrot.slane %v600, %v831
      %v833 = vsel %vm688, %v832, %v828
      %v834 = vlaneseq
      %v835 = vshrl.u32 %v834, 7
      %v836 = vsub.s32 %v657, %v835
      %v837 = vrot.slane %v603, %v836
      %v838 = vlaneseq
      %v839 = vshrl.u32 %v838, 7
      %v840 = vsub.s32 %v662, %v839
      %v841 = vrot.slane %v606, %v840
      %v842 = vsel %vm667, %v841, %v837
      %v843 = vlaneseq
      %v844 = vshrl.u32 %v843, 7
      %v845 = vsub.s32 %v669, %v844
      %v846 = vrot.slane %v609, %v845
      %v847 = vsel %vm674, %v846, %v842
      %v848 = vlaneseq
      %v849 = vshrl.u32 %v848, 7
      %v850 = vsub.s32 %v676, %v849
      %v851 = vrot.slane %v612, %v850
      %v852 = vsel %vm681, %v851, %v847
      %v853 = vlaneseq
      %v854 = vshrl.u32 %v853, 7
      %v855 = vsub.s32 %v683, %v854
      %v856 = vrot.slane %v615, %v855
      %v857 = vsel %vm688, %v856, %v852
      %vm858 = vcmask 1041409
      %v859 = vsel %vm858, %v713, %v689
      %vm860 = vcmask 1042434
      %v861 = vsel %vm860, %v737, %v859
      %vm862 = vcmask 1043459
      %v863 = vsel %vm862, %v761, %v861
      %vm864 = vcmask 1044484
      %v865 = vsel %vm864, %v785, %v863
      %vm866 = vcmask 1045509
      %v867 = vsel %vm866, %v809, %v865
      %vm868 = vcmask 1046534
      %v869 = vsel %vm868, %v833, %v867
      %vm870 = vcmask 1047559
      %v871 = vsel %vm870, %v857, %v869
      %vm873 = vcmask 293888
      %v874 = vsel %vm873, %v871, -inf
      %875 = vmax.xlane.f32.xlu0 %v874
      %v876 = vpop.xlane.xlu0 %875
      %v878 = vlaneseq
      %v879 = vshrl.u32 %v878, 7
      %v880 = vsub.s32 0, %v879
      %v881 = vrot.slane %v876, %v880
      %v882 = vlaneseq
      %v883 = vshrl.u32 %v882, 7
      %v884 = vsub.s32 1, %v883
      %v885 = vrot.slane %v876, %v884
      %v886 = vlaneseq
      %v887 = vshrl.u32 %v886, 7
      %v888 = vsub.s32 2, %v887
      %v889 = vrot.slane %v876, %v888
      %v890 = vlaneseq
      %v891 = vshrl.u32 %v890, 7
      %v892 = vsub.s32 3, %v891
      %v893 = vrot.slane %v876, %v892
      %v894 = vlaneseq
      %v895 = vshrl.u32 %v894, 7
      %v896 = vsub.s32 4, %v895
      %v897 = vrot.slane %v876, %v896
      %v898 = vlaneseq
      %v899 = vshrl.u32 %v898, 7
      %v900 = vsub.s32 5, %v899
      %v901 = vrot.slane %v876, %v900
      %v902 = vlaneseq
      %v903 = vshrl.u32 %v902, 7
      %v904 = vsub.s32 6, %v903
      %v905 = vrot.slane %v876, %v904
      %v906 = vlaneseq
      %v907 = vshrl.u32 %v906, 7
      %v908 = vsub.s32 7, %v907
      %v909 = vrot.slane %v876, %v908
      %v918 = vsub.f32 %v497, %v881
      %v919 = vsub.f32 %v500, %v881
      %v920 = vsub.f32 %v503, %v881
      %v921 = vsub.f32 %v506, %v881
      %v922 = vsub.f32 %v510, %v881
      %v923 = vsub.f32 %v513, %v885
      %v924 = vsub.f32 %v516, %v885
      %v925 = vsub.f32 %v519, %v885
      %v926 = vsub.f32 %v522, %v885
      %v927 = vsub.f32 %v525, %v885
      %v928 = vsub.f32 %v528, %v889
      %v929 = vsub.f32 %v531, %v889
      %v930 = vsub.f32 %v534, %v889
      %v931 = vsub.f32 %v537, %v889
      %v932 = vsub.f32 %v540, %v889
      %v933 = vsub.f32 %v543, %v893
      %v934 = vsub.f32 %v546, %v893
      %v935 = vsub.f32 %v549, %v893
      %v936 = vsub.f32 %v552, %v893
      %v937 = vsub.f32 %v555, %v893
      %v938 = vsub.f32 %v558, %v897
      %v939 = vsub.f32 %v561, %v897
      %v940 = vsub.f32 %v564, %v897
      %v941 = vsub.f32 %v567, %v897
      %v942 = vsub.f32 %v570, %v897
      %v943 = vsub.f32 %v573, %v901
      %v944 = vsub.f32 %v576, %v901
      %v945 = vsub.f32 %v579, %v901
      %v946 = vsub.f32 %v582, %v901
      %v947 = vsub.f32 %v585, %v901
      %v948 = vsub.f32 %v588, %v905
      %v949 = vsub.f32 %v591, %v905
      %v950 = vsub.f32 %v594, %v905
      %v951 = vsub.f32 %v597, %v905
      %v952 = vsub.f32 %v600, %v905
      %v953 = vsub.f32 %v603, %v909
      %v954 = vsub.f32 %v606, %v909
      %v955 = vsub.f32 %v609, %v909
      %v956 = vsub.f32 %v612, %v909
      %v957 = vsub.f32 %v615, %v909
      %v958 = vmul.f32 %v918, 1.442695
      %v959 = vpow.pop %v958
      %v960 = vmul.f32 %v919, 1.442695
      %v961 = vpow.pop %v960
      %v962 = vmul.f32 %v920, 1.442695
      %v963 = vpow.pop %v962
      %v964 = vmul.f32 %v921, 1.442695
      %v965 = vpow.pop %v964
      %v966 = vmul.f32 %v922, 1.442695
      %v967 = vpow.pop %v966
      %v968 = vmul.f32 %v923, 1.442695
      %v969 = vpow.pop %v968
      %v970 = vmul.f32 %v924, 1.442695
      %v971 = vpow.pop %v970
      %v972 = vmul.f32 %v925, 1.442695
      %v973 = vpow.pop %v972
      %v974 = vmul.f32 %v926, 1.442695
      %v975 = vpow.pop %v974
      %v976 = vmul.f32 %v927, 1.442695
      %v977 = vpow.pop %v976
      %v978 = vmul.f32 %v928, 1.442695
      %v979 = vpow.pop %v978
      %v980 = vmul.f32 %v929, 1.442695
      %v981 = vpow.pop %v980
      %v982 = vmul.f32 %v930, 1.442695
      %v983 = vpow.pop %v982
      %v984 = vmul.f32 %v931, 1.442695
      %v985 = vpow.pop %v984
      %v986 = vmul.f32 %v932, 1.442695
      %v987 = vpow.pop %v986
      %v988 = vmul.f32 %v933, 1.442695
      %v989 = vpow.pop %v988
      %v990 = vmul.f32 %v934, 1.442695
      %v991 = vpow.pop %v990
      %v992 = vmul.f32 %v935, 1.442695
      %v993 = vpow.pop %v992
      %v994 = vmul.f32 %v936, 1.442695
      %v995 = vpow.pop %v994
      %v996 = vmul.f32 %v937, 1.442695
      %v997 = vpow.pop %v996
      %v998 = vmul.f32 %v938, 1.442695
      %v999 = vpow.pop %v998
      %v1000 = vmul.f32 %v939, 1.442695
      %v1001 = vpow.pop %v1000
      %v1002 = vmul.f32 %v940, 1.442695
      %v1003 = vpow.pop %v1002
      %v1004 = vmul.f32 %v941, 1.442695
      %v1005 = vpow.pop %v1004
      %v1006 = vmul.f32 %v942, 1.442695
      %v1007 = vpow.pop %v1006
      %v1008 = vmul.f32 %v943, 1.442695
      %v1009 = vpow.pop %v1008
      %v1010 = vmul.f32 %v944, 1.442695
      %v1011 = vpow.pop %v1010
      %v1012 = vmul.f32 %v945, 1.442695
      %v1013 = vpow.pop %v1012
      %v1014 = vmul.f32 %v946, 1.442695
      %v1015 = vpow.pop %v1014
      %v1016 = vmul.f32 %v947, 1.442695
      %v1017 = vpow.pop %v1016
      %v1018 = vmul.f32 %v948, 1.442695
      %v1019 = vpow.pop %v1018
      %v1020 = vmul.f32 %v949, 1.442695
      %v1021 = vpow.pop %v1020
      %v1022 = vmul.f32 %v950, 1.442695
      %v1023 = vpow.pop %v1022
      %v1024 = vmul.f32 %v951, 1.442695
      %v1025 = vpow.pop %v1024
      %v1026 = vmul.f32 %v952, 1.442695
      %v1027 = vpow.pop %v1026
      %v1028 = vmul.f32 %v953, 1.442695
      %v1029 = vpow.pop %v1028
      %v1030 = vmul.f32 %v954, 1.442695
      %v1031 = vpow.pop %v1030
      %v1032 = vmul.f32 %v955, 1.442695
      %v1033 = vpow.pop %v1032
      %v1034 = vmul.f32 %v956, 1.442695
      %v1035 = vpow.pop %v1034
      %v1036 = vmul.f32 %v957, 1.442695
      %v1037 = vpow.pop %v1036
      %1078 = vset.pattern.permute.xlu0 0
      %1079 = vperm.xlu0 %1078, %v959
      %v1080 = vpop.permute.xlu0 %1079
      %1081 = vset.pattern.permute.xlu0 0
      %1082 = vperm.xlu0 %1081, %v961
      %v1083 = vpop.permute.xlu0 %1082
      %1084 = vset.pattern.permute.xlu0 0
      %1085 = vperm.xlu0 %1084, %v963
      %v1086 = vpop.permute.xlu0 %1085
      %1087 = vset.pattern.permute.xlu0 0
      %1088 = vperm.xlu0 %1087, %v965
      %v1089 = vpop.permute.xlu0 %1088
      %1090 = vset.pattern.permute.xlu0 0
      %1091 = vperm.xlu0 %1090, %v967
      %v1092 = vpop.permute.xlu0 %1091
      %1093 = vset.pattern.permute.xlu0 0
      %1094 = vperm.xlu0 %1093, %v969
      %v1095 = vpop.permute.xlu0 %1094
      %1096 = vset.pattern.permute.xlu0 0
      %1097 = vperm.xlu0 %1096, %v971
      %v1098 = vpop.permute.xlu0 %1097
      %1099 = vset.pattern.permute.xlu0 0
      %1100 = vperm.xlu0 %1099, %v973
      %v1101 = vpop.permute.xlu0 %1100
      %1102 = vset.pattern.permute.xlu0 0
      %1103 = vperm.xlu0 %1102, %v975
      %v1104 = vpop.permute.xlu0 %1103
      %1105 = vset.pattern.permute.xlu0 0
      %1106 = vperm.xlu0 %1105, %v977
      %v1107 = vpop.permute.xlu0 %1106
      %1108 = vset.pattern.permute.xlu0 0
      %1109 = vperm.xlu0 %1108, %v979
      %v1110 = vpop.permute.xlu0 %1109
      %1111 = vset.pattern.permute.xlu0 0
      %1112 = vperm.xlu0 %1111, %v981
      %v1113 = vpop.permute.xlu0 %1112
      %1114 = vset.pattern.permute.xlu0 0
      %1115 = vperm.xlu0 %1114, %v983
      %v1116 = vpop.permute.xlu0 %1115
      %1117 = vset.pattern.permute.xlu0 0
      %1118 = vperm.xlu0 %1117, %v985
      %v1119 = vpop.permute.xlu0 %1118
      %1120 = vset.pattern.permute.xlu0 0
      %1121 = vperm.xlu0 %1120, %v987
      %v1122 = vpop.permute.xlu0 %1121
      %1123 = vset.pattern.permute.xlu0 0
      %1124 = vperm.xlu0 %1123, %v989
      %v1125 = vpop.permute.xlu0 %1124
      %1126 = vset.pattern.permute.xlu0 0
      %1127 = vperm.xlu0 %1126, %v991
      %v1128 = vpop.permute.xlu0 %1127
      %1129 = vset.pattern.permute.xlu0 0
      %1130 = vperm.xlu0 %1129, %v993
      %v1131 = vpop.permute.xlu0 %1130
      %1132 = vset.pattern.permute.xlu0 0
      %1133 = vperm.xlu0 %1132, %v995
      %v1134 = vpop.permute.xlu0 %1133
      %1135 = vset.pattern.permute.xlu0 0
      %1136 = vperm.xlu0 %1135, %v997
      %v1137 = vpop.permute.xlu0 %1136
      %1138 = vset.pattern.permute.xlu0 0
      %1139 = vperm.xlu0 %1138, %v999
      %v1140 = vpop.permute.xlu0 %1139
      %1141 = vset.pattern.permute.xlu0 0
      %1142 = vperm.xlu0 %1141, %v1001
      %v1143 = vpop.permute.xlu0 %1142
      %1144 = vset.pattern.permute.xlu0 0
      %1145 = vperm.xlu0 %1144, %v1003
      %v1146 = vpop.permute.xlu0 %1145
      %1147 = vset.pattern.permute.xlu0 0
      %1148 = vperm.xlu0 %1147, %v1005
      %v1149 = vpop.permute.xlu0 %1148
      %1150 = vset.pattern.permute.xlu0 0
      %1151 = vperm.xlu0 %1150, %v1007
      %v1152 = vpop.permute.xlu0 %1151
      %1153 = vset.pattern.permute.xlu0 0
      %1154 = vperm.xlu0 %1153, %v1009
      %v1155 = vpop.permute.xlu0 %1154
      %1156 = vset.pattern.permute.xlu0 0
      %1157 = vperm.xlu0 %1156, %v1011
      %v1158 = vpop.permute.xlu0 %1157
      %1159 = vset.pattern.permute.xlu0 0
      %1160 = vperm.xlu0 %1159, %v1013
      %v1161 = vpop.permute.xlu0 %1160
      %1162 = vset.pattern.permute.xlu0 0
      %1163 = vperm.xlu0 %1162, %v1015
      %v1164 = vpop.permute.xlu0 %1163
      %1165 = vset.pattern.permute.xlu0 0
      %1166 = vperm.xlu0 %1165, %v1017
      %v1167 = vpop.permute.xlu0 %1166
      %1168 = vset.pattern.permute.xlu0 0
      %1169 = vperm.xlu0 %1168, %v1019
      %v1170 = vpop.permute.xlu0 %1169
      %1171 = vset.pattern.permute.xlu0 0
      %1172 = vperm.xlu0 %1171, %v1021
      %v1173 = vpop.permute.xlu0 %1172
      %1174 = vset.pattern.permute.xlu0 0
      %1175 = vperm.xlu0 %1174, %v1023
      %v1176 = vpop.permute.xlu0 %1175
      %1177 = vset.pattern.permute.xlu0 0
      %1178 = vperm.xlu0 %1177, %v1025
      %v1179 = vpop.permute.xlu0 %1178
      %1180 = vset.pattern.permute.xlu0 0
      %1181 = vperm.xlu0 %1180, %v1027
      %v1182 = vpop.permute.xlu0 %1181
      %1183 = vset.pattern.permute.xlu0 0
      %1184 = vperm.xlu0 %1183, %v1029
      %v1185 = vpop.permute.xlu0 %1184
      %1186 = vset.pattern.permute.xlu0 0
      %1187 = vperm.xlu0 %1186, %v1031
      %v1188 = vpop.permute.xlu0 %1187
      %1189 = vset.pattern.permute.xlu0 0
      %1190 = vperm.xlu0 %1189, %v1033
      %v1191 = vpop.permute.xlu0 %1190
      %1192 = vset.pattern.permute.xlu0 0
      %1193 = vperm.xlu0 %1192, %v1035
      %v1194 = vpop.permute.xlu0 %1193
      %1195 = vset.pattern.permute.xlu0 0
      %1196 = vperm.xlu0 %1195, %v1037
      %v1197 = vpop.permute.xlu0 %1196
      %v1198 = vlaneseq
      %v1199 = vshrl.u32 %v1198, 7
      %v1200 = vsub.s32 %v657, %v1199
      %v1201 = vrot.slane %v1080, %v1200
      %v1202 = vlaneseq
      %v1203 = vshrl.u32 %v1202, 7
      %v1204 = vsub.s32 %v662, %v1203
      %v1205 = vrot.slane %v1083, %v1204
      %v1206 = vsel %vm667, %v1205, %v1201
      %v1207 = vlaneseq
      %v1208 = vshrl.u32 %v1207, 7
      %v1209 = vsub.s32 %v669, %v1208
      %v1210 = vrot.slane %v1086, %v1209
      %v1211 = vsel %vm674, %v1210, %v1206
      %v1212 = vlaneseq
      %v1213 = vshrl.u32 %v1212, 7
      %v1214 = vsub.s32 %v676, %v1213
      %v1215 = vrot.slane %v1089, %v1214
      %v1216 = vsel %vm681, %v1215, %v1211
      %v1217 = vlaneseq
      %v1218 = vshrl.u32 %v1217, 7
      %v1219 = vsub.s32 %v683, %v1218
      %v1220 = vrot.slane %v1092, %v1219
      %v1221 = vsel %vm688, %v1220, %v1216
      %v1222 = vlaneseq
      %v1223 = vshrl.u32 %v1222, 7
      %v1224 = vsub.s32 %v657, %v1223
      %v1225 = vrot.slane %v1095, %v1224
      %v1226 = vlaneseq
      %v1227 = vshrl.u32 %v1226, 7
      %v1228 = vsub.s32 %v662, %v1227
      %v1229 = vrot.slane %v1098, %v1228
      %v1230 = vsel %vm667, %v1229, %v1225
      %v1231 = vlaneseq
      %v1232 = vshrl.u32 %v1231, 7
      %v1233 = vsub.s32 %v669, %v1232
      %v1234 = vrot.slane %v1101, %v1233
      %v1235 = vsel %vm674, %v1234, %v1230
      %v1236 = vlaneseq
      %v1237 = vshrl.u32 %v1236, 7
      %v1238 = vsub.s32 %v676, %v1237
      %v1239 = vrot.slane %v1104, %v1238
      %v1240 = vsel %vm681, %v1239, %v1235
      %v1241 = vlaneseq
      %v1242 = vshrl.u32 %v1241, 7
      %v1243 = vsub.s32 %v683, %v1242
      %v1244 = vrot.slane %v1107, %v1243
      %v1245 = vsel %vm688, %v1244, %v1240
      %v1246 = vlaneseq
      %v1247 = vshrl.u32 %v1246, 7
      %v1248 = vsub.s32 %v657, %v1247
      %v1249 = vrot.slane %v1110, %v1248
      %v1250 = vlaneseq
      %v1251 = vshrl.u32 %v1250, 7
      %v1252 = vsub.s32 %v662, %v1251
      %v1253 = vrot.slane %v1113, %v1252
      %v1254 = vsel %vm667, %v1253, %v1249
      %v1255 = vlaneseq
      %v1256 = vshrl.u32 %v1255, 7
      %v1257 = vsub.s32 %v669, %v1256
      %v1258 = vrot.slane %v1116, %v1257
      %v1259 = vsel %vm674, %v1258, %v1254
      %v1260 = vlaneseq
      %v1261 = vshrl.u32 %v1260, 7
      %v1262 = vsub.s32 %v676, %v1261
      %v1263 = vrot.slane %v1119, %v1262
      %v1264 = vsel %vm681, %v1263, %v1259
      %v1265 = vlaneseq
      %v1266 = vshrl.u32 %v1265, 7
      %v1267 = vsub.s32 %v683, %v1266
      %v1268 = vrot.slane %v1122, %v1267
      %v1269 = vsel %vm688, %v1268, %v1264
      %v1270 = vlaneseq
      %v1271 = vshrl.u32 %v1270, 7
      %v1272 = vsub.s32 %v657, %v1271
      %v1273 = vrot.slane %v1125, %v1272
      %v1274 = vlaneseq
      %v1275 = vshrl.u32 %v1274, 7
      %v1276 = vsub.s32 %v662, %v1275
      %v1277 = vrot.slane %v1128, %v1276
      %v1278 = vsel %vm667, %v1277, %v1273
      %v1279 = vlaneseq
      %v1280 = vshrl.u32 %v1279, 7
      %v1281 = vsub.s32 %v669, %v1280
      %v1282 = vrot.slane %v1131, %v1281
      %v1283 = vsel %vm674, %v1282, %v1278
      %v1284 = vlaneseq
      %v1285 = vshrl.u32 %v1284, 7
      %v1286 = vsub.s32 %v676, %v1285
      %v1287 = vrot.slane %v1134, %v1286
      %v1288 = vsel %vm681, %v1287, %v1283
      %v1289 = vlaneseq
      %v1290 = vshrl.u32 %v1289, 7
      %v1291 = vsub.s32 %v683, %v1290
      %v1292 = vrot.slane %v1137, %v1291
      %v1293 = vsel %vm688, %v1292, %v1288
      %v1294 = vlaneseq
      %v1295 = vshrl.u32 %v1294, 7
      %v1296 = vsub.s32 %v657, %v1295
      %v1297 = vrot.slane %v1140, %v1296
      %v1298 = vlaneseq
      %v1299 = vshrl.u32 %v1298, 7
      %v1300 = vsub.s32 %v662, %v1299
      %v1301 = vrot.slane %v1143, %v1300
      %v1302 = vsel %vm667, %v1301, %v1297
      %v1303 = vlaneseq
      %v1304 = vshrl.u32 %v1303, 7
      %v1305 = vsub.s32 %v669, %v1304
      %v1306 = vrot.slane %v1146, %v1305
      %v1307 = vsel %vm674, %v1306, %v1302
      %v1308 = vlaneseq
      %v1309 = vshrl.u32 %v1308, 7
      %v1310 = vsub.s32 %v676, %v1309
      %v1311 = vrot.slane %v1149, %v1310
      %v1312 = vsel %vm681, %v1311, %v1307
      %v1313 = vlaneseq
      %v1314 = vshrl.u32 %v1313, 7
      %v1315 = vsub.s32 %v683, %v1314
      %v1316 = vrot.slane %v1152, %v1315
      %v1317 = vsel %vm688, %v1316, %v1312
      %v1318 = vlaneseq
      %v1319 = vshrl.u32 %v1318, 7
      %v1320 = vsub.s32 %v657, %v1319
      %v1321 = vrot.slane %v1155, %v1320
      %v1322 = vlaneseq
      %v1323 = vshrl.u32 %v1322, 7
      %v1324 = vsub.s32 %v662, %v1323
      %v1325 = vrot.slane %v1158, %v1324
      %v1326 = vsel %vm667, %v1325, %v1321
      %v1327 = vlaneseq
      %v1328 = vshrl.u32 %v1327, 7
      %v1329 = vsub.s32 %v669, %v1328
      %v1330 = vrot.slane %v1161, %v1329
      %v1331 = vsel %vm674, %v1330, %v1326
      %v1332 = vlaneseq
      %v1333 = vshrl.u32 %v1332, 7
      %v1334 = vsub.s32 %v676, %v1333
      %v1335 = vrot.slane %v1164, %v1334
      %v1336 = vsel %vm681, %v1335, %v1331
      %v1337 = vlaneseq
      %v1338 = vshrl.u32 %v1337, 7
      %v1339 = vsub.s32 %v683, %v1338
      %v1340 = vrot.slane %v1167, %v1339
      %v1341 = vsel %vm688, %v1340, %v1336
      %v1342 = vlaneseq
      %v1343 = vshrl.u32 %v1342, 7
      %v1344 = vsub.s32 %v657, %v1343
      %v1345 = vrot.slane %v1170, %v1344
      %v1346 = vlaneseq
      %v1347 = vshrl.u32 %v1346, 7
      %v1348 = vsub.s32 %v662, %v1347
      %v1349 = vrot.slane %v1173, %v1348
      %v1350 = vsel %vm667, %v1349, %v1345
      %v1351 = vlaneseq
      %v1352 = vshrl.u32 %v1351, 7
      %v1353 = vsub.s32 %v669, %v1352
      %v1354 = vrot.slane %v1176, %v1353
      %v1355 = vsel %vm674, %v1354, %v1350
      %v1356 = vlaneseq
      %v1357 = vshrl.u32 %v1356, 7
      %v1358 = vsub.s32 %v676, %v1357
      %v1359 = vrot.slane %v1179, %v1358
      %v1360 = vsel %vm681, %v1359, %v1355
      %v1361 = vlaneseq
      %v1362 = vshrl.u32 %v1361, 7
      %v1363 = vsub.s32 %v683, %v1362
      %v1364 = vrot.slane %v1182, %v1363
      %v1365 = vsel %vm688, %v1364, %v1360
      %v1366 = vlaneseq
      %v1367 = vshrl.u32 %v1366, 7
      %v1368 = vsub.s32 %v657, %v1367
      %v1369 = vrot.slane %v1185, %v1368
      %v1370 = vlaneseq
      %v1371 = vshrl.u32 %v1370, 7
      %v1372 = vsub.s32 %v662, %v1371
      %v1373 = vrot.slane %v1188, %v1372
      %v1374 = vsel %vm667, %v1373, %v1369
      %v1375 = vlaneseq
      %v1376 = vshrl.u32 %v1375, 7
      %v1377 = vsub.s32 %v669, %v1376
      %v1378 = vrot.slane %v1191, %v1377
      %v1379 = vsel %vm674, %v1378, %v1374
      %v1380 = vlaneseq
      %v1381 = vshrl.u32 %v1380, 7
      %v1382 = vsub.s32 %v676, %v1381
      %v1383 = vrot.slane %v1194, %v1382
      %v1384 = vsel %vm681, %v1383, %v1379
      %v1385 = vlaneseq
      %v1386 = vshrl.u32 %v1385, 7
      %v1387 = vsub.s32 %v683, %v1386
      %v1388 = vrot.slane %v1197, %v1387
      %v1389 = vsel %vm688, %v1388, %v1384
      %v1390 = vsel %vm858, %v1245, %v1221
      %v1391 = vsel %vm860, %v1269, %v1390
      %v1392 = vsel %vm862, %v1293, %v1391
      %v1393 = vsel %vm864, %v1317, %v1392
      %v1394 = vsel %vm866, %v1341, %v1393
      %v1395 = vsel %vm868, %v1365, %v1394
      %v1396 = vsel %vm870, %v1389, %v1395
      %v1398 = vsel %vm873, %v1396, 0.0
      %1399 = vadd.xlane.f32.xlu0 %v1398
      %v1400 = vpop.xlane.xlu0 %1399
      %v1401 = vrcp.pop %v1400
      %v1403 = vlaneseq
      %v1404 = vshrl.u32 %v1403, 7
      %v1405 = vsub.s32 0, %v1404
      %v1406 = vrot.slane %v1401, %v1405
      %v1407 = vlaneseq
      %v1408 = vshrl.u32 %v1407, 7
      %v1409 = vsub.s32 1, %v1408
      %v1410 = vrot.slane %v1401, %v1409
      %v1411 = vlaneseq
      %v1412 = vshrl.u32 %v1411, 7
      %v1413 = vsub.s32 2, %v1412
      %v1414 = vrot.slane %v1401, %v1413
      %v1415 = vlaneseq
      %v1416 = vshrl.u32 %v1415, 7
      %v1417 = vsub.s32 3, %v1416
      %v1418 = vrot.slane %v1401, %v1417
      %v1419 = vlaneseq
      %v1420 = vshrl.u32 %v1419, 7
      %v1421 = vsub.s32 4, %v1420
      %v1422 = vrot.slane %v1401, %v1421
      %v1423 = vlaneseq
      %v1424 = vshrl.u32 %v1423, 7
      %v1425 = vsub.s32 5, %v1424
      %v1426 = vrot.slane %v1401, %v1425
      %v1427 = vlaneseq
      %v1428 = vshrl.u32 %v1427, 7
      %v1429 = vsub.s32 6, %v1428
      %v1430 = vrot.slane %v1401, %v1429
      %v1431 = vlaneseq
      %v1432 = vshrl.u32 %v1431, 7
      %v1433 = vsub.s32 7, %v1432
      %v1434 = vrot.slane %v1401, %v1433
      %v1443 = vmul.f32 %v959, %v1406
      %v1444 = vmul.f32 %v961, %v1406
      %v1445 = vmul.f32 %v963, %v1406
      %v1446 = vmul.f32 %v965, %v1406
      %v1447 = vmul.f32 %v967, %v1406
      %v1448 = vmul.f32 %v969, %v1410
      %v1449 = vmul.f32 %v971, %v1410
      %v1450 = vmul.f32 %v973, %v1410
      %v1451 = vmul.f32 %v975, %v1410
      %v1452 = vmul.f32 %v977, %v1410
      %v1453 = vmul.f32 %v979, %v1414
      %v1454 = vmul.f32 %v981, %v1414
      %v1455 = vmul.f32 %v983, %v1414
      %v1456 = vmul.f32 %v985, %v1414
      %v1457 = vmul.f32 %v987, %v1414
      %v1458 = vmul.f32 %v989, %v1418
      %v1459 = vmul.f32 %v991, %v1418
      %v1460 = vmul.f32 %v993, %v1418
      %v1461 = vmul.f32 %v995, %v1418
      %v1462 = vmul.f32 %v997, %v1418
      %v1463 = vmul.f32 %v999, %v1422
      %v1464 = vmul.f32 %v1001, %v1422
      %v1465 = vmul.f32 %v1003, %v1422
      %v1466 = vmul.f32 %v1005, %v1422
      %v1467 = vmul.f32 %v1007, %v1422
      %v1468 = vmul.f32 %v1009, %v1426
      %v1469 = vmul.f32 %v1011, %v1426
      %v1470 = vmul.f32 %v1013, %v1426
      %v1471 = vmul.f32 %v1015, %v1426
      %v1472 = vmul.f32 %v1017, %v1426
      %v1473 = vmul.f32 %v1019, %v1430
      %v1474 = vmul.f32 %v1021, %v1430
      %v1475 = vmul.f32 %v1023, %v1430
      %v1476 = vmul.f32 %v1025, %v1430
      %v1477 = vmul.f32 %v1027, %v1430
      %v1478 = vmul.f32 %v1029, %v1434
      %v1479 = vmul.f32 %v1031, %v1434
      %v1480 = vmul.f32 %v1033, %v1434
      %v1481 = vmul.f32 %v1035, %v1434
      %v1482 = vmul.f32 %v1037, %v1434
      %1484 = vset.pattern.permute.xlu0 0
      %1485 = vperm.xlu0 %1484, %v1443
      %v1486 = vpop.permute.xlu0 %1485
      %1489 = vset.pattern.permute.xlu0 0
      %1490 = vperm.xlu0 %1489, %v1444
      %v1491 = vpop.permute.xlu0 %1490
      %1494 = vset.pattern.permute.xlu0 0
      %1495 = vperm.xlu0 %1494, %v1445
      %v1496 = vpop.permute.xlu0 %1495
      %1499 = vset.pattern.permute.xlu0 0
      %1500 = vperm.xlu0 %1499, %v1446
      %v1501 = vpop.permute.xlu0 %1500
      %1504 = vset.pattern.permute.xlu0 0
      %1505 = vperm.xlu0 %1504, %v1447
      %v1506 = vpop.permute.xlu0 %1505
      %1509 = vset.pattern.permute.xlu0 0
      %1510 = vperm.xlu0 %1509, %v1448
      %v1511 = vpop.permute.xlu0 %1510
      %1514 = vset.pattern.permute.xlu0 0
      %1515 = vperm.xlu0 %1514, %v1449
      %v1516 = vpop.permute.xlu0 %1515
      %1519 = vset.pattern.permute.xlu0 0
      %1520 = vperm.xlu0 %1519, %v1450
      %v1521 = vpop.permute.xlu0 %1520
      %1524 = vset.pattern.permute.xlu0 0
      %1525 = vperm.xlu0 %1524, %v1451
      %v1526 = vpop.permute.xlu0 %1525
      %1529 = vset.pattern.permute.xlu0 0
      %1530 = vperm.xlu0 %1529, %v1452
      %v1531 = vpop.permute.xlu0 %1530
      %1534 = vset.pattern.permute.xlu0 0
      %1535 = vperm.xlu0 %1534, %v1453
      %v1536 = vpop.permute.xlu0 %1535
      %1539 = vset.pattern.permute.xlu0 0
      %1540 = vperm.xlu0 %1539, %v1454
      %v1541 = vpop.permute.xlu0 %1540
      %1544 = vset.pattern.permute.xlu0 0
      %1545 = vperm.xlu0 %1544, %v1455
      %v1546 = vpop.permute.xlu0 %1545
      %1549 = vset.pattern.permute.xlu0 0
      %1550 = vperm.xlu0 %1549, %v1456
      %v1551 = vpop.permute.xlu0 %1550
      %1554 = vset.pattern.permute.xlu0 0
      %1555 = vperm.xlu0 %1554, %v1457
      %v1556 = vpop.permute.xlu0 %1555
      %1559 = vset.pattern.permute.xlu0 0
      %1560 = vperm.xlu0 %1559, %v1458
      %v1561 = vpop.permute.xlu0 %1560
      %1564 = vset.pattern.permute.xlu0 0
      %1565 = vperm.xlu0 %1564, %v1459
      %v1566 = vpop.permute.xlu0 %1565
      %1569 = vset.pattern.permute.xlu0 0
      %1570 = vperm.xlu0 %1569, %v1460
      %v1571 = vpop.permute.xlu0 %1570
      %1574 = vset.pattern.permute.xlu0 0
      %1575 = vperm.xlu0 %1574, %v1461
      %v1576 = vpop.permute.xlu0 %1575
      %1579 = vset.pattern.permute.xlu0 0
      %1580 = vperm.xlu0 %1579, %v1462
      %v1581 = vpop.permute.xlu0 %1580
      %1584 = vset.pattern.permute.xlu0 0
      %1585 = vperm.xlu0 %1584, %v1463
      %v1586 = vpop.permute.xlu0 %1585
      %1589 = vset.pattern.permute.xlu0 0
      %1590 = vperm.xlu0 %1589, %v1464
      %v1591 = vpop.permute.xlu0 %1590
      %1594 = vset.pattern.permute.xlu0 0
      %1595 = vperm.xlu0 %1594, %v1465
      %v1596 = vpop.permute.xlu0 %1595
      %1599 = vset.pattern.permute.xlu0 0
      %1600 = vperm.xlu0 %1599, %v1466
      %v1601 = vpop.permute.xlu0 %1600
      %1604 = vset.pattern.permute.xlu0 0
      %1605 = vperm.xlu0 %1604, %v1467
      %v1606 = vpop.permute.xlu0 %1605
      %1609 = vset.pattern.permute.xlu0 0
      %1610 = vperm.xlu0 %1609, %v1468
      %v1611 = vpop.permute.xlu0 %1610
      %1614 = vset.pattern.permute.xlu0 0
      %1615 = vperm.xlu0 %1614, %v1469
      %v1616 = vpop.permute.xlu0 %1615
      %1619 = vset.pattern.permute.xlu0 0
      %1620 = vperm.xlu0 %1619, %v1470
      %v1621 = vpop.permute.xlu0 %1620
      %1624 = vset.pattern.permute.xlu0 0
      %1625 = vperm.xlu0 %1624, %v1471
      %v1626 = vpop.permute.xlu0 %1625
      %1629 = vset.pattern.permute.xlu0 0
      %1630 = vperm.xlu0 %1629, %v1472
      %v1631 = vpop.permute.xlu0 %1630
      %1634 = vset.pattern.permute.xlu0 0
      %1635 = vperm.xlu0 %1634, %v1473
      %v1636 = vpop.permute.xlu0 %1635
      %1639 = vset.pattern.permute.xlu0 0
      %1640 = vperm.xlu0 %1639, %v1474
      %v1641 = vpop.permute.xlu0 %1640
      %1644 = vset.pattern.permute.xlu0 0
      %1645 = vperm.xlu0 %1644, %v1475
      %v1646 = vpop.permute.xlu0 %1645
      %1649 = vset.pattern.permute.xlu0 0
      %1650 = vperm.xlu0 %1649, %v1476
      %v1651 = vpop.permute.xlu0 %1650
      %1654 = vset.pattern.permute.xlu0 0
      %1655 = vperm.xlu0 %1654, %v1477
      %v1656 = vpop.permute.xlu0 %1655
      %1659 = vset.pattern.permute.xlu0 0
      %1660 = vperm.xlu0 %1659, %v1478
      %v1661 = vpop.permute.xlu0 %1660
      %1664 = vset.pattern.permute.xlu0 0
      %1665 = vperm.xlu0 %1664, %v1479
      %v1666 = vpop.permute.xlu0 %1665
      %1669 = vset.pattern.permute.xlu0 0
      %1670 = vperm.xlu0 %1669, %v1480
      %v1671 = vpop.permute.xlu0 %1670
      %1674 = vset.pattern.permute.xlu0 0
      %1675 = vperm.xlu0 %1674, %v1481
      %v1676 = vpop.permute.xlu0 %1675
      %1679 = vset.pattern.permute.xlu0 0
      %1680 = vperm.xlu0 %1679, %v1482
      %v1681 = vpop.permute.xlu0 %1680
      %v1683 = vmul.f32 %v1486, %v246
      %v1684 = vmul.f32 %v1491, %v247
      %v1685 = vmul.f32 %v1496, %v248
      %v1686 = vmul.f32 %v1501, %v249
      %v1687 = vmul.f32 %v1506, %v250
      %v1688 = vmul.f32 %v1511, %v251
      %v1689 = vmul.f32 %v1516, %v252
      %v1690 = vmul.f32 %v1521, %v253
      %v1691 = vmul.f32 %v1526, %v254
      %v1692 = vmul.f32 %v1531, %v255
      %v1693 = vmul.f32 %v1536, %v256
      %v1694 = vmul.f32 %v1541, %v257
      %v1695 = vmul.f32 %v1546, %v258
      %v1696 = vmul.f32 %v1551, %v259
      %v1697 = vmul.f32 %v1556, %v260
      %v1698 = vmul.f32 %v1561, %v261
      %v1699 = vmul.f32 %v1566, %v262
      %v1700 = vmul.f32 %v1571, %v263
      %v1701 = vmul.f32 %v1576, %v264
      %v1702 = vmul.f32 %v1581, %v265
      %v1703 = vmul.f32 %v1586, %v266
      %v1704 = vmul.f32 %v1591, %v267
      %v1705 = vmul.f32 %v1596, %v268
      %v1706 = vmul.f32 %v1601, %v269
      %v1707 = vmul.f32 %v1606, %v270
      %v1708 = vmul.f32 %v1611, %v271
      %v1709 = vmul.f32 %v1616, %v272
      %v1710 = vmul.f32 %v1621, %v273
      %v1711 = vmul.f32 %v1626, %v274
      %v1712 = vmul.f32 %v1631, %v275
      %v1713 = vmul.f32 %v1636, %v276
      %v1714 = vmul.f32 %v1641, %v277
      %v1715 = vmul.f32 %v1646, %v278
      %v1716 = vmul.f32 %v1651, %v279
      %v1717 = vmul.f32 %v1656, %v280
      %v1718 = vmul.f32 %v1661, %v281
      %v1719 = vmul.f32 %v1666, %v282
      %v1720 = vmul.f32 %v1671, %v283
      %v1721 = vmul.f32 %v1676, %v284
      %v1722 = vmul.f32 %v1681, %v285
      %v1723 = vsel %vm494, %v1683, 0.0
      %v1724 = vsel %vm494, %v1684, 0.0
      %v1725 = vadd.f32 %v1723, %v1724
      %v1726 = vsel %vm494, %v1685, 0.0
      %v1727 = vadd.f32 %v1725, %v1726
      %v1728 = vsel %vm494, %v1686, 0.0
      %v1729 = vadd.f32 %v1727, %v1728
      %v1730 = vsel %vm507, %v1687, 0.0
      %v1731 = vadd.f32 %v1729, %v1730
      %v1732 = vrot.slane %v1731, 4
      %v1733 = vadd.f32 %v1731, %v1732
      %v1734 = vrot.slane %v1733, 2
      %v1735 = vadd.f32 %v1733, %v1734
      %v1736 = vrot.slane %v1735, 1
      %v1737 = vadd.f32 %v1735, %v1736
      %v1738 = vsel %vm494, %v1688, 0.0
      %v1739 = vsel %vm494, %v1689, 0.0
      %v1740 = vadd.f32 %v1738, %v1739
      %v1741 = vsel %vm494, %v1690, 0.0
      %v1742 = vadd.f32 %v1740, %v1741
      %v1743 = vsel %vm494, %v1691, 0.0
      %v1744 = vadd.f32 %v1742, %v1743
      %v1745 = vsel %vm507, %v1692, 0.0
      %v1746 = vadd.f32 %v1744, %v1745
      %v1747 = vrot.slane %v1746, 4
      %v1748 = vadd.f32 %v1746, %v1747
      %v1749 = vrot.slane %v1748, 2
      %v1750 = vadd.f32 %v1748, %v1749
      %v1751 = vrot.slane %v1750, 1
      %v1752 = vadd.f32 %v1750, %v1751
      %v1753 = vsel %vm494, %v1693, 0.0
      %v1754 = vsel %vm494, %v1694, 0.0
      %v1755 = vadd.f32 %v1753, %v1754
      %v1756 = vsel %vm494, %v1695, 0.0
      %v1757 = vadd.f32 %v1755, %v1756
      %v1758 = vsel %vm494, %v1696, 0.0
      %v1759 = vadd.f32 %v1757, %v1758
      %v1760 = vsel %vm507, %v1697, 0.0
      %v1761 = vadd.f32 %v1759, %v1760
      %v1762 = vrot.slane %v1761, 4
      %v1763 = vadd.f32 %v1761, %v1762
      %v1764 = vrot.slane %v1763, 2
      %v1765 = vadd.f32 %v1763, %v1764
      %v1766 = vrot.slane %v1765, 1
      %v1767 = vadd.f32 %v1765, %v1766
      %v1768 = vsel %vm494, %v1698, 0.0
      %v1769 = vsel %vm494, %v1699, 0.0
      %v1770 = vadd.f32 %v1768, %v1769
      %v1771 = vsel %vm494, %v1700, 0.0
      %v1772 = vadd.f32 %v1770, %v1771
      %v1773 = vsel %vm494, %v1701, 0.0
      %v1774 = vadd.f32 %v1772, %v1773
      %v1775 = vsel %vm507, %v1702, 0.0
      %v1776 = vadd.f32 %v1774, %v1775
      %v1777 = vrot.slane %v1776, 4
      %v1778 = vadd.f32 %v1776, %v1777
      %v1779 = vrot.slane %v1778, 2
      %v1780 = vadd.f32 %v1778, %v1779
      %v1781 = vrot.slane %v1780, 1
      %v1782 = vadd.f32 %v1780, %v1781
      %v1783 = vsel %vm494, %v1703, 0.0
      %v1784 = vsel %vm494, %v1704, 0.0
      %v1785 = vadd.f32 %v1783, %v1784
      %v1786 = vsel %vm494, %v1705, 0.0
      %v1787 = vadd.f32 %v1785, %v1786
      %v1788 = vsel %vm494, %v1706, 0.0
      %v1789 = vadd.f32 %v1787, %v1788
      %v1790 = vsel %vm507, %v1707, 0.0
      %v1791 = vadd.f32 %v1789, %v1790
      %v1792 = vrot.slane %v1791, 4
      %v1793 = vadd.f32 %v1791, %v1792
      %v1794 = vrot.slane %v1793, 2
      %v1795 = vadd.f32 %v1793, %v1794
      %v1796 = vrot.slane %v1795, 1
      %v1797 = vadd.f32 %v1795, %v1796
      %v1798 = vsel %vm494, %v1708, 0.0
      %v1799 = vsel %vm494, %v1709, 0.0
      %v1800 = vadd.f32 %v1798, %v1799
      %v1801 = vsel %vm494, %v1710, 0.0
      %v1802 = vadd.f32 %v1800, %v1801
      %v1803 = vsel %vm494, %v1711, 0.0
      %v1804 = vadd.f32 %v1802, %v1803
      %v1805 = vsel %vm507, %v1712, 0.0
      %v1806 = vadd.f32 %v1804, %v1805
      %v1807 = vrot.slane %v1806, 4
      %v1808 = vadd.f32 %v1806, %v1807
      %v1809 = vrot.slane %v1808, 2
      %v1810 = vadd.f32 %v1808, %v1809
      %v1811 = vrot.slane %v1810, 1
      %v1812 = vadd.f32 %v1810, %v1811
      %v1813 = vsel %vm494, %v1713, 0.0
      %v1814 = vsel %vm494, %v1714, 0.0
      %v1815 = vadd.f32 %v1813, %v1814
      %v1816 = vsel %vm494, %v1715, 0.0
      %v1817 = vadd.f32 %v1815, %v1816
      %v1818 = vsel %vm494, %v1716, 0.0
      %v1819 = vadd.f32 %v1817, %v1818
      %v1820 = vsel %vm507, %v1717, 0.0
      %v1821 = vadd.f32 %v1819, %v1820
      %v1822 = vrot.slane %v1821, 4
      %v1823 = vadd.f32 %v1821, %v1822
      %v1824 = vrot.slane %v1823, 2
      %v1825 = vadd.f32 %v1823, %v1824
      %v1826 = vrot.slane %v1825, 1
      %v1827 = vadd.f32 %v1825, %v1826
      %v1828 = vsel %vm494, %v1718, 0.0
      %v1829 = vsel %vm494, %v1719, 0.0
      %v1830 = vadd.f32 %v1828, %v1829
      %v1831 = vsel %vm494, %v1720, 0.0
      %v1832 = vadd.f32 %v1830, %v1831
      %v1833 = vsel %vm494, %v1721, 0.0
      %v1834 = vadd.f32 %v1832, %v1833
      %v1835 = vsel %vm507, %v1722, 0.0
      %v1836 = vadd.f32 %v1834, %v1835
      %v1837 = vrot.slane %v1836, 4
      %v1838 = vadd.f32 %v1836, %v1837
      %v1839 = vrot.slane %v1838, 2
      %v1840 = vadd.f32 %v1838, %v1839
      %v1841 = vrot.slane %v1840, 1
      %v1842 = vadd.f32 %v1840, %v1841
      %v1843 = vld [vmem:[%s3] sm:$0xff]
      %v1844 = vld [vmem:[%s3 + $0x8] sm:$0xff]
      %v1845 = vld [vmem:[%s3 + $0x10] sm:$0xff]
      %v1846 = vld [vmem:[%s3 + $0x18] sm:$0xff]
      %v1847 = vld [vmem:[%s3 + $0x20] sm:$0xff]
      %v1848 = vld [vmem:[%s3 + $0x28] sm:$0xff]
      %v1849 = vld [vmem:[%s3 + $0x30] sm:$0xff]
      %v1850 = vld [vmem:[%s3 + $0x38] sm:$0xff]
      %v1851 = vld [vmem:[%s4] sm:$0xff]
      %v1852 = vld [vmem:[%s4 + $0x8] sm:$0xff]
      %v1853 = vld [vmem:[%s4 + $0x10] sm:$0xff]
      %v1854 = vld [vmem:[%s4 + $0x18] sm:$0xff]
      %1855 = vmatprep.subr.mxu0 0.0
      %1856 = vmatpush1.msra.mxu0 %v1851
      %1857 = vmatprep.subr.mxu0 0.0
      %1858 = vmatpush1.msra.mxu0 %v1852
      %1859 = vmatprep.subr.mxu0 0.0
      %1860 = vmatpush1.msra.mxu0 %v1853
      %1861 = vmatprep.subr.mxu0 0.0
      %1862 = vmatpush1.msra.mxu0 %v1854
      %1863 = vmatprep.subr.mxu0 0.0
      %1864 = vmatpush1.msra.mxu0 0.0
      %1865 = vmatprep.subr.mxu0 0.0
      %1866 = vmatpush1.msra.mxu0 0.0
      %1867 = vmatprep.subr.mxu0 0.0
      %1868 = vmatpush1.msra.mxu0 0.0
      %1869 = vmatprep.subr.mxu0 0.0
      %1870 = vmatpush1.msra.mxu0 0.0
      %1871 = vmatprep.subr.mxu0 0.0
      %1872 = vmatpush1.msra.mxu0 0.0
      %1873 = vmatprep.subr.mxu0 0.0
      %1874 = vmatpush1.msra.mxu0 0.0
      %1875 = vmatprep.subr.mxu0 0.0
      %1876 = vmatpush1.msra.mxu0 0.0
      %1877 = vmatprep.subr.mxu0 0.0
      %1878 = vmatpush1.msra.mxu0 0.0
      %1879 = vmatprep.subr.mxu0 0.0
      %1880 = vmatpush1.msra.mxu0 0.0
      %1881 = vmatprep.subr.mxu0 0.0
      %1882 = vmatpush1.msra.mxu0 0.0
      %1883 = vmatprep.subr.mxu0 0.0
      %1884 = vmatpush1.msra.mxu0 0.0
      %1885 = vmatprep.subr.mxu0 0.0
      %1886 = vmatpush1.msra.mxu0 0.0
      %1887 = vmatprep.subr.mxu0 0.0
      %1888 = vmatpush1.msra.mxu0 0.0
      %1889 = vmatprep.subr.mxu0 0.0
      %1890 = vmatpush1.msra.mxu0 0.0
      %1891 = vmatprep.subr.mxu0 0.0
      %1892 = vmatpush1.msra.mxu0 0.0
      %1893 = vmatprep.subr.mxu0 0.0
      %1894 = vmatpush1.msra.mxu0 0.0
      %1895 = vmatprep.subr.mxu0 0.0
      %1896 = vmatpush1.msra.mxu0 0.0
      %1897 = vmatprep.subr.mxu0 0.0
      %1898 = vmatpush1.msra.mxu0 0.0
      %1899 = vmatprep.subr.mxu0 0.0
      %1900 = vmatpush1.msra.mxu0 0.0
      %1901 = vmatprep.subr.mxu0 0.0
      %1902 = vmatpush1.msra.mxu0 0.0
      %1903 = vmatprep.subr.mxu0 0.0
      %1904 = vmatpush1.msra.mxu0 0.0
      %1905 = vmatprep.subr.mxu0 0.0
      %1906 = vmatpush1.msra.mxu0 0.0
      %1907 = vmatprep.subr.mxu0 0.0
      %1908 = vmatpush1.msra.mxu0 0.0
      %1909 = vmatprep.subr.mxu0 0.0
      %1910 = vmatpush1.msra.mxu0 0.0
      %1911 = vmatprep.subr.mxu0 0.0
      %1912 = vmatpush1.msra.mxu0 0.0
      %1913 = vmatprep.subr.mxu0 0.0
      %1914 = vmatpush1.msra.mxu0 0.0
      %1915 = vmatprep.subr.mxu0 0.0
      %1916 = vmatpush1.msra.mxu0 0.0
      %1917 = vmatprep.subr.mxu0 0.0
      %1918 = vmatpush1.msra.mxu0 0.0
      %1919 = vmatprep.mubr.f32.mxu0 0.0
      %1920 = vmatmul.mubr.f32.gmra.mrb[0].mxu0 %v292
      %v1921 = vpop.f32.mrb[0].mxu0
      %v1922 = vadd.f32 0.0, %v1921
      %v1923 = vpop.f32.mrb[0].mxu0
      %1924 = vdwg.mxu0
      %v1933 = vsel %vm858, %v1752, %v1737
      %v1934 = vsel %vm860, %v1767, %v1933
      %v1935 = vsel %vm862, %v1782, %v1934
      %v1936 = vsel %vm864, %v1797, %v1935
      %v1937 = vsel %vm866, %v1812, %v1936
      %v1938 = vsel %vm868, %v1827, %v1937
      %v1939 = vsel %vm870, %v1842, %v1938
      %v1940 = vsel %vm494, %v1939, 0
      %1942 = vmatprep.subr.mxu0 0.0
      %1943 = vmatpush1.msra.mxu0 %v1843
      %1944 = vmatprep.subr.mxu0 0.0
      %1945 = vmatpush1.msra.mxu0 %v1844
      %1946 = vmatprep.subr.mxu0 0.0
      %1947 = vmatpush1.msra.mxu0 %v1845
      %1948 = vmatprep.subr.mxu0 0.0
      %1949 = vmatpush1.msra.mxu0 %v1846
      %1950 = vmatprep.subr.mxu0 0.0
      %1951 = vmatpush1.msra.mxu0 %v1847
      %1952 = vmatprep.subr.mxu0 0.0
      %1953 = vmatpush1.msra.mxu0 %v1848
      %1954 = vmatprep.subr.mxu0 0.0
      %1955 = vmatpush1.msra.mxu0 %v1849
      %1956 = vmatprep.subr.mxu0 0.0
      %1957 = vmatpush1.msra.mxu0 %v1850
      %1958 = vmatprep.subr.mxu0 0.0
      %1959 = vmatpush1.msra.mxu0 0.0
      %1960 = vmatprep.subr.mxu0 0.0
      %1961 = vmatpush1.msra.mxu0 0.0
      %1962 = vmatprep.subr.mxu0 0.0
      %1963 = vmatpush1.msra.mxu0 0.0
      %1964 = vmatprep.subr.mxu0 0.0
      %1965 = vmatpush1.msra.mxu0 0.0
      %1966 = vmatprep.subr.mxu0 0.0
      %1967 = vmatpush1.msra.mxu0 0.0
      %1968 = vmatprep.subr.mxu0 0.0
      %1969 = vmatpush1.msra.mxu0 0.0
      %1970 = vmatprep.subr.mxu0 0.0
      %1971 = vmatpush1.msra.mxu0 0.0
      %1972 = vmatprep.subr.mxu0 0.0
      %1973 = vmatpush1.msra.mxu0 0.0
      %1974 = vmatprep.subr.mxu0 0.0
      %1975 = vmatpush1.msra.mxu0 0.0
      %1976 = vmatprep.subr.mxu0 0.0
      %1977 = vmatpush1.msra.mxu0 0.0
      %1978 = vmatprep.subr.mxu0 0.0
      %1979 = vmatpush1.msra.mxu0 0.0
      %1980 = vmatprep.subr.mxu0 0.0
      %1981 = vmatpush1.msra.mxu0 0.0
      %1982 = vmatprep.subr.mxu0 0.0
      %1983 = vmatpush1.msra.mxu0 0.0
      %1984 = vmatprep.subr.mxu0 0.0
      %1985 = vmatpush1.msra.mxu0 0.0
      %1986 = vmatprep.subr.mxu0 0.0
      %1987 = vmatpush1.msra.mxu0 0.0
      %1988 = vmatprep.subr.mxu0 0.0
      %1989 = vmatpush1.msra.mxu0 0.0
      %1990 = vmatprep.subr.mxu0 0.0
      %1991 = vmatpush1.msra.mxu0 0.0
      %1992 = vmatprep.subr.mxu0 0.0
      %1993 = vmatpush1.msra.mxu0 0.0
      %1994 = vmatprep.subr.mxu0 0.0
      %1995 = vmatpush1.msra.mxu0 0.0
      %1996 = vmatprep.subr.mxu0 0.0
      %1997 = vmatpush1.msra.mxu0 0.0
      %1998 = vmatprep.subr.mxu0 0.0
      %1999 = vmatpush1.msra.mxu0 0.0
      %2000 = vmatprep.subr.mxu0 0.0
      %2001 = vmatpush1.msra.mxu0 0.0
      %2002 = vmatprep.subr.mxu0 0.0
      %2003 = vmatpush1.msra.mxu0 0.0
      %2004 = vmatprep.subr.mxu0 0.0
      %2005 = vmatpush1.msra.mxu0 0.0
      %2006 = vmatprep.mubr.f32.mxu0 0.0
      %2007 = vmatmul.mubr.f32.gmra.mrb[0].mxu0 %v1940
      %v2008 = vpop.f32.mrb[0].mxu0
      %v2009 = vadd.f32 %v1922, %v2008
      %v2010 = vpop.f32.mrb[0].mxu0
      %2011 = vdwg.mxu0
      %v2012 = vtanh.pop %v2009
      %2013 = vst.msk [vmem:[%s244] sm:$0xff] %vm290, %v2012
      %p2014 = scmp.lt.s32.totalorder %s16, 1
      %s2015 = scalar_select %p2014, %s16, 1
      %s2016 = smul.addr %s2015, 8
      %s2017 = scalar_lea.vmem %s5, %s2016
      // Predicated region
      $region41: #{speaker_encoder_forward.6} parent=39 // pred_check
        %p2018 = pneg %p149
      $region42: #{speaker_encoder_forward.6} parent=39 // pred_check_branch
        %2020 = sbr.rel (%p2018) target = $region44
      $region43: #{speaker_encoder_forward.6} parent=39 // pred_region
        _
      $region44: #{speaker_encoder_forward.6} parent=39 // pred_fallthru
        _
    $region40: #{speaker_encoder_forward.6} parent=5 // pred_fallthru
      _
    %p2021 = scmp.le.s32.totalorder 2, %s11
    // Predicated region
    $region45: #{speaker_encoder_forward.6} parent=5 // pred_check
      %p2022 = pneg %p2021
    $region46: #{speaker_encoder_forward.6} parent=5 // pred_check_branch
      %2024 = sbr.rel (%p2022) target = $region48
    $region47: #{speaker_encoder_forward.6} parent=5 // pred_region
      %s2025 = ssub.s32 %s11, 2
      // Predicated region
      $region49: #{speaker_encoder_forward.6} parent=47 // pred_check
        %p2026 = pneg %p155
      $region50: #{speaker_encoder_forward.6} parent=47 // pred_check_branch
        %2028 = sbr.rel (%p2026) target = $region52
      $region51: #{speaker_encoder_forward.6} parent=47 // pred_region
        %p2029 = scmp.lt.s32.totalorder %s17, 1
        %s2030 = scalar_select %p2029, %s17, 1
        %s2031 = smul.addr %s2030, 8
        %s2032 = scalar_lea.vmem %s5, %s2031
      $region52: #{speaker_encoder_forward.6} parent=47 // pred_fallthru
        _
    $region48: #{speaker_encoder_forward.6} parent=5 // pred_fallthru
      _
  $region6: #{speaker_encoder_forward.6} parent=0 // loop_footer
    %s15 = sadd.s32 1, %s11
  $region7: #{speaker_encoder_forward.6} parent=0 // loop_footer_branch
    %10 = sbr.rel target = $region3
  $region8: #{speaker_encoder_forward.6} parent=0 // loop_exit
    _

// kernel: speaker_encoder_forward.5
$region0: #{speaker_encoder_forward.5}
  #allocation0 [shape = 'u32[]', space=smem, size = 0x4, offset = 0x4, fixed_abs, tag = 'smem constant byte address 0x4 - core index']
  #allocation1 [shape = 'u32[144,128]{1,0:T(1,128)}', space=vmem, size = 0x12000, scoped, tag = 'internal scratch']
  #allocation2 [shape = 'f32[1,1]{1,0:T(1,128)S(1)}', space=vmem, size = 0x200, scoped, tag = 'scoped memory for speaker_encoder_forward.5']
  %s0 = inlined_call_operand.vmem [shape: f32[16,32], index: 0, kind: input, shape index: {}]
  %s1 = inlined_call_operand.vmem [shape: f32[16,16,256], index: 1, kind: input, shape index: {}]
  %s2 = inlined_call_operand.vmem [shape: f32[32,256], index: 2, kind: input, shape index: {}]
  %s3 = inlined_call_operand.vmem [shape: f32[1,256], index: 3, kind: input, shape index: {}]
  %s4 = inlined_call_operand.vmem [shape: f32[256,256], index: 4, kind: input, shape index: {}]
  %s5 = inlined_call_operand.vmem [shape: f32[1,256], index: 5, kind: input, shape index: {}]
  %s6 = inlined_call_operand.vmem [shape: f32[1,256], index: 6, kind: input, shape index: {}]
  %s7 = inlined_call_operand.<no memory space> [shape: f32[1,1], index: 7, kind: input, shape index: {}]
  %s8 = inlined_call_operand.vmem [shape: f32[16,256], index: 8, kind: output, shape index: {}]
  %s9 = sld [smem:[#allocation0]]
  $region65: #{speaker_encoder_forward.5} parent=0
    _
  %s11 = ssub.s32 1, %s9
  %s12 = scalar_select 0, %s11, %s9
  %v13 = vstv %s7
  %14 = vst [vmem:[#allocation2] sm:$0x1] %v13
  loop: start=0, step=1, limit=4
  $region2: #{speaker_encoder_forward.5} parent=0 // loop_pre_header
    _
  $region3: #{speaker_encoder_forward.5} parent=0 // loop_header
    %s16 = sphi 0, %s20
    %p17 = scmp.ge.s32.totalorder %s16, 4
    %s26 = sphi 0, %s28
    %s29 = sphi 0, %s26
    %s30 = sphi 0, %s29
    %s46 = sphi 0, %s30
    %s52 = sphi 0, %s54
    %s55 = sphi 0, %s52
    %s56 = sphi 0, %s55
    %s72 = sphi 0, %s56
    %s76 = sphi 0, %s76
    %s78 = sphi 0, %s76
    %s79 = sphi 0, %s78
    %s93 = sphi 0, %s79
    %s97 = sphi 0, %s97
    %s99 = sphi 0, %s97
    %s100 = sphi 0, %s99
    %s114 = sphi 0, %s100
    %s118 = sphi 0, %s118
    %s120 = sphi 0, %s118
    %s121 = sphi 0, %s120
    %s135 = sphi 0, %s121
    %s139 = sphi 0, %s139
    %s141 = sphi 0, %s139
    %s142 = sphi 0, %s141
    %s156 = sphi 0, %s142
    %s160 = sphi 0, %s160
    %s162 = sphi 0, %s160
    %s163 = sphi 0, %s162
    %s177 = sphi 0, %s163
    %s181 = sphi 0, %s181
    %s183 = sphi 0, %s181
    %s184 = sphi 0, %s183
    %s198 = sphi 0, %s184
    %s204 = sphi 0, %s206
    %s207 = sphi 0, %s204
    %s208 = sphi 0, %s207
    %s224 = sphi 0, %s208
  $region4: #{speaker_encoder_forward.5} parent=0 // loop_header_branch
    %19 = sbr.rel (%p17) target = $region8
  $region5: #{speaker_encoder_forward.5} parent=0 // loop_body
    %s21 = ssub.s32 %s16, 1
    %s22 = ssub.s32 %s16, 2
    %s23 = sadd.s32 %s16, 1
    %s24 = ssub.s32 %s16, %s23
    %p25 = scmp.eq.s32.totalorder %s24, 0
    %s27 = sadd.s32 %s26, 1
    %s28 = scalar_select %p25, %s26, %s27
    %p31 = pneg %p25
    %p32 = scmp.eq.s32.totalorder %s16, 1
    %p33 = por %p31, %p32
    %p34 = scmp.ne.s32.totalorder %s26, %s29
    %p35 = scmp.eq.s32.totalorder %s16, 0
    %p36 = por %p34, %p35
    %p37 = scmp.ne.s32.totalorder %s26, %s29
    %p38 = scmp.eq.s32.totalorder %s21, 1
    %p39 = por %p37, %p38
    %p40 = scmp.ne.s32.totalorder %s29, %s30
    %p41 = scmp.eq.s32.totalorder %s21, 0
    %p42 = por %p40, %p41
    %p43 = scmp.ne.s32.totalorder %s29, %s30
    %p44 = scmp.eq.s32.totalorder %s22, 1
    %p45 = por %p43, %p44
    %p47 = scmp.ne.s32.totalorder %s30, %s46
    %p48 = scmp.eq.s32.totalorder %s22, 0
    %p49 = por %p47, %p48
    %s50 = ssub.s32 %s16, %s23
    %p51 = scmp.eq.s32.totalorder %s50, 0
    %s53 = sadd.s32 %s52, 1
    %s54 = scalar_select %p51, %s52, %s53
    %p57 = pneg %p51
    %p58 = scmp.eq.s32.totalorder %s16, 1
    %p59 = por %p57, %p58
    %p60 = scmp.ne.s32.totalorder %s52, %s55
    %p61 = scmp.eq.s32.totalorder %s16, 0
    %p62 = por %p60, %p61
    %p63 = scmp.ne.s32.totalorder %s52, %s55
    %p64 = scmp.eq.s32.totalorder %s21, 1
    %p65 = por %p63, %p64
    %p66 = scmp.ne.s32.totalorder %s55, %s56
    %p67 = scmp.eq.s32.totalorder %s21, 0
    %p68 = por %p66, %p67
    %p69 = scmp.ne.s32.totalorder %s55, %s56
    %p70 = scmp.eq.s32.totalorder %s22, 1
    %p71 = por %p69, %p70
    %p73 = scmp.ne.s32.totalorder %s56, %s72
    %p74 = scmp.eq.s32.totalorder %s22, 0
    %p75 = por %p73, %p74
    %s77 = sadd.s32 %s76, 1
    %p80 = scmp.eq.s32.totalorder %s16, 1
    %p81 = scmp.ne.s32.totalorder %s76, %s78
    %p82 = scmp.eq.s32.totalorder %s16, 0
    %p83 = por %p81, %p82
    %p84 = scmp.ne.s32.totalorder %s76, %s78
    %p85 = scmp.eq.s32.totalorder %s21, 1
    %p86 = por %p84, %p85
    %p87 = scmp.ne.s32.totalorder %s78, %s79
    %p88 = scmp.eq.s32.totalorder %s21, 0
    %p89 = por %p87, %p88
    %p90 = scmp.ne.s32.totalorder %s78, %s79
    %p91 = scmp.eq.s32.totalorder %s22, 1
    %p92 = por %p90, %p91
    %p94 = scmp.ne.s32.totalorder %s79, %s93
    %p95 = scmp.eq.s32.totalorder %s22, 0
    %p96 = por %p94, %p95
    %s98 = sadd.s32 %s97, 1
    %p101 = scmp.eq.s32.totalorder %s16, 1
    %p102 = scmp.ne.s32.totalorder %s97, %s99
    %p103 = scmp.eq.s32.totalorder %s16, 0
    %p104 = por %p102, %p103
    %p105 = scmp.ne.s32.totalorder %s97, %s99
    %p106 = scmp.eq.s32.totalorder %s21, 1
    %p107 = por %p105, %p106
    %p108 = scmp.ne.s32.totalorder %s99, %s100
    %p109 = scmp.eq.s32.totalorder %s21, 0
    %p110 = por %p108, %p109
    %p111 = scmp.ne.s32.totalorder %s99, %s100
    %p112 = scmp.eq.s32.totalorder %s22, 1
    %p113 = por %p111, %p112
    %p115 = scmp.ne.s32.totalorder %s100, %s114
    %p116 = scmp.eq.s32.totalorder %s22, 0
    %p117 = por %p115, %p116
    %s119 = sadd.s32 %s118, 1
    %p122 = scmp.eq.s32.totalorder %s16, 1
    %p123 = scmp.ne.s32.totalorder %s118, %s120
    %p124 = scmp.eq.s32.totalorder %s16, 0
    %p125 = por %p123, %p124
    %p126 = scmp.ne.s32.totalorder %s118, %s120
    %p127 = scmp.eq.s32.totalorder %s21, 1
    %p128 = por %p126, %p127
    %p129 = scmp.ne.s32.totalorder %s120, %s121
    %p130 = scmp.eq.s32.totalorder %s21, 0
    %p131 = por %p129, %p130
    %p132 = scmp.ne.s32.totalorder %s120, %s121
    %p133 = scmp.eq.s32.totalorder %s22, 1
    %p134 = por %p132, %p133
    %p136 = scmp.ne.s32.totalorder %s121, %s135
    %p137 = scmp.eq.s32.totalorder %s22, 0
    %p138 = por %p136, %p137
    %s140 = sadd.s32 %s139, 1
    %p143 = scmp.eq.s32.totalorder %s16, 1
    %p144 = scmp.ne.s32.totalorder %s139, %s141
    %p145 = scmp.eq.s32.totalorder %s16, 0
    %p146 = por %p144, %p145
    %p147 = scmp.ne.s32.totalorder %s139, %s141
    %p148 = scmp.eq.s32.totalorder %s21, 1
    %p149 = por %p147, %p148
    %p150 = scmp.ne.s32.totalorder %s141, %s142
    %p151 = scmp.eq.s32.totalorder %s21, 0
    %p152 = por %p150, %p151
    %p153 = scmp.ne.s32.totalorder %s141, %s142
    %p154 = scmp.eq.s32.totalorder %s22, 1
    %p155 = por %p153, %p154
    %p157 = scmp.ne.s32.totalorder %s142, %s156
    %p158 = scmp.eq.s32.totalorder %s22, 0
    %p159 = por %p157, %p158
    %s161 = sadd.s32 %s160, 1
    %p164 = scmp.eq.s32.totalorder %s16, 1
    %p165 = scmp.ne.s32.totalorder %s160, %s162
    %p166 = scmp.eq.s32.totalorder %s16, 0
    %p167 = por %p165, %p166
    %p168 = scmp.ne.s32.totalorder %s160, %s162
    %p169 = scmp.eq.s32.totalorder %s21, 1
    %p170 = por %p168, %p169
    %p171 = scmp.ne.s32.totalorder %s162, %s163
    %p172 = scmp.eq.s32.totalorder %s21, 0
    %p173 = por %p171, %p172
    %p174 = scmp.ne.s32.totalorder %s162, %s163
    %p175 = scmp.eq.s32.totalorder %s22, 1
    %p176 = por %p174, %p175
    %p178 = scmp.ne.s32.totalorder %s163, %s177
    %p179 = scmp.eq.s32.totalorder %s22, 0
    %p180 = por %p178, %p179
    %s182 = sadd.s32 %s181, 1
    %p185 = scmp.eq.s32.totalorder %s16, 1
    %p186 = scmp.ne.s32.totalorder %s181, %s183
    %p187 = scmp.eq.s32.totalorder %s16, 0
    %p188 = por %p186, %p187
    %p189 = scmp.ne.s32.totalorder %s181, %s183
    %p190 = scmp.eq.s32.totalorder %s21, 1
    %p191 = por %p189, %p190
    %p192 = scmp.ne.s32.totalorder %s183, %s184
    %p193 = scmp.eq.s32.totalorder %s21, 0
    %p194 = por %p192, %p193
    %p195 = scmp.ne.s32.totalorder %s183, %s184
    %p196 = scmp.eq.s32.totalorder %s22, 1
    %p197 = por %p195, %p196
    %p199 = scmp.ne.s32.totalorder %s184, %s198
    %p200 = scmp.eq.s32.totalorder %s22, 0
    %p201 = por %p199, %p200
    %s202 = ssub.s32 %s16, %s23
    %p203 = scmp.eq.s32.totalorder %s202, 0
    %s205 = sadd.s32 %s204, 1
    %s206 = scalar_select %p203, %s204, %s205
    %p209 = pneg %p203
    %p210 = scmp.eq.s32.totalorder %s16, 1
    %p211 = por %p209, %p210
    %p212 = scmp.ne.s32.totalorder %s204, %s207
    %p213 = scmp.eq.s32.totalorder %s16, 0
    %p214 = por %p212, %p213
    %p215 = scmp.ne.s32.totalorder %s204, %s207
    %p216 = scmp.eq.s32.totalorder %s21, 1
    %p217 = por %p215, %p216
    %p218 = scmp.ne.s32.totalorder %s207, %s208
    %p219 = scmp.eq.s32.totalorder %s21, 0
    %p220 = por %p218, %p219
    %p221 = scmp.ne.s32.totalorder %s207, %s208
    %p222 = scmp.eq.s32.totalorder %s22, 1
    %p223 = por %p221, %p222
    %p225 = scmp.ne.s32.totalorder %s208, %s224
    %p226 = scmp.eq.s32.totalorder %s22, 0
    %p227 = por %p225, %p226
    %p228 = scmp.le.s32.totalorder 1, %s16
    %p229 = scmp.lt.s32.totalorder %s16, 3
    %p230 = pnand %p228, %p229
    %p231 = pneg %p230
    // Predicated region
    $region9: #{speaker_encoder_forward.5} parent=5 // pred_check
      _
    $region10: #{speaker_encoder_forward.5} parent=5 // pred_check_branch
      %233 = sbr.rel (%p230) target = $region12
    $region11: #{speaker_encoder_forward.5} parent=5 // pred_region
      %s234 = ssub.s32 %s16, 1
      // Predicated region
      $region13: #{speaker_encoder_forward.5} parent=11 // pred_check
        %p235 = pneg %p89
      $region14: #{speaker_encoder_forward.5} parent=11 // pred_check_branch
        %237 = sbr.rel (%p235) target = $region16
      $region15: #{speaker_encoder_forward.5} parent=11 // pred_region
        _
      $region16: #{speaker_encoder_forward.5} parent=11 // pred_fallthru
        _
      // Predicated region
      $region17: #{speaker_encoder_forward.5} parent=11 // pred_check
        %p238 = pneg %p110
      $region18: #{speaker_encoder_forward.5} parent=11 // pred_check_branch
        %240 = sbr.rel (%p238) target = $region20
      $region19: #{speaker_encoder_forward.5} parent=11 // pred_region
        _
      $region20: #{speaker_encoder_forward.5} parent=11 // pred_fallthru
        _
      // Predicated region
      $region21: #{speaker_encoder_forward.5} parent=11 // pred_check
        %p241 = pneg %p131
      $region22: #{speaker_encoder_forward.5} parent=11 // pred_check_branch
        %243 = sbr.rel (%p241) target = $region24
      $region23: #{speaker_encoder_forward.5} parent=11 // pred_region
        _
      $region24: #{speaker_encoder_forward.5} parent=11 // pred_fallthru
        _
      // Predicated region
      $region25: #{speaker_encoder_forward.5} parent=11 // pred_check
        %p244 = pneg %p152
      $region26: #{speaker_encoder_forward.5} parent=11 // pred_check_branch
        %246 = sbr.rel (%p244) target = $region28
      $region27: #{speaker_encoder_forward.5} parent=11 // pred_region
        _
      $region28: #{speaker_encoder_forward.5} parent=11 // pred_fallthru
        _
      // Predicated region
      $region29: #{speaker_encoder_forward.5} parent=11 // pred_check
        %p247 = pneg %p173
      $region30: #{speaker_encoder_forward.5} parent=11 // pred_check_branch
        %249 = sbr.rel (%p247) target = $region32
      $region31: #{speaker_encoder_forward.5} parent=11 // pred_region
        _
      $region32: #{speaker_encoder_forward.5} parent=11 // pred_fallthru
        _
      // Predicated region
      $region33: #{speaker_encoder_forward.5} parent=11 // pred_check
        %p250 = pneg %p194
      $region34: #{speaker_encoder_forward.5} parent=11 // pred_check_branch
        %252 = sbr.rel (%p250) target = $region36
      $region35: #{speaker_encoder_forward.5} parent=11 // pred_region
        _
      $region36: #{speaker_encoder_forward.5} parent=11 // pred_fallthru
        _
    $region12: #{speaker_encoder_forward.5} parent=5 // pred_fallthru
      _
    %p253 = scmp.lt.s32.totalorder %s16, 2
    // Predicated region
    $region37: #{speaker_encoder_forward.5} parent=5 // pred_check
      %p254 = pneg %p253
    $region38: #{speaker_encoder_forward.5} parent=5 // pred_check_branch
      %256 = sbr.rel (%p254) target = $region40
    $region39: #{speaker_encoder_forward.5} parent=5 // pred_region
      // Predicated region
      $region41: #{speaker_encoder_forward.5} parent=39 // pred_check
        %p257 = pneg %p36
      $region42: #{speaker_encoder_forward.5} parent=39 // pred_check_branch
        %259 = sbr.rel (%p257) target = $region44
      $region43: #{speaker_encoder_forward.5} parent=39 // pred_region
        %p260 = scmp.lt.s32.totalorder %s16, 1
        %s261 = scalar_select %p260, %s16, 1
        %s262 = smul.addr %s261, 8
        %s263 = scalar_lea.vmem %s0, %s262
      $region44: #{speaker_encoder_forward.5} parent=39 // pred_fallthru
        _
      // Predicated region
      $region45: #{speaker_encoder_forward.5} parent=39 // pred_check
        %p264 = pneg %p62
      $region46: #{speaker_encoder_forward.5} parent=39 // pred_check_branch
        %266 = sbr.rel (%p264) target = $region48
      $region47: #{speaker_encoder_forward.5} parent=39 // pred_region
        %s267 = smul.u32 8, %s16
        %p268 = scmp.lt.s32.totalorder %s267, 15
        %s269 = scalar_select %p268, %s267, 15
        %s270 = smul.addr %s269, 4
        %s271 = smul.addr %s270, 8
        %s272 = scalar_lea.vmem %s1, %s271
        %s273 = smul.u32 8, %s16
      $region48: #{speaker_encoder_forward.5} parent=39 // pred_fallthru
        _
    $region40: #{speaker_encoder_forward.5} parent=5 // pred_fallthru
      _
    %p274 = scmp.le.s32.totalorder 1, %s16
    %p275 = scmp.lt.s32.totalorder %s16, 3
    %p276 = pnand %p274, %p275
    %p277 = pneg %p276
    // Predicated region
    $region49: #{speaker_encoder_forward.5} parent=5 // pred_check
      _
    $region50: #{speaker_encoder_forward.5} parent=5 // pred_check_branch
      %279 = sbr.rel (%p276) target = $region52
    $region51: #{speaker_encoder_forward.5} parent=5 // pred_region
      %s280 = ssub.s32 %s16, 1
      %p281 = scmp.lt.s32.totalorder %s21, 1
      %s282 = scalar_select %p281, %s21, 1
      %s283 = smul.addr %s282, 8
      %s284 = scalar_lea.vmem %s0, %s283
      %p285 = pneg %p42
      %p286 = pneg %p39
      %s287 = smul.u32 8, %s21
      %p288 = scmp.lt.s32.totalorder %s287, 15
      %s289 = scalar_select %p288, %s287, 15
      %s290 = smul.addr %s289, 4
      %s291 = smul.addr %s290, 8
      %s292 = scalar_lea.vmem %s1, %s291
      %p293 = pneg %p68
      %p294 = pneg %p65
      %p295 = pneg %p89
      %p296 = pneg %p86
      %p297 = pneg %p110
      %p298 = pneg %p107
      %p299 = pneg %p131
      %p300 = pneg %p128
      %p301 = pneg %p152
      %p302 = pneg %p149
      %p303 = pneg %p173
      %p304 = pneg %p170
      %p305 = pneg %p194
      %p306 = pneg %p191
      %p307 = pneg %p220
      %p308 = pneg %p217
      %p309 = scmp.lt.s32.totalorder %s21, 1
      %s310 = scalar_select %p309, %s21, 1
      %s311 = smul.addr %s310, 2
      %s312 = smul.addr %s311, 8
      %s313 = scalar_lea.vmem %s8, %s312
      %p314 = scmp.lt.s32.totalorder %s21, 1
      %s315 = scalar_select %p314, %s21, 1
      %s316 = smul.addr %s315, 8
      %s317 = scalar_lea.vmem %s0, %s316
      %s318 = smul.u32 8, %s21
      %p319 = scmp.lt.s32.totalorder %s318, 15
      %s320 = scalar_select %p319, %s318, 15
      %s321 = smul.addr %s320, 4
      %s322 = smul.addr %s321, 8
      %s323 = scalar_lea.vmem %s1, %s322
      %s324 = smul.u32 8, %s21
      %p325 = scmp.lt.s32.totalorder %s21, 1
      %s326 = scalar_select %p325, %s21, 1
      %s327 = smul.addr %s326, 2
      %s328 = smul.addr %s327, 8
      %s329 = scalar_lea.vmem %s8, %s328
      %v330 = vld [vmem:[%s317] sm:$0xff]
      %v331 = vld [vmem:[%s323] sm:$0xff]
      %v332 = vld [vmem:[%s323 + $0x8] sm:$0xff]
      %v333 = vld [vmem:[%s323 + $0x10] sm:$0xff]
      %v334 = vld [vmem:[%s323 + $0x18] sm:$0xff]
      %v335 = vld [vmem:[%s323 + $0x20] sm:$0xff]
      %v336 = vld [vmem:[%s323 + $0x28] sm:$0xff]
      %v337 = vld [vmem:[%s323 + $0x30] sm:$0xff]
      %v338 = vld [vmem:[%s323 + $0x38] sm:$0xff]
      %v339 = vld [vmem:[%s323 + $0x40] sm:$0xff]
      %v340 = vld [vmem:[%s323 + $0x48] sm:$0xff]
      %v341 = vld [vmem:[%s323 + $0x50] sm:$0xff]
      %v342 = vld [vmem:[%s323 + $0x58] sm:$0xff]
      %v343 = vld [vmem:[%s323 + $0x60] sm:$0xff]
      %v344 = vld [vmem:[%s323 + $0x68] sm:$0xff]
      %v345 = vld [vmem:[%s323 + $0x70] sm:$0xff]
      %v346 = vld [vmem:[%s323 + $0x78] sm:$0xff]
      %v347 = vld [vmem:[%s323 + $0x80] sm:$0xff]
      %v348 = vld [vmem:[%s323 + $0x88] sm:$0xff]
      %v349 = vld [vmem:[%s323 + $0x90] sm:$0xff]
      %v350 = vld [vmem:[%s323 + $0x98] sm:$0xff]
      %v351 = vld [vmem:[%s323 + $0xa0] sm:$0xff]
      %v352 = vld [vmem:[%s323 + $0xa8] sm:$0xff]
      %v353 = vld [vmem:[%s323 + $0xb0] sm:$0xff]
      %v354 = vld [vmem:[%s323 + $0xb8] sm:$0xff]
      %v355 = vld [vmem:[%s323 + $0xc0] sm:$0xff]
      %v356 = vld [vmem:[%s323 + $0xc8] sm:$0xff]
      %v357 = vld [vmem:[%s323 + $0xd0] sm:$0xff]
      %v358 = vld [vmem:[%s323 + $0xd8] sm:$0xff]
      %v359 = vld [vmem:[%s323 + $0xe0] sm:$0xff]
      %v360 = vld [vmem:[%s323 + $0xe8] sm:$0xff]
      %v361 = vld [vmem:[%s323 + $0xf0] sm:$0xff]
      %v362 = vld [vmem:[%s323 + $0xf8] sm:$0xff]
      %v363 = vld [vmem:[%s2] sm:$0xff]
      %v364 = vld [vmem:[%s2 + $0x8] sm:$0xff]
      %v365 = vld [vmem:[%s2 + $0x10] sm:$0xff]
      %v366 = vld [vmem:[%s2 + $0x18] sm:$0xff]
      %v367 = vld [vmem:[%s2 + $0x20] sm:$0xff]
      %v368 = vld [vmem:[%s2 + $0x28] sm:$0xff]
      %v369 = vld [vmem:[%s2 + $0x30] sm:$0xff]
      %v370 = vld [vmem:[%s2 + $0x38] sm:$0xff]
      %v371 = vld [vmem:[%s3] sm:$0x3]
      %v373 = vlaneseq
      %v374 = vshrl.u32 %v373, 7
      %v375 = vsub.s32 0, %v374
      %v376 = vrot.slane %v371, %v375
      %v377 = vlaneseq
      %v378 = vshrl.u32 %v377, 7
      %v379 = vsub.s32 1, %v378
      %v380 = vrot.slane %v371, %v379
      %vm383 = vcmask 261120
      %v385 = vsel %vm383, %v330, 0
      %387 = vmatprep.subr.mxu0 %v364
      %388 = vmatpush1.msra.mxu0 %v363
      %389 = vmatprep.subr.mxu0 %v366
      %390 = vmatpush1.msra.mxu0 %v365
      %391 = vmatprep.subr.mxu0 %v368
      %392 = vmatpush1.msra.mxu0 %v367
      %393 = vmatprep.subr.mxu0 %v370
      %394 = vmatpush1.msra.mxu0 %v369
      %395 = vmatprep.subr.mxu0 0.0
      %396 = vmatpush1.msra.mxu0 0.0
      %397 = vmatprep.subr.mxu0 0.0
      %398 = vmatpush1.msra.mxu0 0.0
      %399 = vmatprep.subr.mxu0 0.0
      %400 = vmatpush1.msra.mxu0 0.0
      %401 = vmatprep.subr.mxu0 0.0
      %402 = vmatpush1.msra.mxu0 0.0
      %403 = vmatprep.subr.mxu0 0.0
      %404 = vmatpush1.msra.mxu0 0.0
      %405 = vmatprep.subr.mxu0 0.0
      %406 = vmatpush1.msra.mxu0 0.0
      %407 = vmatprep.subr.mxu0 0.0
      %408 = vmatpush1.msra.mxu0 0.0
      %409 = vmatprep.subr.mxu0 0.0
      %410 = vmatpush1.msra.mxu0 0.0
      %411 = vmatprep.subr.mxu0 0.0
      %412 = vmatpush1.msra.mxu0 0.0
      %413 = vmatprep.subr.mxu0 0.0
      %414 = vmatpush1.msra.mxu0 0.0
      %415 = vmatprep.subr.mxu0 0.0
      %416 = vmatpush1.msra.mxu0 0.0
      %417 = vmatprep.subr.mxu0 0.0
      %418 = vmatpush1.msra.mxu0 0.0
      %419 = vmatprep.subr.mxu0 0.0
      %420 = vmatpush1.msra.mxu0 0.0
      %421 = vmatprep.subr.mxu0 0.0
      %422 = vmatpush1.msra.mxu0 0.0
      %423 = vmatprep.subr.mxu0 0.0
      %424 = vmatpush1.msra.mxu0 0.0
      %425 = vmatprep.subr.mxu0 0.0
      %426 = vmatpush1.msra.mxu0 0.0
      %427 = vmatprep.subr.mxu0 0.0
      %428 = vmatpush1.msra.mxu0 0.0
      %429 = vmatprep.subr.mxu0 0.0
      %430 = vmatpush1.msra.mxu0 0.0
      %431 = vmatprep.subr.mxu0 0.0
      %432 = vmatpush1.msra.mxu0 0.0
      %433 = vmatprep.subr.mxu0 0.0
      %434 = vmatpush1.msra.mxu0 0.0
      %435 = vmatprep.subr.mxu0 0.0
      %436 = vmatpush1.msra.mxu0 0.0
      %437 = vmatprep.subr.mxu0 0.0
      %438 = vmatpush1.msra.mxu0 0.0
      %439 = vmatprep.subr.mxu0 0.0
      %440 = vmatpush1.msra.mxu0 0.0
      %441 = vmatprep.subr.mxu0 0.0
      %442 = vmatpush1.msra.mxu0 0.0
      %443 = vmatprep.subr.mxu0 0.0
      %444 = vmatpush1.msra.mxu0 0.0
      %445 = vmatprep.subr.mxu0 0.0
      %446 = vmatpush1.msra.mxu0 0.0
      %447 = vmatprep.subr.mxu0 0.0
      %448 = vmatpush1.msra.mxu0 0.0
      %449 = vmatprep.subr.mxu0 0.0
      %450 = vmatpush1.msra.mxu0 0.0
      %451 = vmatprep.mubr.f32.mxu0 0.0
      %452 = vmatmul.mubr.f32.gmra.mrb[0].mxu0 %v385
      %v453 = vpop.f32.mrb[0].mxu0
      %v454 = vadd.f32 %v376, %v453
      %v455 = vpop.f32.mrb[0].mxu0
      %v456 = vadd.f32 %v380, %v455
      %457 = vdwg.mxu0
      %v458 = vmax.f32 %v454, 0.0
      %v459 = vmax.f32 %v456, 0.0
      %v460 = vld [vmem:[%s4] sm:$0xff]
      %v461 = vld [vmem:[%s4 + $0x8] sm:$0xff]
      %v462 = vld [vmem:[%s4 + $0x10] sm:$0xff]
      %v463 = vld [vmem:[%s4 + $0x18] sm:$0xff]
      %v464 = vld [vmem:[%s4 + $0x20] sm:$0xff]
      %v465 = vld [vmem:[%s4 + $0x28] sm:$0xff]
      %v466 = vld [vmem:[%s4 + $0x30] sm:$0xff]
      %v467 = vld [vmem:[%s4 + $0x38] sm:$0xff]
      %v468 = vld [vmem:[%s4 + $0x40] sm:$0xff]
      %v469 = vld [vmem:[%s4 + $0x48] sm:$0xff]
      %v470 = vld [vmem:[%s4 + $0x50] sm:$0xff]
      %v471 = vld [vmem:[%s4 + $0x58] sm:$0xff]
      %v472 = vld [vmem:[%s4 + $0x60] sm:$0xff]
      %v473 = vld [vmem:[%s4 + $0x68] sm:$0xff]
      %v474 = vld [vmem:[%s4 + $0x70] sm:$0xff]
      %v475 = vld [vmem:[%s4 + $0x78] sm:$0xff]
      %v476 = vld [vmem:[%s4 + $0x80] sm:$0xff]
      %v477 = vld [vmem:[%s4 + $0x88] sm:$0xff]
      %v478 = vld [vmem:[%s4 + $0x90] sm:$0xff]
      %v479 = vld [vmem:[%s4 + $0x98] sm:$0xff]
      %v480 = vld [vmem:[%s4 + $0xa0] sm:$0xff]
      %v481 = vld [vmem:[%s4 + $0xa8] sm:$0xff]
      %v482 = vld [vmem:[%s4 + $0xb0] sm:$0xff]
      %v483 = vld [vmem:[%s4 + $0xb8] sm:$0xff]
      %v484 = vld [vmem:[%s4 + $0xc0] sm:$0xff]
      %v485 = vld [vmem:[%s4 + $0xc8] sm:$0xff]
      %v486 = vld [vmem:[%s4 + $0xd0] sm:$0xff]
      %v487 = vld [vmem:[%s4 + $0xd8] sm:$0xff]
      %v488 = vld [vmem:[%s4 + $0xe0] sm:$0xff]
      %v489 = vld [vmem:[%s4 + $0xe8] sm:$0xff]
      %v490 = vld [vmem:[%s4 + $0xf0] sm:$0xff]
      %v491 = vld [vmem:[%s4 + $0xf8] sm:$0xff]
      %v492 = vld [vmem:[%s4 + $0x100] sm:$0xff]
      %v493 = vld [vmem:[%s4 + $0x108] sm:$0xff]
      %v494 = vld [vmem:[%s4 + $0x110] sm:$0xff]
      %v495 = vld [vmem:[%s4 + $0x118] sm:$0xff]
      %v496 = vld [vmem:[%s4 + $0x120] sm:$0xff]
      %v497 = vld [vmem:[%s4 + $0x128] sm:$0xff]
      %v498 = vld [vmem:[%s4 + $0x130] sm:$0xff]
      %v499 = vld [vmem:[%s4 + $0x138] sm:$0xff]
      %v500 = vld [vmem:[%s4 + $0x140] sm:$0xff]
      %v501 = vld [vmem:[%s4 + $0x148] sm:$0xff]
      %v502 = vld [vmem:[%s4 + $0x150] sm:$0xff]
      %v503 = vld [vmem:[%s4 + $0x158] sm:$0xff]
      %v504 = vld [vmem:[%s4 + $0x160] sm:$0xff]
      %v505 = vld [vmem:[%s4 + $0x168] sm:$0xff]
      %v506 = vld [vmem:[%s4 + $0x170] sm:$0xff]
      %v507 = vld [vmem:[%s4 + $0x178] sm:$0xff]
      %v508 = vld [vmem:[%s4 + $0x180] sm:$0xff]
      %v509 = vld [vmem:[%s4 + $0x188] sm:$0xff]
      %v510 = vld [vmem:[%s4 + $0x190] sm:$0xff]
      %v511 = vld [vmem:[%s4 + $0x198] sm:$0xff]
      %v512 = vld [vmem:[%s4 + $0x1a0] sm:$0xff]
      %v513 = vld [vmem:[%s4 + $0x1a8] sm:$0xff]
      %v514 = vld [vmem:[%s4 + $0x1b0] sm:$0xff]
      %v515 = vld [vmem:[%s4 + $0x1b8] sm:$0xff]
      %v516 = vld [vmem:[%s4 + $0x1c0] sm:$0xff]
      %v517 = vld [vmem:[%s4 + $0x1c8] sm:$0xff]
      %v518 = vld [vmem:[%s4 + $0x1d0] sm:$0xff]
      %v519 = vld [vmem:[%s4 + $0x1d8] sm:$0xff]
      %v520 = vld [vmem:[%s4 + $0x1e0] sm:$0xff]
      %v521 = vld [vmem:[%s4 + $0x1e8] sm:$0xff]
      %v522 = vld [vmem:[%s4 + $0x1f0] sm:$0xff]
      %v523 = vld [vmem:[%s4 + $0x1f8] sm:$0xff]
      %v524 = vld [vmem:[%s5] sm:$0x3]
      %v526 = vlaneseq
      %v527 = vshrl.u32 %v526, 7
      %v528 = vsub.s32 0, %v527
      %v529 = vrot.slane %v524, %v528
      %v530 = vlaneseq
      %v531 = vshrl.u32 %v530, 7
      %v532 = vsub.s32 1, %v531
      %v533 = vrot.slane %v524, %v532
      %536 = vmatprep.subr.mxu0 %v461
      %537 = vmatpush1.msra.mxu0 %v460
      %538 = vmatprep.subr.mxu0 %v463
      %539 = vmatpush1.msra.mxu0 %v462
      %540 = vmatprep.subr.mxu0 %v465
      %541 = vmatpush1.msra.mxu0 %v464
      %542 = vmatprep.subr.mxu0 %v467
      %543 = vmatpush1.msra.mxu0 %v466
      %544 = vmatprep.subr.mxu0 %v469
      %545 = vmatpush1.msra.mxu0 %v468
      %546 = vmatprep.subr.mxu0 %v471
      %547 = vmatpush1.msra.mxu0 %v470
      %548 = vmatprep.subr.mxu0 %v473
      %549 = vmatpush1.msra.mxu0 %v472
      %550 = vmatprep.subr.mxu0 %v475
      %551 = vmatpush1.msra.mxu0 %v474
      %552 = vmatprep.subr.mxu0 %v477
      %553 = vmatpush1.msra.mxu0 %v476
      %554 = vmatprep.subr.mxu0 %v479
      %555 = vmatpush1.msra.mxu0 %v478
      %556 = vmatprep.subr.mxu0 %v481
      %557 = vmatpush1.msra.mxu0 %v480
      %558 = vmatprep.subr.mxu0 %v483
      %559 = vmatpush1.msra.mxu0 %v482
      %560 = vmatprep.subr.mxu0 %v485
      %561 = vmatpush1.msra.mxu0 %v484
      %562 = vmatprep.subr.mxu0 %v487
      %563 = vmatpush1.msra.mxu0 %v486
      %564 = vmatprep.subr.mxu0 %v489
      %565 = vmatpush1.msra.mxu0 %v488
      %566 = vmatprep.subr.mxu0 %v491
      %567 = vmatpush1.msra.mxu0 %v490
      %568 = vmatprep.subr.mxu0 %v493
      %569 = vmatpush1.msra.mxu0 %v492
      %570 = vmatprep.subr.mxu0 %v495
      %571 = vmatpush1.msra.mxu0 %v494
      %572 = vmatprep.subr.mxu0 %v497
      %573 = vmatpush1.msra.mxu0 %v496
      %574 = vmatprep.subr.mxu0 %v499
      %575 = vmatpush1.msra.mxu0 %v498
      %576 = vmatprep.subr.mxu0 %v501
      %577 = vmatpush1.msra.mxu0 %v500
      %578 = vmatprep.subr.mxu0 %v503
      %579 = vmatpush1.msra.mxu0 %v502
      %580 = vmatprep.subr.mxu0 %v505
      %581 = vmatpush1.msra.mxu0 %v504
      %582 = vmatprep.subr.mxu0 %v507
      %583 = vmatpush1.msra.mxu0 %v506
      %584 = vmatprep.subr.mxu0 %v509
      %585 = vmatpush1.msra.mxu0 %v508
      %586 = vmatprep.subr.mxu0 %v511
      %587 = vmatpush1.msra.mxu0 %v510
      %588 = vmatprep.subr.mxu0 %v513
      %589 = vmatpush1.msra.mxu0 %v512
      %590 = vmatprep.subr.mxu0 %v515
      %591 = vmatpush1.msra.mxu0 %v514
      %592 = vmatprep.subr.mxu0 %v517
      %593 = vmatpush1.msra.mxu0 %v516
      %594 = vmatprep.subr.mxu0 %v519
      %595 = vmatpush1.msra.mxu0 %v518
      %596 = vmatprep.subr.mxu0 %v521
      %597 = vmatpush1.msra.mxu0 %v520
      %598 = vmatprep.subr.mxu0 %v523
      %599 = vmatpush1.msra.mxu0 %v522
      %600 = vmatprep.mubr.f32.mxu0 %v332
      %601 = vmatmul.mubr.f32.gmra.mrb[0].mxu0 %v331
      %v602 = vpop.f32.mrb[0].mxu0
      %v603 = vadd.f32 %v529, %v602
      %v604 = vpop.f32.mrb[0].mxu0
      %v605 = vadd.f32 %v533, %v604
      %606 = vmatprep.mubr.f32.mxu0 %v334
      %607 = vmatmul.mubr.f32.gmra.mrb[0].mxu0 %v333
      %v608 = vpop.f32.mrb[0].mxu0
      %v609 = vadd.f32 %v529, %v608
      %v610 = vpop.f32.mrb[0].mxu0
      %v611 = vadd.f32 %v533, %v610
      %612 = vmatprep.mubr.f32.mxu0 %v336
      %613 = vmatmul.mubr.f32.gmra.mrb[0].mxu0 %v335
      %v614 = vpop.f32.mrb[0].mxu0
      %v615 = vadd.f32 %v529, %v614
      %v616 = vpop.f32.mrb[0].mxu0
      %v617 = vadd.f32 %v533, %v616
      %618 = vmatprep.mubr.f32.mxu0 %v338
      %619 = vmatmul.mubr.f32.gmra.mrb[0].mxu0 %v337
      %v620 = vpop.f32.mrb[0].mxu0
      %v621 = vadd.f32 %v529, %v620
      %v622 = vpop.f32.mrb[0].mxu0
      %v623 = vadd.f32 %v533, %v622
      %624 = vmatprep.mubr.f32.mxu0 %v340
      %625 = vmatmul.mubr.f32.gmra.mrb[0].mxu0 %v339
      %v626 = vpop.f32.mrb[0].mxu0
      %v627 = vadd.f32 %v529, %v626
      %v628 = vpop.f32.mrb[0].mxu0
      %v629 = vadd.f32 %v533, %v628
      %630 = vmatprep.mubr.f32.mxu0 %v342
      %631 = vmatmul.mubr.f32.gmra.mrb[0].mxu0 %v341
      %v632 = vpop.f32.mrb[0].mxu0
      %v633 = vadd.f32 %v529, %v632
      %v634 = vpop.f32.mrb[0].mxu0
      %v635 = vadd.f32 %v533, %v634
      %636 = vmatprep.mubr.f32.mxu0 %v344
      %637 = vmatmul.mubr.f32.gmra.mrb[0].mxu0 %v343
      %v638 = vpop.f32.mrb[0].mxu0
      %v639 = vadd.f32 %v529, %v638
      %v640 = vpop.f32.mrb[0].mxu0
      %v641 = vadd.f32 %v533, %v640
      %642 = vmatprep.mubr.f32.mxu0 %v346
      %643 = vmatmul.mubr.f32.gmra.mrb[0].mxu0 %v345
      %v644 = vpop.f32.mrb[0].mxu0
      %v645 = vadd.f32 %v529, %v644
      %v646 = vpop.f32.mrb[0].mxu0
      %v647 = vadd.f32 %v533, %v646
      %648 = vmatprep.mubr.f32.mxu0 %v348
      %649 = vmatmul.mubr.f32.gmra.mrb[0].mxu0 %v347
      %v650 = vpop.f32.mrb[0].mxu0
      %v651 = vadd.f32 %v529, %v650
      %v652 = vpop.f32.mrb[0].mxu0
      %v653 = vadd.f32 %v533, %v652
      %654 = vmatprep.mubr.f32.mxu0 %v350
      %655 = vmatmul.mubr.f32.gmra.mrb[0].mxu0 %v349
      %v656 = vpop.f32.mrb[0].mxu0
      %v657 = vadd.f32 %v529, %v656
      %v658 = vpop.f32.mrb[0].mxu0
      %v659 = vadd.f32 %v533, %v658
      %660 = vmatprep.mubr.f32.mxu0 %v352
      %661 = vmatmul.mubr.f32.gmra.mrb[0].mxu0 %v351
      %v662 = vpop.f32.mrb[0].mxu0
      %v663 = vadd.f32 %v529, %v662
      %v664 = vpop.f32.mrb[0].mxu0
      %v665 = vadd.f32 %v533, %v664
      %666 = vmatprep.mubr.f32.mxu0 %v354
      %667 = vmatmul.mubr.f32.gmra.mrb[0].mxu0 %v353
      %v668 = vpop.f32.mrb[0].mxu0
      %v669 = vadd.f32 %v529, %v668
      %v670 = vpop.f32.mrb[0].mxu0
      %v671 = vadd.f32 %v533, %v670
      %672 = vmatprep.mubr.f32.mxu0 %v356
      %673 = vmatmul.mubr.f32.gmra.mrb[0].mxu0 %v355
      %v674 = vpop.f32.mrb[0].mxu0
      %v675 = vadd.f32 %v529, %v674
      %v676 = vpop.f32.mrb[0].mxu0
      %v677 = vadd.f32 %v533, %v676
      %678 = vmatprep.mubr.f32.mxu0 %v358
      %679 = vmatmul.mubr.f32.gmra.mrb[0].mxu0 %v357
      %v680 = vpop.f32.mrb[0].mxu0
      %v681 = vadd.f32 %v529, %v680
      %v682 = vpop.f32.mrb[0].mxu0
      %v683 = vadd.f32 %v533, %v682
      %684 = vmatprep.mubr.f32.mxu0 %v360
      %685 = vmatmul.mubr.f32.gmra.mrb[0].mxu0 %v359
      %v686 = vpop.f32.mrb[0].mxu0
      %v687 = vadd.f32 %v529, %v686
      %v688 = vpop.f32.mrb[0].mxu0
      %v689 = vadd.f32 %v533, %v688
      %690 = vmatprep.mubr.f32.mxu0 %v362
      %691 = vmatmul.mubr.f32.gmra.mrb[0].mxu0 %v361
      %v692 = vpop.f32.mrb[0].mxu0
      %v693 = vadd.f32 %v529, %v692
      %v694 = vpop.f32.mrb[0].mxu0
      %v695 = vadd.f32 %v533, %v694
      %696 = vdwg.mxu0
      %v697 = vmax.f32 %v603, 0.0
      %v698 = vmax.f32 %v605, 0.0
      %v699 = vmax.f32 %v609, 0.0
      %v700 = vmax.f32 %v611, 0.0
      %v701 = vmax.f32 %v615, 0.0
      %v702 = vmax.f32 %v617, 0.0
      %v703 = vmax.f32 %v621, 0.0
      %v704 = vmax.f32 %v623, 0.0
      %v705 = vmax.f32 %v627, 0.0
      %v706 = vmax.f32 %v629, 0.0
      %v707 = vmax.f32 %v633, 0.0
      %v708 = vmax.f32 %v635, 0.0
      %v709 = vmax.f32 %v639, 0.0
      %v710 = vmax.f32 %v641, 0.0
      %v711 = vmax.f32 %v645, 0.0
      %v712 = vmax.f32 %v647, 0.0
      %v713 = vmax.f32 %v651, 0.0
      %v714 = vmax.f32 %v653, 0.0
      %v715 = vmax.f32 %v657, 0.0
      %v716 = vmax.f32 %v659, 0.0
      %v717 = vmax.f32 %v663, 0.0
      %v718 = vmax.f32 %v665, 0.0
      %v719 = vmax.f32 %v669, 0.0
      %v720 = vmax.f32 %v671, 0.0
      %v721 = vmax.f32 %v675, 0.0
      %v722 = vmax.f32 %v677, 0.0
      %v723 = vmax.f32 %v681, 0.0
      %v724 = vmax.f32 %v683, 0.0
      %v725 = vmax.f32 %v687, 0.0
      %v726 = vmax.f32 %v689, 0.0
      %v727 = vmax.f32 %v693, 0.0
      %v728 = vmax.f32 %v695, 0.0
      %v731 = vcombine.low %v458, %v459
      %v732 = vcombine.high %v458, %v459
      %v734 = vunpack.c.l.s4 1966171168
      %v735 = vunpack.c.0.s8 %v734
      %v736 = vlaneseq
      %v737 = vshrl.u32 %v736, 7
      %v738 = vsub.s32 %v735, %v737
      %v739 = vrot.slane %v731, %v738
      %v741 = vunpack.c.l.s4 1966171168
      %v742 = vunpack.c.0.s8 %v741
      %v743 = vlaneseq
      %v744 = vshrl.u32 %v743, 7
      %v745 = vsub.s32 %v742, %v744
      %v746 = vrot.slane %v732, %v745
      %v747 = vcombine.high %v739, %v739
      %v748 = vcombine.high %v746, %v746
      %v750 = vunpack.c.l.s4 1966171168
      %v751 = vunpack.c.0.s8 %v750
      %v752 = vlaneseq
      %v753 = vshrl.u32 %v752, 7
      %v754 = vsub.s32 %v751, %v753
      %v755 = vrot.slane %v739, %v754
      %v757 = vunpack.c.l.s4 1966171168
      %v758 = vunpack.c.0.s8 %v757
      %v759 = vlaneseq
      %v760 = vshrl.u32 %v759, 7
      %v761 = vsub.s32 %v758, %v760
      %v762 = vrot.slane %v746, %v761
      %v764 = vunpack.c.l.s4 1966171168
      %v765 = vunpack.c.0.s8 %v764
      %v766 = vlaneseq
      %v767 = vshrl.u32 %v766, 7
      %v768 = vsub.s32 %v765, %v767
      %v769 = vrot.slane %v747, %v768
      %v771 = vunpack.c.l.s4 1966171168
      %v772 = vunpack.c.0.s8 %v771
      %v773 = vlaneseq
      %v774 = vshrl.u32 %v773, 7
      %v775 = vsub.s32 %v772, %v774
      %v776 = vrot.slane %v748, %v775
      %v777 = vcombine.high %v755, %v755
      %v778 = vcombine.high %v762, %v762
      %v779 = vcombine.high %v769, %v769
      %v780 = vcombine.high %v776, %v776
      %v781 = vlaneseq
      %v782 = vshrl.u32 %v781, 7
      %v783 = vsub.s32 0, %v782
      %v784 = vrot.slane %v755, %v783
      %v785 = vlaneseq
      %v786 = vshrl.u32 %v785, 7
      %v787 = vsub.s32 1, %v786
      %v788 = vrot.slane %v755, %v787
      %v789 = vlaneseq
      %v790 = vshrl.u32 %v789, 7
      %v791 = vsub.s32 0, %v790
      %v792 = vrot.slane %v769, %v791
      %v793 = vlaneseq
      %v794 = vshrl.u32 %v793, 7
      %v795 = vsub.s32 1, %v794
      %v796 = vrot.slane %v769, %v795
      %v797 = vlaneseq
      %v798 = vshrl.u32 %v797, 7
      %v799 = vsub.s32 0, %v798
      %v800 = vrot.slane %v777, %v799
      %v801 = vlaneseq
      %v802 = vshrl.u32 %v801, 7
      %v803 = vsub.s32 1, %v802
      %v804 = vrot.slane %v777, %v803
      %v805 = vlaneseq
      %v806 = vshrl.u32 %v805, 7
      %v807 = vsub.s32 0, %v806
      %v808 = vrot.slane %v779, %v807
      %v809 = vlaneseq
      %v810 = vshrl.u32 %v809, 7
      %v811 = vsub.s32 1, %v810
      %v812 = vrot.slane %v779, %v811
      %v813 = vlaneseq
      %v814 = vshrl.u32 %v813, 7
      %v815 = vsub.s32 0, %v814
      %v816 = vrot.slane %v762, %v815
      %v817 = vlaneseq
      %v818 = vshrl.u32 %v817, 7
      %v819 = vsub.s32 1, %v818
      %v820 = vrot.slane %v762, %v819
      %v821 = vlaneseq
      %v822 = vshrl.u32 %v821, 7
      %v823 = vsub.s32 0, %v822
      %v824 = vrot.slane %v776, %v823
      %v825 = vlaneseq
      %v826 = vshrl.u32 %v825, 7
      %v827 = vsub.s32 1, %v826
      %v828 = vrot.slane %v776, %v827
      %v829 = vlaneseq
      %v830 = vshrl.u32 %v829, 7
      %v831 = vsub.s32 0, %v830
      %v832 = vrot.slane %v778, %v831
      %v833 = vlaneseq
      %v834 = vshrl.u32 %v833, 7
      %v835 = vsub.s32 1, %v834
      %v836 = vrot.slane %v778, %v835
      %v837 = vlaneseq
      %v838 = vshrl.u32 %v837, 7
      %v839 = vsub.s32 0, %v838
      %v840 = vrot.slane %v780, %v839
      %v841 = vlaneseq
      %v842 = vshrl.u32 %v841, 7
      %v843 = vsub.s32 1, %v842
      %v844 = vrot.slane %v780, %v843
      %v861 = vmul.f32 %v697, %v784
      %v862 = vmul.f32 %v698, %v788
      %v863 = vmul.f32 %v699, %v784
      %v864 = vmul.f32 %v700, %v788
      %v865 = vmul.f32 %v701, %v792
      %v866 = vmul.f32 %v702, %v796
      %v867 = vmul.f32 %v703, %v792
      %v868 = vmul.f32 %v704, %v796
      %v869 = vmul.f32 %v705, %v800
      %v870 = vmul.f32 %v706, %v804
      %v871 = vmul.f32 %v707, %v800
      %v872 = vmul.f32 %v708, %v804
      %v873 = vmul.f32 %v709, %v808
      %v874 = vmul.f32 %v710, %v812
      %v875 = vmul.f32 %v711, %v808
      %v876 = vmul.f32 %v712, %v812
      %v877 = vmul.f32 %v713, %v816
      %v878 = vmul.f32 %v714, %v820
      %v879 = vmul.f32 %v715, %v816
      %v880 = vmul.f32 %v716, %v820
      %v881 = vmul.f32 %v717, %v824
      %v882 = vmul.f32 %v718, %v828
      %v883 = vmul.f32 %v719, %v824
      %v884 = vmul.f32 %v720, %v828
      %v885 = vmul.f32 %v721, %v832
      %v886 = vmul.f32 %v722, %v836
      %v887 = vmul.f32 %v723, %v832
      %v888 = vmul.f32 %v724, %v836
      %v889 = vmul.f32 %v725, %v840
      %v890 = vmul.f32 %v726, %v844
      %v891 = vmul.f32 %v727, %v840
      %v892 = vmul.f32 %v728, %v844
      %v893 = vld [vmem:[%s6] sm:$0x3]
      %v895 = vlaneseq
      %v896 = vshrl.u32 %v895, 7
      %v897 = vsub.s32 0, %v896
      %v898 = vrot.slane %v893, %v897
      %v899 = vlaneseq
      %v900 = vshrl.u32 %v899, 7
      %v901 = vsub.s32 1, %v900
      %v902 = vrot.slane %v893, %v901
      %v905 = vmul.f32 %v861, %v898
      %v906 = vmul.f32 %v862, %v902
      %v907 = vmul.f32 %v863, %v898
      %v908 = vmul.f32 %v864, %v902
      %v909 = vmul.f32 %v865, %v898
      %v910 = vmul.f32 %v866, %v902
      %v911 = vmul.f32 %v867, %v898
      %v912 = vmul.f32 %v868, %v902
      %v913 = vmul.f32 %v869, %v898
      %v914 = vmul.f32 %v870, %v902
      %v915 = vmul.f32 %v871, %v898
      %v916 = vmul.f32 %v872, %v902
      %v917 = vmul.f32 %v873, %v898
      %v918 = vmul.f32 %v874, %v902
      %v919 = vmul.f32 %v875, %v898
      %v920 = vmul.f32 %v876, %v902
      %v921 = vmul.f32 %v877, %v898
      %v922 = vmul.f32 %v878, %v902
      %v923 = vmul.f32 %v879, %v898
      %v924 = vmul.f32 %v880, %v902
      %v925 = vmul.f32 %v881, %v898
      %v926 = vmul.f32 %v882, %v902
      %v927 = vmul.f32 %v883, %v898
      %v928 = vmul.f32 %v884, %v902
      %v929 = vmul.f32 %v885, %v898
      %v930 = vmul.f32 %v886, %v902
      %v931 = vmul.f32 %v887, %v898
      %v932 = vmul.f32 %v888, %v902
      %v933 = vmul.f32 %v889, %v898
      %v934 = vmul.f32 %v890, %v902
      %v935 = vmul.f32 %v891, %v898
      %v936 = vmul.f32 %v892, %v902
      %v937 = vadd.f32 %v905, %v906
      %938 = vadd.xlane.f32.xlu0 %v937
      %v939 = vpop.xlane.xlu0 %938
      %v940 = vadd.f32 %v907, %v908
      %941 = vadd.xlane.f32.xlu0 %v940
      %v942 = vpop.xlane.xlu0 %941
      %v943 = vadd.f32 %v909, %v910
      %944 = vadd.xlane.f32.xlu0 %v943
      %v945 = vpop.xlane.xlu0 %944
      %v946 = vadd.f32 %v911, %v912
      %947 = vadd.xlane.f32.xlu0 %v946
      %v948 = vpop.xlane.xlu0 %947
      %v949 = vadd.f32 %v913, %v914
      %950 = vadd.xlane.f32.xlu0 %v949
      %v951 = vpop.xlane.xlu0 %950
      %v952 = vadd.f32 %v915, %v916
      %953 = vadd.xlane.f32.xlu0 %v952
      %v954 = vpop.xlane.xlu0 %953
      %v955 = vadd.f32 %v917, %v918
      %956 = vadd.xlane.f32.xlu0 %v955
      %v957 = vpop.xlane.xlu0 %956
      %v958 = vadd.f32 %v919, %v920
      %959 = vadd.xlane.f32.xlu0 %v958
      %v960 = vpop.xlane.xlu0 %959
      %v961 = vadd.f32 %v921, %v922
      %962 = vadd.xlane.f32.xlu0 %v961
      %v963 = vpop.xlane.xlu0 %962
      %v964 = vadd.f32 %v923, %v924
      %965 = vadd.xlane.f32.xlu0 %v964
      %v966 = vpop.xlane.xlu0 %965
      %v967 = vadd.f32 %v925, %v926
      %968 = vadd.xlane.f32.xlu0 %v967
      %v969 = vpop.xlane.xlu0 %968
      %v970 = vadd.f32 %v927, %v928
      %971 = vadd.xlane.f32.xlu0 %v970
      %v972 = vpop.xlane.xlu0 %971
      %v973 = vadd.f32 %v929, %v930
      %974 = vadd.xlane.f32.xlu0 %v973
      %v975 = vpop.xlane.xlu0 %974
      %v976 = vadd.f32 %v931, %v932
      %977 = vadd.xlane.f32.xlu0 %v976
      %v978 = vpop.xlane.xlu0 %977
      %v979 = vadd.f32 %v933, %v934
      %980 = vadd.xlane.f32.xlu0 %v979
      %v981 = vpop.xlane.xlu0 %980
      %v982 = vadd.f32 %v935, %v936
      %983 = vadd.xlane.f32.xlu0 %v982
      %v984 = vpop.xlane.xlu0 %983
      %v985 = vld [vmem:[#allocation2] sm:$0x1]
      %v987 = vlaneseq
      %v988 = vshrl.u32 %v987, 7
      %v989 = vsub.s32 0, %v988
      %v990 = vrot.slane %v985, %v989
      %991 = vset.pattern.permute.xlu0 0
      %992 = vperm.xlu0 %991, %v990
      %v993 = vpop.permute.xlu0 %992
      %v995 = vadd.f32 %v939, %v993
      %v996 = vadd.f32 %v942, %v993
      %v997 = vadd.f32 %v945, %v993
      %v998 = vadd.f32 %v948, %v993
      %v999 = vadd.f32 %v951, %v993
      %v1000 = vadd.f32 %v954, %v993
      %v1001 = vadd.f32 %v957, %v993
      %v1002 = vadd.f32 %v960, %v993
      %v1003 = vadd.f32 %v963, %v993
      %v1004 = vadd.f32 %v966, %v993
      %v1005 = vadd.f32 %v969, %v993
      %v1006 = vadd.f32 %v972, %v993
      %v1007 = vadd.f32 %v975, %v993
      %v1008 = vadd.f32 %v978, %v993
      %v1009 = vadd.f32 %v981, %v993
      %v1010 = vadd.f32 %v984, %v993
      %v1027 = vlaneseq
      %v1028 = vand.u32 %v1027, 127
      %v1029 = vlaneseq
      %v1030 = vshrl.u32 %v1029, 7
      %v1031 = vsub.s32 %v1028, %v1030
      %v1032 = vrot.slane %v995, %v1031
      %v1033 = vadd.s32 %v1028, 4294967288
      %v1034 = vlaneseq
      %v1035 = vshrl.u32 %v1034, 7
      %v1036 = vsub.s32 %v1033, %v1035
      %v1037 = vrot.slane %v996, %v1036
      %vm1038 = vcmask 130112
      %v1039 = vsel %vm1038, %v1037, %v1032
      %v1040 = vlaneseq
      %v1041 = vshrl.u32 %v1040, 7
      %v1042 = vsub.s32 %v1028, %v1041
      %v1043 = vrot.slane %v997, %v1042
      %v1044 = vlaneseq
      %v1045 = vshrl.u32 %v1044, 7
      %v1046 = vsub.s32 %v1033, %v1045
      %v1047 = vrot.slane %v998, %v1046
      %v1048 = vsel %vm1038, %v1047, %v1043
      %v1049 = vlaneseq
      %v1050 = vshrl.u32 %v1049, 7
      %v1051 = vsub.s32 %v1028, %v1050
      %v1052 = vrot.slane %v999, %v1051
      %v1053 = vlaneseq
      %v1054 = vshrl.u32 %v1053, 7
      %v1055 = vsub.s32 %v1033, %v1054
      %v1056 = vrot.slane %v1000, %v1055
      %v1057 = vsel %vm1038, %v1056, %v1052
      %v1058 = vlaneseq
      %v1059 = vshrl.u32 %v1058, 7
      %v1060 = vsub.s32 %v1028, %v1059
      %v1061 = vrot.slane %v1001, %v1060
      %v1062 = vlaneseq
      %v1063 = vshrl.u32 %v1062, 7
      %v1064 = vsub.s32 %v1033, %v1063
      %v1065 = vrot.slane %v1002, %v1064
      %v1066 = vsel %vm1038, %v1065, %v1061
      %v1067 = vlaneseq
      %v1068 = vshrl.u32 %v1067, 7
      %v1069 = vsub.s32 %v1028, %v1068
      %v1070 = vrot.slane %v1003, %v1069
      %v1071 = vlaneseq
      %v1072 = vshrl.u32 %v1071, 7
      %v1073 = vsub.s32 %v1033, %v1072
      %v1074 = vrot.slane %v1004, %v1073
      %v1075 = vsel %vm1038, %v1074, %v1070
      %v1076 = vlaneseq
      %v1077 = vshrl.u32 %v1076, 7
      %v1078 = vsub.s32 %v1028, %v1077
      %v1079 = vrot.slane %v1005, %v1078
      %v1080 = vlaneseq
      %v1081 = vshrl.u32 %v1080, 7
      %v1082 = vsub.s32 %v1033, %v1081
      %v1083 = vrot.slane %v1006, %v1082
      %v1084 = vsel %vm1038, %v1083, %v1079
      %v1085 = vlaneseq
      %v1086 = vshrl.u32 %v1085, 7
      %v1087 = vsub.s32 %v1028, %v1086
      %v1088 = vrot.slane %v1007, %v1087
      %v1089 = vlaneseq
      %v1090 = vshrl.u32 %v1089, 7
      %v1091 = vsub.s32 %v1033, %v1090
      %v1092 = vrot.slane %v1008, %v1091
      %v1093 = vsel %vm1038, %v1092, %v1088
      %v1094 = vlaneseq
      %v1095 = vshrl.u32 %v1094, 7
      %v1096 = vsub.s32 %v1028, %v1095
      %v1097 = vrot.slane %v1009, %v1096
      %v1098 = vlaneseq
      %v1099 = vshrl.u32 %v1098, 7
      %v1100 = vsub.s32 %v1033, %v1099
      %v1101 = vrot.slane %v1010, %v1100
      %v1102 = vsel %vm1038, %v1101, %v1097
      %vm1103 = vcmask 1041409
      %v1104 = vsel %vm1103, %v1048, %v1039
      %vm1105 = vcmask 1042434
      %v1106 = vsel %vm1105, %v1057, %v1104
      %vm1107 = vcmask 1043459
      %v1108 = vsel %vm1107, %v1066, %v1106
      %vm1109 = vcmask 1044484
      %v1110 = vsel %vm1109, %v1075, %v1108
      %vm1111 = vcmask 1045509
      %v1112 = vsel %vm1111, %v1084, %v1110
      %vm1113 = vcmask 1046534
      %v1114 = vsel %vm1113, %v1093, %v1112
      %vm1115 = vcmask 1047559
      %v1116 = vsel %vm1115, %v1102, %v1114
      %vm1118 = vcmask 130048
      %v1119 = vsel %vm1118, %v1116, -inf
      %1120 = vmax.xlane.f32.xlu0 %v1119
      %v1121 = vpop.xlane.xlu0 %1120
      %v1123 = vlaneseq
      %v1124 = vshrl.u32 %v1123, 7
      %v1125 = vsub.s32 0, %v1124
      %v1126 = vrot.slane %v1121, %v1125
      %v1127 = vlaneseq
      %v1128 = vshrl.u32 %v1127, 7
      %v1129 = vsub.s32 1, %v1128
      %v1130 = vrot.slane %v1121, %v1129
      %v1131 = vlaneseq
      %v1132 = vshrl.u32 %v1131, 7
      %v1133 = vsub.s32 2, %v1132
      %v1134 = vrot.slane %v1121, %v1133
      %v1135 = vlaneseq
      %v1136 = vshrl.u32 %v1135, 7
      %v1137 = vsub.s32 3, %v1136
      %v1138 = vrot.slane %v1121, %v1137
      %v1139 = vlaneseq
      %v1140 = vshrl.u32 %v1139, 7
      %v1141 = vsub.s32 4, %v1140
      %v1142 = vrot.slane %v1121, %v1141
      %v1143 = vlaneseq
      %v1144 = vshrl.u32 %v1143, 7
      %v1145 = vsub.s32 5, %v1144
      %v1146 = vrot.slane %v1121, %v1145
      %v1147 = vlaneseq
      %v1148 = vshrl.u32 %v1147, 7
      %v1149 = vsub.s32 6, %v1148
      %v1150 = vrot.slane %v1121, %v1149
      %v1151 = vlaneseq
      %v1152 = vshrl.u32 %v1151, 7
      %v1153 = vsub.s32 7, %v1152
      %v1154 = vrot.slane %v1121, %v1153
      %v1163 = vsub.f32 %v995, %v1126
      %v1164 = vsub.f32 %v996, %v1126
      %v1165 = vsub.f32 %v997, %v1130
      %v1166 = vsub.f32 %v998, %v1130
      %v1167 = vsub.f32 %v999, %v1134
      %v1168 = vsub.f32 %v1000, %v1134
      %v1169 = vsub.f32 %v1001, %v1138
      %v1170 = vsub.f32 %v1002, %v1138
      %v1171 = vsub.f32 %v1003, %v1142
      %v1172 = vsub.f32 %v1004, %v1142
      %v1173 = vsub.f32 %v1005, %v1146
      %v1174 = vsub.f32 %v1006, %v1146
      %v1175 = vsub.f32 %v1007, %v1150
      %v1176 = vsub.f32 %v1008, %v1150
      %v1177 = vsub.f32 %v1009, %v1154
      %v1178 = vsub.f32 %v1010, %v1154
      %v1179 = vmul.f32 %v1163, 1.442695
      %v1180 = vpow.pop %v1179
      %v1181 = vmul.f32 %v1164, 1.442695
      %v1182 = vpow.pop %v1181
      %v1183 = vmul.f32 %v1165, 1.442695
      %v1184 = vpow.pop %v1183
      %v1185 = vmul.f32 %v1166, 1.442695
      %v1186 = vpow.pop %v1185
      %v1187 = vmul.f32 %v1167, 1.442695
      %v1188 = vpow.pop %v1187
      %v1189 = vmul.f32 %v1168, 1.442695
      %v1190 = vpow.pop %v1189
      %v1191 = vmul.f32 %v1169, 1.442695
      %v1192 = vpow.pop %v1191
      %v1193 = vmul.f32 %v1170, 1.442695
      %v1194 = vpow.pop %v1193
      %v1195 = vmul.f32 %v1171, 1.442695
      %v1196 = vpow.pop %v1195
      %v1197 = vmul.f32 %v1172, 1.442695
      %v1198 = vpow.pop %v1197
      %v1199 = vmul.f32 %v1173, 1.442695
      %v1200 = vpow.pop %v1199
      %v1201 = vmul.f32 %v1174, 1.442695
      %v1202 = vpow.pop %v1201
      %v1203 = vmul.f32 %v1175, 1.442695
      %v1204 = vpow.pop %v1203
      %v1205 = vmul.f32 %v1176, 1.442695
      %v1206 = vpow.pop %v1205
      %v1207 = vmul.f32 %v1177, 1.442695
      %v1208 = vpow.pop %v1207
      %v1209 = vmul.f32 %v1178, 1.442695
      %v1210 = vpow.pop %v1209
      %1227 = vset.pattern.permute.xlu0 0
      %1228 = vperm.xlu0 %1227, %v1180
      %v1229 = vpop.permute.xlu0 %1228
      %1230 = vset.pattern.permute.xlu0 0
      %1231 = vperm.xlu0 %1230, %v1182
      %v1232 = vpop.permute.xlu0 %1231
      %1233 = vset.pattern.permute.xlu0 0
      %1234 = vperm.xlu0 %1233, %v1184
      %v1235 = vpop.permute.xlu0 %1234
      %1236 = vset.pattern.permute.xlu0 0
      %1237 = vperm.xlu0 %1236, %v1186
      %v1238 = vpop.permute.xlu0 %1237
      %1239 = vset.pattern.permute.xlu0 0
      %1240 = vperm.xlu0 %1239, %v1188
      %v1241 = vpop.permute.xlu0 %1240
      %1242 = vset.pattern.permute.xlu0 0
      %1243 = vperm.xlu0 %1242, %v1190
      %v1244 = vpop.permute.xlu0 %1243
      %1245 = vset.pattern.permute.xlu0 0
      %1246 = vperm.xlu0 %1245, %v1192
      %v1247 = vpop.permute.xlu0 %1246
      %1248 = vset.pattern.permute.xlu0 0
      %1249 = vperm.xlu0 %1248, %v1194
      %v1250 = vpop.permute.xlu0 %1249
      %1251 = vset.pattern.permute.xlu0 0
      %1252 = vperm.xlu0 %1251, %v1196
      %v1253 = vpop.permute.xlu0 %1252
      %1254 = vset.pattern.permute.xlu0 0
      %1255 = vperm.xlu0 %1254, %v1198
      %v1256 = vpop.permute.xlu0 %1255
      %1257 = vset.pattern.permute.xlu0 0
      %1258 = vperm.xlu0 %1257, %v1200
      %v1259 = vpop.permute.xlu0 %1258
      %1260 = vset.pattern.permute.xlu0 0
      %1261 = vperm.xlu0 %1260, %v1202
      %v1262 = vpop.permute.xlu0 %1261
      %1263 = vset.pattern.permute.xlu0 0
      %1264 = vperm.xlu0 %1263, %v1204
      %v1265 = vpop.permute.xlu0 %1264
      %1266 = vset.pattern.permute.xlu0 0
      %1267 = vperm.xlu0 %1266, %v1206
      %v1268 = vpop.permute.xlu0 %1267
      %1269 = vset.pattern.permute.xlu0 0
      %1270 = vperm.xlu0 %1269, %v1208
      %v1271 = vpop.permute.xlu0 %1270
      %1272 = vset.pattern.permute.xlu0 0
      %1273 = vperm.xlu0 %1272, %v1210
      %v1274 = vpop.permute.xlu0 %1273
      %v1275 = vlaneseq
      %v1276 = vshrl.u32 %v1275, 7
      %v1277 = vsub.s32 %v1028, %v1276
      %v1278 = vrot.slane %v1229, %v1277
      %v1279 = vlaneseq
      %v1280 = vshrl.u32 %v1279, 7
      %v1281 = vsub.s32 %v1033, %v1280
      %v1282 = vrot.slane %v1232, %v1281
      %v1283 = vsel %vm1038, %v1282, %v1278
      %v1284 = vlaneseq
      %v1285 = vshrl.u32 %v1284, 7
      %v1286 = vsub.s32 %v1028, %v1285
      %v1287 = vrot.slane %v1235, %v1286
      %v1288 = vlaneseq
      %v1289 = vshrl.u32 %v1288, 7
      %v1290 = vsub.s32 %v1033, %v1289
      %v1291 = vrot.slane %v1238, %v1290
      %v1292 = vsel %vm1038, %v1291, %v1287
      %v1293 = vlaneseq
      %v1294 = vshrl.u32 %v1293, 7
      %v1295 = vsub.s32 %v1028, %v1294
      %v1296 = vrot.slane %v1241, %v1295
      %v1297 = vlaneseq
      %v1298 = vshrl.u32 %v1297, 7
      %v1299 = vsub.s32 %v1033, %v1298
      %v1300 = vrot.slane %v1244, %v1299
      %v1301 = vsel %vm1038, %v1300, %v1296
      %v1302 = vlaneseq
      %v1303 = vshrl.u32 %v1302, 7
      %v1304 = vsub.s32 %v1028, %v1303
      %v1305 = vrot.slane %v1247, %v1304
      %v1306 = vlaneseq
      %v1307 = vshrl.u32 %v1306, 7
      %v1308 = vsub.s32 %v1033, %v1307
      %v1309 = vrot.slane %v1250, %v1308
      %v1310 = vsel %vm1038, %v1309, %v1305
      %v1311 = vlaneseq
      %v1312 = vshrl.u32 %v1311, 7
      %v1313 = vsub.s32 %v1028, %v1312
      %v1314 = vrot.slane %v1253, %v1313
      %v1315 = vlaneseq
      %v1316 = vshrl.u32 %v1315, 7
      %v1317 = vsub.s32 %v1033, %v1316
      %v1318 = vrot.slane %v1256, %v1317
      %v1319 = vsel %vm1038, %v1318, %v1314
      %v1320 = vlaneseq
      %v1321 = vshrl.u32 %v1320, 7
      %v1322 = vsub.s32 %v1028, %v1321
      %v1323 = vrot.slane %v1259, %v1322
      %v1324 = vlaneseq
      %v1325 = vshrl.u32 %v1324, 7
      %v1326 = vsub.s32 %v1033, %v1325
      %v1327 = vrot.slane %v1262, %v1326
      %v1328 = vsel %vm1038, %v1327, %v1323
      %v1329 = vlaneseq
      %v1330 = vshrl.u32 %v1329, 7
      %v1331 = vsub.s32 %v1028, %v1330
      %v1332 = vrot.slane %v1265, %v1331
      %v1333 = vlaneseq
      %v1334 = vshrl.u32 %v1333, 7
      %v1335 = vsub.s32 %v1033, %v1334
      %v1336 = vrot.slane %v1268, %v1335
      %v1337 = vsel %vm1038, %v1336, %v1332
      %v1338 = vlaneseq
      %v1339 = vshrl.u32 %v1338, 7
      %v1340 = vsub.s32 %v1028, %v1339
      %v1341 = vrot.slane %v1271, %v1340
      %v1342 = vlaneseq
      %v1343 = vshrl.u32 %v1342, 7
      %v1344 = vsub.s32 %v1033, %v1343
      %v1345 = vrot.slane %v1274, %v1344
      %v1346 = vsel %vm1038, %v1345, %v1341
      %v1347 = vsel %vm1103, %v1292, %v1283
      %v1348 = vsel %vm1105, %v1301, %v1347
      %v1349 = vsel %vm1107, %v1310, %v1348
      %v1350 = vsel %vm1109, %v1319, %v1349
      %v1351 = vsel %vm1111, %v1328, %v1350
      %v1352 = vsel %vm1113, %v1337, %v1351
      %v1353 = vsel %vm1115, %v1346, %v1352
      %v1355 = vsel %vm1118, %v1353, 0.0
      %1356 = vadd.xlane.f32.xlu0 %v1355
      %v1357 = vpop.xlane.xlu0 %1356
      %v1358 = vrcp.pop %v1357
      %v1360 = vlaneseq
      %v1361 = vshrl.u32 %v1360, 7
      %v1362 = vsub.s32 0, %v1361
      %v1363 = vrot.slane %v1358, %v1362
      %v1364 = vlaneseq
      %v1365 = vshrl.u32 %v1364, 7
      %v1366 = vsub.s32 1, %v1365
      %v1367 = vrot.slane %v1358, %v1366
      %v1368 = vlaneseq
      %v1369 = vshrl.u32 %v1368, 7
      %v1370 = vsub.s32 2, %v1369
      %v1371 = vrot.slane %v1358, %v1370
      %v1372 = vlaneseq
      %v1373 = vshrl.u32 %v1372, 7
      %v1374 = vsub.s32 3, %v1373
      %v1375 = vrot.slane %v1358, %v1374
      %v1376 = vlaneseq
      %v1377 = vshrl.u32 %v1376, 7
      %v1378 = vsub.s32 4, %v1377
      %v1379 = vrot.slane %v1358, %v1378
      %v1380 = vlaneseq
      %v1381 = vshrl.u32 %v1380, 7
      %v1382 = vsub.s32 5, %v1381
      %v1383 = vrot.slane %v1358, %v1382
      %v1384 = vlaneseq
      %v1385 = vshrl.u32 %v1384, 7
      %v1386 = vsub.s32 6, %v1385
      %v1387 = vrot.slane %v1358, %v1386
      %v1388 = vlaneseq
      %v1389 = vshrl.u32 %v1388, 7
      %v1390 = vsub.s32 7, %v1389
      %v1391 = vrot.slane %v1358, %v1390
      %v1400 = vmul.f32 %v1180, %v1363
      %v1401 = vmul.f32 %v1182, %v1363
      %v1402 = vmul.f32 %v1184, %v1367
      %v1403 = vmul.f32 %v1186, %v1367
      %v1404 = vmul.f32 %v1188, %v1371
      %v1405 = vmul.f32 %v1190, %v1371
      %v1406 = vmul.f32 %v1192, %v1375
      %v1407 = vmul.f32 %v1194, %v1375
      %v1408 = vmul.f32 %v1196, %v1379
      %v1409 = vmul.f32 %v1198, %v1379
      %v1410 = vmul.f32 %v1200, %v1383
      %v1411 = vmul.f32 %v1202, %v1383
      %v1412 = vmul.f32 %v1204, %v1387
      %v1413 = vmul.f32 %v1206, %v1387
      %v1414 = vmul.f32 %v1208, %v1391
      %v1415 = vmul.f32 %v1210, %v1391
      %1417 = vset.pattern.permute.xlu0 0
      %1418 = vperm.xlu0 %1417, %v1400
      %v1419 = vpop.permute.xlu0 %1418
      %1422 = vset.pattern.permute.xlu0 0
      %1423 = vperm.xlu0 %1422, %v1401
      %v1424 = vpop.permute.xlu0 %1423
      %1427 = vset.pattern.permute.xlu0 0
      %1428 = vperm.xlu0 %1427, %v1402
      %v1429 = vpop.permute.xlu0 %1428
      %1432 = vset.pattern.permute.xlu0 0
      %1433 = vperm.xlu0 %1432, %v1403
      %v1434 = vpop.permute.xlu0 %1433
      %1437 = vset.pattern.permute.xlu0 0
      %1438 = vperm.xlu0 %1437, %v1404
      %v1439 = vpop.permute.xlu0 %1438
      %1442 = vset.pattern.permute.xlu0 0
      %1443 = vperm.xlu0 %1442, %v1405
      %v1444 = vpop.permute.xlu0 %1443
      %1447 = vset.pattern.permute.xlu0 0
      %1448 = vperm.xlu0 %1447, %v1406
      %v1449 = vpop.permute.xlu0 %1448
      %1452 = vset.pattern.permute.xlu0 0
      %1453 = vperm.xlu0 %1452, %v1407
      %v1454 = vpop.permute.xlu0 %1453
      %1457 = vset.pattern.permute.xlu0 0
      %1458 = vperm.xlu0 %1457, %v1408
      %v1459 = vpop.permute.xlu0 %1458
      %1462 = vset.pattern.permute.xlu0 0
      %1463 = vperm.xlu0 %1462, %v1409
      %v1464 = vpop.permute.xlu0 %1463
      %1467 = vset.pattern.permute.xlu0 0
      %1468 = vperm.xlu0 %1467, %v1410
      %v1469 = vpop.permute.xlu0 %1468
      %1472 = vset.pattern.permute.xlu0 0
      %1473 = vperm.xlu0 %1472, %v1411
      %v1474 = vpop.permute.xlu0 %1473
      %1477 = vset.pattern.permute.xlu0 0
      %1478 = vperm.xlu0 %1477, %v1412
      %v1479 = vpop.permute.xlu0 %1478
      %1482 = vset.pattern.permute.xlu0 0
      %1483 = vperm.xlu0 %1482, %v1413
      %v1484 = vpop.permute.xlu0 %1483
      %1487 = vset.pattern.permute.xlu0 0
      %1488 = vperm.xlu0 %1487, %v1414
      %v1489 = vpop.permute.xlu0 %1488
      %1492 = vset.pattern.permute.xlu0 0
      %1493 = vperm.xlu0 %1492, %v1415
      %v1494 = vpop.permute.xlu0 %1493
      %v1496 = vmul.f32 %v1419, %v331
      %v1497 = vmul.f32 %v1419, %v332
      %v1498 = vmul.f32 %v1424, %v333
      %v1499 = vmul.f32 %v1424, %v334
      %v1500 = vmul.f32 %v1429, %v335
      %v1501 = vmul.f32 %v1429, %v336
      %v1502 = vmul.f32 %v1434, %v337
      %v1503 = vmul.f32 %v1434, %v338
      %v1504 = vmul.f32 %v1439, %v339
      %v1505 = vmul.f32 %v1439, %v340
      %v1506 = vmul.f32 %v1444, %v341
      %v1507 = vmul.f32 %v1444, %v342
      %v1508 = vmul.f32 %v1449, %v343
      %v1509 = vmul.f32 %v1449, %v344
      %v1510 = vmul.f32 %v1454, %v345
      %v1511 = vmul.f32 %v1454, %v346
      %v1512 = vmul.f32 %v1459, %v347
      %v1513 = vmul.f32 %v1459, %v348
      %v1514 = vmul.f32 %v1464, %v349
      %v1515 = vmul.f32 %v1464, %v350
      %v1516 = vmul.f32 %v1469, %v351
      %v1517 = vmul.f32 %v1469, %v352
      %v1518 = vmul.f32 %v1474, %v353
      %v1519 = vmul.f32 %v1474, %v354
      %v1520 = vmul.f32 %v1479, %v355
      %v1521 = vmul.f32 %v1479, %v356
      %v1522 = vmul.f32 %v1484, %v357
      %v1523 = vmul.f32 %v1484, %v358
      %v1524 = vmul.f32 %v1489, %v359
      %v1525 = vmul.f32 %v1489, %v360
      %v1526 = vmul.f32 %v1494, %v361
      %v1527 = vmul.f32 %v1494, %v362
      %v1528 = vadd.f32 %v1496, %v1498
      %v1529 = vrot.slane %v1528, 4
      %v1530 = vadd.f32 %v1528, %v1529
      %v1531 = vrot.slane %v1530, 2
      %v1532 = vadd.f32 %v1530, %v1531
      %v1533 = vrot.slane %v1532, 1
      %v1534 = vadd.f32 %v1532, %v1533
      %v1535 = vadd.f32 %v1497, %v1499
      %v1536 = vrot.slane %v1535, 4
      %v1537 = vadd.f32 %v1535, %v1536
      %v1538 = vrot.slane %v1537, 2
      %v1539 = vadd.f32 %v1537, %v1538
      %v1540 = vrot.slane %v1539, 1
      %v1541 = vadd.f32 %v1539, %v1540
      %v1542 = vadd.f32 %v1500, %v1502
      %v1543 = vrot.slane %v1542, 4
      %v1544 = vadd.f32 %v1542, %v1543
      %v1545 = vrot.slane %v1544, 2
      %v1546 = vadd.f32 %v1544, %v1545
      %v1547 = vrot.slane %v1546, 1
      %v1548 = vadd.f32 %v1546, %v1547
      %v1549 = vadd.f32 %v1501, %v1503
      %v1550 = vrot.slane %v1549, 4
      %v1551 = vadd.f32 %v1549, %v1550
      %v1552 = vrot.slane %v1551, 2
      %v1553 = vadd.f32 %v1551, %v1552
      %v1554 = vrot.slane %v1553, 1
      %v1555 = vadd.f32 %v1553, %v1554
      %v1556 = vadd.f32 %v1504, %v1506
      %v1557 = vrot.slane %v1556, 4
      %v1558 = vadd.f32 %v1556, %v1557
      %v1559 = vrot.slane %v1558, 2
      %v1560 = vadd.f32 %v1558, %v1559
      %v1561 = vrot.slane %v1560, 1
      %v1562 = vadd.f32 %v1560, %v1561
      %v1563 = vadd.f32 %v1505, %v1507
      %v1564 = vrot.slane %v1563, 4
      %v1565 = vadd.f32 %v1563, %v1564
      %v1566 = vrot.slane %v1565, 2
      %v1567 = vadd.f32 %v1565, %v1566
      %v1568 = vrot.slane %v1567, 1
      %v1569 = vadd.f32 %v1567, %v1568
      %v1570 = vadd.f32 %v1508, %v1510
      %v1571 = vrot.slane %v1570, 4
      %v1572 = vadd.f32 %v1570, %v1571
      %v1573 = vrot.slane %v1572, 2
      %v1574 = vadd.f32 %v1572, %v1573
      %v1575 = vrot.slane %v1574, 1
      %v1576 = vadd.f32 %v1574, %v1575
      %v1577 = vadd.f32 %v1509, %v1511
      %v1578 = vrot.slane %v1577, 4
      %v1579 = vadd.f32 %v1577, %v1578
      %v1580 = vrot.slane %v1579, 2
      %v1581 = vadd.f32 %v1579, %v1580
      %v1582 = vrot.slane %v1581, 1
      %v1583 = vadd.f32 %v1581, %v1582
      %v1584 = vadd.f32 %v1512, %v1514
      %v1585 = vrot.slane %v1584, 4
      %v1586 = vadd.f32 %v1584, %v1585
      %v1587 = vrot.slane %v1586, 2
      %v1588 = vadd.f32 %v1586, %v1587
      %v1589 = vrot.slane %v1588, 1
      %v1590 = vadd.f32 %v1588, %v1589
      %v1591 = vadd.f32 %v1513, %v1515
      %v1592 = vrot.slane %v1591, 4
      %v1593 = vadd.f32 %v1591, %v1592
      %v1594 = vrot.slane %v1593, 2
      %v1595 = vadd.f32 %v1593, %v1594
      %v1596 = vrot.slane %v1595, 1
      %v1597 = vadd.f32 %v1595, %v1596
      %v1598 = vadd.f32 %v1516, %v1518
      %v1599 = vrot.slane %v1598, 4
      %v1600 = vadd.f32 %v1598, %v1599
      %v1601 = vrot.slane %v1600, 2
      %v1602 = vadd.f32 %v1600, %v1601
      %v1603 = vrot.slane %v1602, 1
      %v1604 = vadd.f32 %v1602, %v1603
      %v1605 = vadd.f32 %v1517, %v1519
      %v1606 = vrot.slane %v1605, 4
      %v1607 = vadd.f32 %v1605, %v1606
      %v1608 = vrot.slane %v1607, 2
      %v1609 = vadd.f32 %v1607, %v1608
      %v1610 = vrot.slane %v1609, 1
      %v1611 = vadd.f32 %v1609, %v1610
      %v1612 = vadd.f32 %v1520, %v1522
      %v1613 = vrot.slane %v1612, 4
      %v1614 = vadd.f32 %v1612, %v1613
      %v1615 = vrot.slane %v1614, 2
      %v1616 = vadd.f32 %v1614, %v1615
      %v1617 = vrot.slane %v1616, 1
      %v1618 = vadd.f32 %v1616, %v1617
      %v1619 = vadd.f32 %v1521, %v1523
      %v1620 = vrot.slane %v1619, 4
      %v1621 = vadd.f32 %v1619, %v1620
      %v1622 = vrot.slane %v1621, 2
      %v1623 = vadd.f32 %v1621, %v1622
      %v1624 = vrot.slane %v1623, 1
      %v1625 = vadd.f32 %v1623, %v1624
      %v1626 = vadd.f32 %v1524, %v1526
      %v1627 = vrot.slane %v1626, 4
      %v1628 = vadd.f32 %v1626, %v1627
      %v1629 = vrot.slane %v1628, 2
      %v1630 = vadd.f32 %v1628, %v1629
      %v1631 = vrot.slane %v1630, 1
      %v1632 = vadd.f32 %v1630, %v1631
      %v1633 = vadd.f32 %v1525, %v1527
      %v1634 = vrot.slane %v1633, 4
      %v1635 = vadd.f32 %v1633, %v1634
      %v1636 = vrot.slane %v1635, 2
      %v1637 = vadd.f32 %v1635, %v1636
      %v1638 = vrot.slane %v1637, 1
      %v1639 = vadd.f32 %v1637, %v1638
      %v1656 = vsel %vm1103, %v1548, %v1534
      %v1657 = vsel %vm1105, %v1562, %v1656
      %v1658 = vsel %vm1107, %v1576, %v1657
      %v1659 = vsel %vm1109, %v1590, %v1658
      %v1660 = vsel %vm1111, %v1604, %v1659
      %v1661 = vsel %vm1113, %v1618, %v1660
      %v1662 = vsel %vm1115, %v1632, %v1661
      %v1663 = vsel %vm1103, %v1555, %v1541
      %v1664 = vsel %vm1105, %v1569, %v1663
      %v1665 = vsel %vm1107, %v1583, %v1664
      %v1666 = vsel %vm1109, %v1597, %v1665
      %v1667 = vsel %vm1111, %v1611, %v1666
      %v1668 = vsel %vm1113, %v1625, %v1667
      %v1669 = vsel %vm1115, %v1639, %v1668
      %1672 = vst [vmem:[%s329] sm:$0xff] %v1662
      %1673 = vst [vmem:[%s329 + $0x8] sm:$0xff] %v1669
      %p1674 = scmp.lt.s32.totalorder %s21, 1
      %s1675 = scalar_select %p1674, %s21, 1
      %s1676 = smul.addr %s1675, 2
      %s1677 = smul.addr %s1676, 8
      %s1678 = scalar_lea.vmem %s8, %s1677
      // Predicated region
      $region53: #{speaker_encoder_forward.5} parent=51 // pred_check
        %p1679 = pneg %p217
      $region54: #{speaker_encoder_forward.5} parent=51 // pred_check_branch
        %1681 = sbr.rel (%p1679) target = $region56
      $region55: #{speaker_encoder_forward.5} parent=51 // pred_region
        _
      $region56: #{speaker_encoder_forward.5} parent=51 // pred_fallthru
        _
    $region52: #{speaker_encoder_forward.5} parent=5 // pred_fallthru
      _
    %p1682 = scmp.le.s32.totalorder 2, %s16
    // Predicated region
    $region57: #{speaker_encoder_forward.5} parent=5 // pred_check
      %p1683 = pneg %p1682
    $region58: #{speaker_encoder_forward.5} parent=5 // pred_check_branch
      %1685 = sbr.rel (%p1683) target = $region60
    $region59: #{speaker_encoder_forward.5} parent=5 // pred_region
      %s1686 = ssub.s32 %s16, 2
      // Predicated region
      $region61: #{speaker_encoder_forward.5} parent=59 // pred_check
        %p1687 = pneg %p223
      $region62: #{speaker_encoder_forward.5} parent=59 // pred_check_branch
        %1689 = sbr.rel (%p1687) target = $region64
      $region63: #{speaker_encoder_forward.5} parent=59 // pred_region
        %p1690 = scmp.lt.s32.totalorder %s22, 1
        %s1691 = scalar_select %p1690, %s22, 1
        %s1692 = smul.addr %s1691, 2
        %s1693 = smul.addr %s1692, 8
        %s1694 = scalar_lea.vmem %s8, %s1693
      $region64: #{speaker_encoder_forward.5} parent=59 // pred_fallthru
        _
    $region60: #{speaker_encoder_forward.5} parent=5 // pred_fallthru
      _
  $region6: #{speaker_encoder_forward.5} parent=0 // loop_footer
    %s20 = sadd.s32 1, %s16
  $region7: #{speaker_encoder_forward.5} parent=0 // loop_footer_branch
    %15 = sbr.rel target = $region3
  $region8: #{speaker_encoder_forward.5} parent=0 // loop_exit
    _

</llo_original>
